<compile_context>
chip_gen: v7x
topology: tpu7x:2x2x1
jax: 0.10.0
libtpu: 0.0.40
codegen_flags: <defaults>
</compile_context>

<pallas_src>
import functools

import jax
import jax.numpy as jnp
from jax.experimental import pallas as pl
from jax.experimental.pallas import tpu as pltpu

_EPS = 1e-8          # clamp for norms / denominators (matches clamp_min(1e-8))
_ACOSH_EPS = 1e-7    # arcosh argument clamp (>= 1 + eps)


# ----------------------------------------------------------------------------
# Pallas kernel: one row-tile of the full HFusion forward.
# Column 0 is the Lorentz time coordinate; tangent vectors at the origin have a
# zero time coordinate, so expmap0 uses the space part of the Euclidean input.
# ----------------------------------------------------------------------------
def _make_hfusion_kernel(project: bool):
    def kernel(xh_ref, xe_ref, att_ref, out_ref):
        xh = xh_ref[...].astype(jnp.float32)          # (tm, D)
        xe = xe_ref[...].astype(jnp.float32)          # (tm, D)
        att = att_ref[0]                              # scalar from SMEM

        tm, d = xh.shape
        col = jax.lax.broadcasted_iota(jnp.int32, (tm, d), 1)
        is_time = col == 0                            # column 0 = time coord

        def arcosh(z):
            zc = jnp.maximum(z, 1.0 + _ACOSH_EPS)
            return jnp.log(zc + jnp.sqrt(zc * zc - 1.0))

        def expmap0(u):
            # ||space||^2 = full row dot minus the time term (no where-select).
            u0 = u[:, 0:1]                                             # (tm,1)
            sq = jnp.maximum(
                jnp.sum(u * u, axis=-1, keepdims=True) - u0 * u0, 0.0)
            r = jnp.sqrt(sq)                                           # (tm,1)
            r_safe = jnp.maximum(r, _EPS)
            er = jnp.exp(r)                         # one EUP exp serves both
            inv_er = 1.0 / er
            cosh_r = 0.5 * (er + inv_er)
            sinh_r = 0.5 * (er - inv_er)
            scale = sinh_r * (1.0 / r_safe)                            # (tm,1)
            return jnp.where(is_time, cosh_r, scale * u), cosh_r

        if project:
            xh0 = xh[:, 0:1]                          # already on hyperboloid
        else:
            xh, xh0 = expmap0(xh)
        xe, xe0 = expmap0(xe)

        # Lorentz inner product: <x,y>_L = sum(x*y) - 2 * x0*y0.
        inner_he = jnp.sum(xh * xe, axis=-1, keepdims=True) - 2.0 * xh0 * xe0
        dist = arcosh(-inner_he)                      # (tm, 1)

        # Fusion:  x = x_h + (dist * att) * x_e
        w = dist * att                                # (tm, 1)
        xf = xh + w * xe                              # (tm, D)
        xf0 = xh0 + w * xe0                           # (tm, 1) time coordinate

        # Renormalize onto the hyperboloid: x * rsqrt(clamp(|<x,x>_L|, 1e-8)).
        inner_ff = jnp.sum(xf * xf, axis=-1, keepdims=True) - 2.0 * xf0 * xf0
        inv = jax.lax.rsqrt(jnp.maximum(jnp.abs(inner_ff), 1e-8))      # (tm,1)

        if project:
            out = xf * inv
        else:
            # logmap0(x) = (arcosh(x0) / sqrt(x0^2 - 1)) * (0, x_space)
            x0n = xf0 * inv                           # renormalized time coord
            d0 = arcosh(x0n)
            lscale = d0 * jax.lax.rsqrt(jnp.maximum(x0n * x0n - 1.0, _EPS))
            out = jnp.where(is_time, 0.0, (lscale * inv) * xf)

        out_ref[...] = out.astype(out_ref.dtype)

    return kernel


# ----------------------------------------------------------------------------
# Wrapper: single fused pallas_call, ragged last block handled by Pallas.
# ----------------------------------------------------------------------------
def _round_up(x: int, m: int) -> int:
    return ((x + m - 1) // m) * m


def _pick_tm(n: int, tm_max: int = 1024) -> int:
    # Large tiles amortize the ~0.35 us per-grid-step overhead, but cap so the
    # grid keeps >= 2 "parallel" steps (v7x megacore). Multiples of 32 keep the
    # sublane tiling happy for f32 / bf16 alike.
    tm = min(tm_max, _round_up(pl.cdiv(n, 2), 256))
    return max(32, min(tm, _round_up(n, 32)))


@functools.partial(jax.jit, static_argnames=("project", "tm"))
def hfusion_forward(x_h, x_e, att, *, project: bool, tm: int | None = None):
    assert x_h.shape == x_e.shape and x_h.ndim == 2
    n, d = x_h.shape
    if tm is None:
        tm = _pick_tm(n)

    n_tiles = pl.cdiv(n, tm)
    att_arr = jnp.asarray(att, jnp.float32).reshape(1)   # 1-D SMEM scalar

    row_map = lambda i: (i, 0)
    itemsize = jnp.dtype(x_h.dtype).itemsize
    out = pl.pallas_call(
        _make_hfusion_kernel(project),
        out_shape=jax.ShapeDtypeStruct((n, d), x_h.dtype),
        grid_spec=pltpu.PrefetchScalarGridSpec(
            num_scalar_prefetch=0,
            grid=(n_tiles,),
            in_specs=[
                pl.BlockSpec((tm, d), row_map),                       # x_h tile
                pl.BlockSpec((tm, d), row_map),                       # x_e tile
                pl.BlockSpec(memory_space=pltpu.MemorySpace.SMEM),    # att scalar
            ],
            out_specs=pl.BlockSpec((tm, d), row_map),
        ),
        compiler_params=pltpu.CompilerParams(
            dimension_semantics=("parallel",)),
        cost_estimate=pl.CostEstimate(
            flops=40 * n * d,
            transcendentals=10 * n,
            bytes_accessed=3 * n * d * itemsize),
    )(x_h, x_e, att_arr)
    return out


# ----------------------------------------------------------------------------
# Pure-JAX reference of the PyTorch forward (same Lorentz convention).
# ----------------------------------------------------------------------------
def _ref_arcosh(z):
    zc = jnp.maximum(z, 1.0 + _ACOSH_EPS)
    return jnp.log(zc + jnp.sqrt(zc * zc - 1.0))


def _ref_expmap0(u):
    v = u[:, 1:]
    r = jnp.sqrt(jnp.sum(v * v, axis=-1, keepdims=True))
    r_safe = jnp.maximum(r, _EPS)
    return jnp.concatenate([jnp.cosh(r), (jnp.sinh(r) / r_safe) * v], axis=-1)


def _ref_inner(x, y):
    prod = x * y
    return -prod[:, :1] + jnp.sum(prod[:, 1:], axis=-1, keepdims=True)


def _ref_logmap0(x):
    x0 = x[:, :1]
    d0 = _ref_arcosh(x0)
    sp_norm = jnp.sqrt(jnp.maximum(x0 * x0 - 1.0, _EPS))
    return jnp.concatenate([jnp.zeros_like(x0), (d0 / sp_norm) * x[:, 1:]], axis=-1)


def hfusion_reference(x_h, x_e, att, project):
    if not project:
        x_h = _ref_expmap0(x_h)
    x_e = _ref_expmap0(x_e)
    dist = _ref_arcosh(-_ref_inner(x_h, x_e))
    x = x_h + (dist * att) * x_e
    denom = jnp.sqrt(jnp.maximum(jnp.abs(-_ref_inner(x, x)), 1e-8))
    x = x / denom
    return _ref_logmap0(x) if not project else x


# ----------------------------------------------------------------------------
if __name__ == "__main__":
    key = jax.random.PRNGKey(0)
    k1, k2, k3 = jax.random.split(key, 3)

    N, D = 300, 128                          # N not a tile multiple -> ragged block
    x_h_euc = 0.2 * jax.random.normal(k1, (N, D), jnp.float32)
    x_e_euc = 0.2 * jax.random.normal(k2, (N, D), jnp.float32)
    att = jnp.float32(0.5)                   # nn.init.constant_(self.att, 0.5)

    # project=False path: both inputs are Euclidean features.
    out_f = hfusion_forward(x_h_euc, x_e_euc, att, project=False)
    ref_f = hfusion_reference(x_h_euc, x_e_euc, att, project=False)

    # project=True path: x_h already lives on the hyperboloid.
    x_h_hyp = _ref_expmap0(0.2 * jax.random.normal(k3, (N, D), jnp.float32))
    out_t = hfusion_forward(x_h_hyp, x_e_euc, att, project=True)
    ref_t = hfusion_reference(x_h_hyp, x_e_euc, att, project=True)

    # bf16 I/O smoke test (math still in f32 inside the kernel).
    out_bf = hfusion_forward(x_h_euc.astype(jnp.bfloat16),
                             x_e_euc.astype(jnp.bfloat16), att, project=False)

    jax.block_until_ready((out_f, out_t, out_bf))

    assert out_f.shape == (N, D) and out_t.shape == (N, D)
    assert out_bf.shape == (N, D) and out_bf.dtype == jnp.bfloat16
    assert bool(jnp.all(jnp.isfinite(out_f))) and bool(jnp.all(jnp.isfinite(out_t)))
    assert bool(jnp.all(jnp.isfinite(out_bf.astype(jnp.float32))))
    assert jnp.allclose(out_f, ref_f, atol=1e-4, rtol=1e-4), \
        float(jnp.max(jnp.abs(out_f - ref_f)))
    assert jnp.allclose(out_t, ref_t, atol=1e-4, rtol=1e-4), \
        float(jnp.max(jnp.abs(out_t - ref_t)))
    print("KERNEL_OK")
</pallas_src>

<mosaic_0001>
module attributes {stable_mosaic.version = 11 : i64} {
  func.func @kernel(%arg0: i32, %arg1: memref<256x128xf32, #tpu.memory_space<vmem>>, %arg2: memref<256x128xf32, #tpu.memory_space<vmem>>, %arg3: memref<1xf32, #tpu.memory_space<smem>>, %arg4: memref<256x128xf32, #tpu.memory_space<vmem>>) attributes {dimension_semantics = [#tpu.dimension_semantics<parallel>], iteration_bounds = array<i64: 2>, scalar_prefetch = 0 : i64, scratch_operands = 0 : i64, tpu.core_type = #tpu.core_type<tc>, window_params = [{transform_indices = @transform_0, window_bounds = array<i64: 256, 128>}, {transform_indices = @transform_1, window_bounds = array<i64: 256, 128>}, {transform_indices = @transform_2, window_bounds = array<i64: 1>}, {transform_indices = @transform_3, window_bounds = array<i64: 256, 128>}]} {
    %c0 = arith.constant 0 : index
    %c0_0 = arith.constant 0 : index
    %0 = vector.load %arg1[%c0, %c0_0] : memref<256x128xf32, #tpu.memory_space<vmem>>, vector<256x128xf32>
    %c0_1 = arith.constant 0 : index
    %c0_2 = arith.constant 0 : index
    %1 = vector.load %arg2[%c0_1, %c0_2] : memref<256x128xf32, #tpu.memory_space<vmem>>, vector<256x128xf32>
    %c0_3 = arith.constant 0 : index
    %2 = memref.load %arg3[%c0_3] : memref<1xf32, #tpu.memory_space<smem>>
    %3 = tpu.iota {dimensions = array<i32: 1>} : vector<256x128xi32>
    %c0_i32 = arith.constant 0 : i32
    %4 = vector.broadcast %c0_i32 : i32 to vector<256x128xi32>
    %5 = arith.cmpi eq, %3, %4 : vector<256x128xi32>
    %6 = vector.extract_strided_slice %0 {offsets = [0, 0], sizes = [256, 1], strides = [1, 1]} : vector<256x128xf32> to vector<256x1xf32>
    %7 = arith.mulf %0, %0 : vector<256x128xf32>
    %cst = arith.constant dense<0.000000e+00> : vector<256xf32>
    %8 = vector.multi_reduction <add>, %7, %cst [1] : vector<256x128xf32> to vector<256xf32>
    %9 = vector.shape_cast %8 : vector<256xf32> to vector<256x1xf32>
    %10 = arith.mulf %6, %6 : vector<256x1xf32>
    %11 = arith.subf %9, %10 : vector<256x1xf32>
    %cst_4 = arith.constant 0.000000e+00 : f32
    %12 = vector.broadcast %cst_4 : f32 to vector<256x1xf32>
    %13 = arith.maximumf %11, %12 : vector<256x1xf32>
    %14 = math.sqrt %13 : vector<256x1xf32>
    %cst_5 = arith.constant 9.99999993E-9 : f32
    %15 = vector.broadcast %cst_5 : f32 to vector<256x1xf32>
    %16 = arith.maximumf %14, %15 : vector<256x1xf32>
    %17 = math.exp %14 : vector<256x1xf32>
    %cst_6 = arith.constant 1.000000e+00 : f32
    %18 = vector.broadcast %cst_6 : f32 to vector<256x1xf32>
    %19 = arith.divf %18, %17 : vector<256x1xf32>
    %20 = arith.addf %17, %19 : vector<256x1xf32>
    %cst_7 = arith.constant 5.000000e-01 : f32
    %21 = vector.broadcast %cst_7 : f32 to vector<256x1xf32>
    %22 = arith.mulf %21, %20 : vector<256x1xf32>
    %23 = arith.subf %17, %19 : vector<256x1xf32>
    %cst_8 = arith.constant 5.000000e-01 : f32
    %24 = vector.broadcast %cst_8 : f32 to vector<256x1xf32>
    %25 = arith.mulf %24, %23 : vector<256x1xf32>
    %cst_9 = arith.constant 1.000000e+00 : f32
    %26 = vector.broadcast %cst_9 : f32 to vector<256x1xf32>
    %27 = arith.divf %26, %16 : vector<256x1xf32>
    %28 = arith.mulf %25, %27 : vector<256x1xf32>
    %29 = vector.broadcast %28 : vector<256x1xf32> to vector<256x128xf32>
    %30 = arith.mulf %29, %0 : vector<256x128xf32>
    %31 = vector.shape_cast %22 : vector<256x1xf32> to vector<256x1xf32>
    %32 = vector.broadcast %31 : vector<256x1xf32> to vector<256x128xf32>
    %33 = arith.select %5, %32, %30 : vector<256x128xi1>, vector<256x128xf32>
    %34 = vector.extract_strided_slice %1 {offsets = [0, 0], sizes = [256, 1], strides = [1, 1]} : vector<256x128xf32> to vector<256x1xf32>
    %35 = arith.mulf %1, %1 : vector<256x128xf32>
    %cst_10 = arith.constant dense<0.000000e+00> : vector<256xf32>
    %36 = vector.multi_reduction <add>, %35, %cst_10 [1] : vector<256x128xf32> to vector<256xf32>
    %37 = vector.shape_cast %36 : vector<256xf32> to vector<256x1xf32>
    %38 = arith.mulf %34, %34 : vector<256x1xf32>
    %39 = arith.subf %37, %38 : vector<256x1xf32>
    %cst_11 = arith.constant 0.000000e+00 : f32
    %40 = vector.broadcast %cst_11 : f32 to vector<256x1xf32>
    %41 = arith.maximumf %39, %40 : vector<256x1xf32>
    %42 = math.sqrt %41 : vector<256x1xf32>
    %cst_12 = arith.constant 9.99999993E-9 : f32
    %43 = vector.broadcast %cst_12 : f32 to vector<256x1xf32>
    %44 = arith.maximumf %42, %43 : vector<256x1xf32>
    %45 = math.exp %42 : vector<256x1xf32>
    %cst_13 = arith.constant 1.000000e+00 : f32
    %46 = vector.broadcast %cst_13 : f32 to vector<256x1xf32>
    %47 = arith.divf %46, %45 : vector<256x1xf32>
    %48 = arith.addf %45, %47 : vector<256x1xf32>
    %cst_14 = arith.constant 5.000000e-01 : f32
    %49 = vector.broadcast %cst_14 : f32 to vector<256x1xf32>
    %50 = arith.mulf %49, %48 : vector<256x1xf32>
    %51 = arith.subf %45, %47 : vector<256x1xf32>
    %cst_15 = arith.constant 5.000000e-01 : f32
    %52 = vector.broadcast %cst_15 : f32 to vector<256x1xf32>
    %53 = arith.mulf %52, %51 : vector<256x1xf32>
    %cst_16 = arith.constant 1.000000e+00 : f32
    %54 = vector.broadcast %cst_16 : f32 to vector<256x1xf32>
    %55 = arith.divf %54, %44 : vector<256x1xf32>
    %56 = arith.mulf %53, %55 : vector<256x1xf32>
    %57 = vector.broadcast %56 : vector<256x1xf32> to vector<256x128xf32>
    %58 = arith.mulf %57, %1 : vector<256x128xf32>
    %59 = vector.shape_cast %50 : vector<256x1xf32> to vector<256x1xf32>
    %60 = vector.broadcast %59 : vector<256x1xf32> to vector<256x128xf32>
    %61 = arith.select %5, %60, %58 : vector<256x128xi1>, vector<256x128xf32>
    %62 = arith.mulf %33, %61 : vector<256x128xf32>
    %cst_17 = arith.constant dense<0.000000e+00> : vector<256xf32>
    %63 = vector.multi_reduction <add>, %62, %cst_17 [1] : vector<256x128xf32> to vector<256xf32>
    %64 = vector.shape_cast %63 : vector<256xf32> to vector<256x1xf32>
    %cst_18 = arith.constant 2.000000e+00 : f32
    %65 = vector.broadcast %cst_18 : f32 to vector<256x1xf32>
    %66 = arith.mulf %65, %22 : vector<256x1xf32>
    %67 = arith.mulf %66, %50 : vector<256x1xf32>
    %68 = arith.subf %64, %67 : vector<256x1xf32>
    %cst_19 = arith.constant 0.000000e+00 : f32
    %69 = vector.broadcast %cst_19 : f32 to vector<256x1xf32>
    %70 = arith.subf %69, %68 : vector<256x1xf32>
    %cst_20 = arith.constant 1.00000012 : f32
    %71 = vector.broadcast %cst_20 : f32 to vector<256x1xf32>
    %72 = arith.maximumf %70, %71 : vector<256x1xf32>
    %73 = arith.mulf %72, %72 : vector<256x1xf32>
    %cst_21 = arith.constant 1.000000e+00 : f32
    %74 = vector.broadcast %cst_21 : f32 to vector<256x1xf32>
    %75 = arith.subf %73, %74 : vector<256x1xf32>
    %76 = math.sqrt %75 : vector<256x1xf32>
    %77 = arith.addf %72, %76 : vector<256x1xf32>
    %78 = math.log %77 : vector<256x1xf32>
    %79 = vector.broadcast %2 : f32 to vector<256x1xf32>
    %80 = arith.mulf %78, %79 : vector<256x1xf32>
    %81 = vector.broadcast %80 : vector<256x1xf32> to vector<256x128xf32>
    %82 = arith.mulf %81, %61 : vector<256x128xf32>
    %83 = arith.addf %33, %82 : vector<256x128xf32>
    %84 = arith.mulf %80, %50 : vector<256x1xf32>
    %85 = arith.addf %22, %84 : vector<256x1xf32>
    %86 = arith.mulf %83, %83 : vector<256x128xf32>
    %cst_22 = arith.constant dense<0.000000e+00> : vector<256xf32>
    %87 = vector.multi_reduction <add>, %86, %cst_22 [1] : vector<256x128xf32> to vector<256xf32>
    %88 = vector.shape_cast %87 : vector<256xf32> to vector<256x1xf32>
    %cst_23 = arith.constant 2.000000e+00 : f32
    %89 = vector.broadcast %cst_23 : f32 to vector<256x1xf32>
    %90 = arith.mulf %89, %85 : vector<256x1xf32>
    %91 = arith.mulf %90, %85 : vector<256x1xf32>
    %92 = arith.subf %88, %91 : vector<256x1xf32>
    %93 = math.absf %92 : vector<256x1xf32>
    %cst_24 = arith.constant 9.99999993E-9 : f32
    %94 = vector.broadcast %cst_24 : f32 to vector<256x1xf32>
    %95 = arith.maximumf %93, %94 : vector<256x1xf32>
    %96 = math.rsqrt %95 : vector<256x1xf32>
    %97 = arith.mulf %85, %96 : vector<256x1xf32>
    %cst_25 = arith.constant 1.00000012 : f32
    %98 = vector.broadcast %cst_25 : f32 to vector<256x1xf32>
    %99 = arith.maximumf %97, %98 : vector<256x1xf32>
    %100 = arith.mulf %99, %99 : vector<256x1xf32>
    %cst_26 = arith.constant 1.000000e+00 : f32
    %101 = vector.broadcast %cst_26 : f32 to vector<256x1xf32>
    %102 = arith.subf %100, %101 : vector<256x1xf32>
    %103 = math.sqrt %102 : vector<256x1xf32>
    %104 = arith.addf %99, %103 : vector<256x1xf32>
    %105 = math.log %104 : vector<256x1xf32>
    %106 = arith.mulf %97, %97 : vector<256x1xf32>
    %cst_27 = arith.constant 1.000000e+00 : f32
    %107 = vector.broadcast %cst_27 : f32 to vector<256x1xf32>
    %108 = arith.subf %106, %107 : vector<256x1xf32>
    %cst_28 = arith.constant 9.99999993E-9 : f32
    %109 = vector.broadcast %cst_28 : f32 to vector<256x1xf32>
    %110 = arith.maximumf %108, %109 : vector<256x1xf32>
    %111 = math.rsqrt %110 : vector<256x1xf32>
    %112 = arith.mulf %105, %111 : vector<256x1xf32>
    %113 = arith.mulf %112, %96 : vector<256x1xf32>
    %114 = vector.broadcast %113 : vector<256x1xf32> to vector<256x128xf32>
    %115 = arith.mulf %114, %83 : vector<256x128xf32>
    %cst_29 = arith.constant 0.000000e+00 : f32
    %116 = vector.broadcast %cst_29 : f32 to vector<256x128xf32>
    %117 = arith.select %5, %116, %115 : vector<256x128xi1>, vector<256x128xf32>
    %c0_30 = arith.constant 0 : index
    %c0_31 = arith.constant 0 : index
    %118 = vector.load %arg4[%c0_30, %c0_31] : memref<256x128xf32, #tpu.memory_space<vmem>>, vector<256x128xf32>
    tpu.vector_store %arg4[%c0_30, %c0_31], %117 {strides = array<i32>} : memref<256x128xf32, #tpu.memory_space<vmem>>, vector<256x128xf32>,
    return
  }
  func.func @transform_0(%arg0: i32) -> (i32, i32) {
    %c0_i32 = arith.constant 0 : i32
    %c0_i32_0 = arith.constant 0 : i32
    return %arg0, %c0_i32 : i32, i32
  }
  func.func @transform_1(%arg0: i32) -> (i32, i32) {
    %c0_i32 = arith.constant 0 : i32
    %c0_i32_0 = arith.constant 0 : i32
    return %arg0, %c0_i32 : i32, i32
  }
  func.func @transform_2(%arg0: i32) -> i32 {
    %c0_i32 = arith.constant 0 : i32
    %c0_i32_0 = arith.constant 0 : i32
    return %c0_i32 : i32
  }
  func.func @transform_3(%arg0: i32) -> (i32, i32) {
    %c0_i32 = arith.constant 0 : i32
    %c0_i32_0 = arith.constant 0 : i32
    return %arg0, %c0_i32 : i32, i32
  }
}

</mosaic_0001>

<llo_original>
// kernel: hfusion_forward.1
$region0: #{hfusion_forward.1}
  #allocation0 [shape = 'u32[]', space=smem, size = 0x4, offset = 0x4, fixed_abs, tag = 'smem constant byte address 0x4 - core index']
  #allocation1 [shape = 'u32[144,128]{1,0:T(1,128)}', space=vmem, size = 0x12000, scoped, tag = 'internal scratch']
  #allocation2 [shape = 'f32[1]{0:T(128)S(6)}', space=smem, size = 0x200, scoped, tag = 'scoped memory for hfusion_forward.1']
  %s0 = inlined_call_operand.hbm [shape: f32[300,128], index: 0, kind: input, shape index: {}]
  %s1 = inlined_call_operand.hbm [shape: f32[300,128], index: 1, kind: input, shape index: {}]
  %s2 = inlined_call_operand.<no memory space> [shape: f32[1], index: 2, kind: input, shape index: {}]
  %s3 = inlined_call_operand.hbm [shape: f32[300,128], index: 3, kind: output, shape index: {}]
  %s4 = sld [smem:[#allocation0]]
  $region53: #{hfusion_forward.1} parent=0
    _
  %s6 = ssub.s32 1, %s4
  %s7 = scalar_select 0, %s6, %s4
  %8 = sst [smem:[#allocation2]] %s2
  $region1: #{hfusion_forward.1} parent=0
    #allocation3 [shape = 'u8[262144]{0}', space=vmem, size = 0x40000, scoped, tag = 'input window, operand 0']
    #allocation4 [shape = 's32[2]{0}', space=sflag, size = 0x8, scoped, tag = 'scoped memory for hfusion_forward.1']
    #allocation5 [shape = 's32[2]{0}', space=sflag, size = 0x8, scoped, tag = 'scoped memory for hfusion_forward.1']
    #allocation6 [shape = 'u8[262144]{0}', space=vmem, size = 0x40000, scoped, tag = 'input window, operand 1']
    #allocation7 [shape = 's32[2]{0}', space=sflag, size = 0x8, scoped, tag = 'scoped memory for hfusion_forward.1']
    #allocation8 [shape = 'u8[262144]{0}', space=vmem, size = 0x40000, scoped, tag = 'output window, operand 0']
    %9 = vsyncpa [#allocation4], 0
    %s10 = scalar_lea.sflag [#allocation4], 1
    %11 = vsyncpa %s10, 0
    %12 = vsyncpa [#allocation7], 0
    %s13 = scalar_lea.sflag [#allocation7], 1
    %14 = vsyncpa %s13, 0
    %15 = vsyncpa [#allocation5], 0
    %s16 = scalar_lea.sflag [#allocation5], 1
    %17 = vsyncpa %s16, 0
    loop: start=0, step=1, limit=4
    $region2: #{hfusion_forward.1} parent=1 // loop_pre_header
      _
    $region3: #{hfusion_forward.1} parent=1 // loop_header
      %s19 = sphi 0, %s23
      %p20 = scmp.ge.s32.totalorder %s19, 4
      %s29 = sphi 0, %s31
      %s32 = sphi 0, %s29
      %s33 = sphi 0, %s32
      %s49 = sphi 0, %s33
      %s55 = sphi 0, %s57
      %s58 = sphi 0, %s55
      %s59 = sphi 0, %s58
      %s75 = sphi 0, %s59
      %s79 = sphi 0, %s79
      %s81 = sphi 0, %s79
      %s82 = sphi 0, %s81
      %s96 = sphi 0, %s82
      %s102 = sphi 0, %s104
      %s105 = sphi 0, %s102
      %s106 = sphi 0, %s105
      %s122 = sphi 0, %s106
    $region4: #{hfusion_forward.1} parent=1 // loop_header_branch
      %22 = sbr.rel (%p20) target = $region8
    $region5: #{hfusion_forward.1} parent=1 // loop_body
      %s24 = ssub.s32 %s19, 1
      %s25 = ssub.s32 %s19, 2
      %s26 = sadd.s32 %s19, 1
      %s27 = ssub.s32 %s19, %s26
      %p28 = scmp.eq.s32.totalorder %s27, 0
      %s30 = sadd.s32 %s29, 1
      %s31 = scalar_select %p28, %s29, %s30
      %p34 = pneg %p28
      %p35 = scmp.eq.s32.totalorder %s19, 1
      %p36 = por %p34, %p35
      %p37 = scmp.ne.s32.totalorder %s29, %s32
      %p38 = scmp.eq.s32.totalorder %s19, 0
      %p39 = por %p37, %p38
      %p40 = scmp.ne.s32.totalorder %s29, %s32
      %p41 = scmp.eq.s32.totalorder %s24, 1
      %p42 = por %p40, %p41
      %p43 = scmp.ne.s32.totalorder %s32, %s33
      %p44 = scmp.eq.s32.totalorder %s24, 0
      %p45 = por %p43, %p44
      %p46 = scmp.ne.s32.totalorder %s32, %s33
      %p47 = scmp.eq.s32.totalorder %s25, 1
      %p48 = por %p46, %p47
      %p50 = scmp.ne.s32.totalorder %s33, %s49
      %p51 = scmp.eq.s32.totalorder %s25, 0
      %p52 = por %p50, %p51
      %s53 = ssub.s32 %s19, %s26
      %p54 = scmp.eq.s32.totalorder %s53, 0
      %s56 = sadd.s32 %s55, 1
      %s57 = scalar_select %p54, %s55, %s56
      %p60 = pneg %p54
      %p61 = scmp.eq.s32.totalorder %s19, 1
      %p62 = por %p60, %p61
      %p63 = scmp.ne.s32.totalorder %s55, %s58
      %p64 = scmp.eq.s32.totalorder %s19, 0
      %p65 = por %p63, %p64
      %p66 = scmp.ne.s32.totalorder %s55, %s58
      %p67 = scmp.eq.s32.totalorder %s24, 1
      %p68 = por %p66, %p67
      %p69 = scmp.ne.s32.totalorder %s58, %s59
      %p70 = scmp.eq.s32.totalorder %s24, 0
      %p71 = por %p69, %p70
      %p72 = scmp.ne.s32.totalorder %s58, %s59
      %p73 = scmp.eq.s32.totalorder %s25, 1
      %p74 = por %p72, %p73
      %p76 = scmp.ne.s32.totalorder %s59, %s75
      %p77 = scmp.eq.s32.totalorder %s25, 0
      %p78 = por %p76, %p77
      %s80 = sadd.s32 %s79, 1
      %p83 = scmp.eq.s32.totalorder %s19, 1
      %p84 = scmp.ne.s32.totalorder %s79, %s81
      %p85 = scmp.eq.s32.totalorder %s19, 0
      %p86 = por %p84, %p85
      %p87 = scmp.ne.s32.totalorder %s79, %s81
      %p88 = scmp.eq.s32.totalorder %s24, 1
      %p89 = por %p87, %p88
      %p90 = scmp.ne.s32.totalorder %s81, %s82
      %p91 = scmp.eq.s32.totalorder %s24, 0
      %p92 = por %p90, %p91
      %p93 = scmp.ne.s32.totalorder %s81, %s82
      %p94 = scmp.eq.s32.totalorder %s25, 1
      %p95 = por %p93, %p94
      %p97 = scmp.ne.s32.totalorder %s82, %s96
      %p98 = scmp.eq.s32.totalorder %s25, 0
      %p99 = por %p97, %p98
      %s100 = ssub.s32 %s19, %s26
      %p101 = scmp.eq.s32.totalorder %s100, 0
      %s103 = sadd.s32 %s102, 1
      %s104 = scalar_select %p101, %s102, %s103
      %p107 = pneg %p101
      %p108 = scmp.eq.s32.totalorder %s19, 1
      %p109 = por %p107, %p108
      %p110 = scmp.ne.s32.totalorder %s102, %s105
      %p111 = scmp.eq.s32.totalorder %s19, 0
      %p112 = por %p110, %p111
      %p113 = scmp.ne.s32.totalorder %s102, %s105
      %p114 = scmp.eq.s32.totalorder %s24, 1
      %p115 = por %p113, %p114
      %p116 = scmp.ne.s32.totalorder %s105, %s106
      %p117 = scmp.eq.s32.totalorder %s24, 0
      %p118 = por %p116, %p117
      %p119 = scmp.ne.s32.totalorder %s105, %s106
      %p120 = scmp.eq.s32.totalorder %s25, 1
      %p121 = por %p119, %p120
      %p123 = scmp.ne.s32.totalorder %s106, %s122
      %p124 = scmp.eq.s32.totalorder %s25, 0
      %p125 = por %p123, %p124
      %p126 = scmp.le.s32.totalorder 1, %s19
      %p127 = scmp.lt.s32.totalorder %s19, 3
      %p128 = pnand %p126, %p127
      %p129 = pneg %p128
      // Predicated region
      $region9: #{hfusion_forward.1} parent=5 // pred_check
        _
      $region10: #{hfusion_forward.1} parent=5 // pred_check_branch
        %131 = sbr.rel (%p128) target = $region12
      $region11: #{hfusion_forward.1} parent=5 // pred_region
        %s132 = ssub.s32 %s19, 1
        // Predicated region
        $region13: #{hfusion_forward.1} parent=11 // pred_check
          %p133 = pneg %p92
        $region14: #{hfusion_forward.1} parent=11 // pred_check_branch
          %135 = sbr.rel (%p133) target = $region16
        $region15: #{hfusion_forward.1} parent=11 // pred_region
          _
        $region16: #{hfusion_forward.1} parent=11 // pred_fallthru
          _
      $region12: #{hfusion_forward.1} parent=5 // pred_fallthru
        _
      %p136 = scmp.lt.s32.totalorder %s19, 2
      // Predicated region
      $region17: #{hfusion_forward.1} parent=5 // pred_check
        %p137 = pneg %p136
      $region18: #{hfusion_forward.1} parent=5 // pred_check_branch
        %139 = sbr.rel (%p137) target = $region20
      $region19: #{hfusion_forward.1} parent=5 // pred_region
        // Predicated region
        $region21: #{hfusion_forward.1} parent=19 // pred_check
          %p140 = pneg %p39
        $region22: #{hfusion_forward.1} parent=19 // pred_check_branch
          %142 = sbr.rel (%p140) target = $region24
        $region23: #{hfusion_forward.1} parent=19 // pred_region
          %s143 = sand.u32 %s29, 1
          %s144 = scalar_lea.sflag [#allocation4], %s143
          %s145 = sand.u32 %s29, 1
          %s146 = smul.addr %s145, 256
          %s147 = scalar_lea.vmem [#allocation3], %s146
          %s148 = smul.u32 32, %s19
          %s149 = ssub.s32 38, %s148
          %p150 = scmp.lt.s32.totalorder %s149, 32
          %s151 = scalar_select %p150, %s149, 32
          %s152 = smul.u32 128, %s151
          %s154 = ssub.s32 4096, %s152
          %155 = vsyncadd %s144, %s154
          %p156 = scmp.ne.s32.totalorder 0, %s152
          %s157 = smul.addr %s148, 128
          %s158 = scalar_lea.hbm %s0, %s157
          %s159 = smul.u32 8, %s151
          %s160 = sshll.u32 %s147, 4
          %s161 = int_to_ptr.vmem [resolvable:$true] %s160
          %s162 = sshll.u32 %s159, 4
          %166 = dma.hbm_to_vmem [thread:$0]  (%p156), %s158, %s162, %s161, %s144, 128, 128, 8
        $region24: #{hfusion_forward.1} parent=19 // pred_fallthru
          _
        // Predicated region
        $region25: #{hfusion_forward.1} parent=19 // pred_check
          %p167 = pneg %p65
        $region26: #{hfusion_forward.1} parent=19 // pred_check_branch
          %169 = sbr.rel (%p167) target = $region28
        $region27: #{hfusion_forward.1} parent=19 // pred_region
          %s170 = sand.u32 %s55, 1
          %s171 = scalar_lea.sflag [#allocation7], %s170
          %s172 = sand.u32 %s55, 1
          %s173 = smul.addr %s172, 256
          %s174 = scalar_lea.vmem [#allocation6], %s173
          %s175 = smul.u32 32, %s19
          %s176 = ssub.s32 38, %s175
          %p177 = scmp.lt.s32.totalorder %s176, 32
          %s178 = scalar_select %p177, %s176, 32
          %s179 = smul.u32 128, %s178
          %s181 = ssub.s32 4096, %s179
          %182 = vsyncadd %s171, %s181
          %p183 = scmp.ne.s32.totalorder 0, %s179
          %s184 = smul.addr %s175, 128
          %s185 = scalar_lea.hbm %s1, %s184
          %s186 = smul.u32 8, %s178
          %s187 = sshll.u32 %s174, 4
          %s188 = int_to_ptr.vmem [resolvable:$true] %s187
          %s189 = sshll.u32 %s186, 4
          %193 = dma.hbm_to_vmem [thread:$0]  (%p183), %s185, %s189, %s188, %s171, 128, 128, 8
        $region28: #{hfusion_forward.1} parent=19 // pred_fallthru
          _
      $region20: #{hfusion_forward.1} parent=5 // pred_fallthru
        _
      %p194 = scmp.le.s32.totalorder 1, %s19
      %p195 = scmp.lt.s32.totalorder %s19, 3
      %p196 = pnand %p194, %p195
      %p197 = pneg %p196
      // Predicated region
      $region29: #{hfusion_forward.1} parent=5 // pred_check
        _
      $region30: #{hfusion_forward.1} parent=5 // pred_check_branch
        %199 = sbr.rel (%p196) target = $region32
      $region31: #{hfusion_forward.1} parent=5 // pred_region
        %s200 = ssub.s32 %s19, 1
        %s201 = sand.u32 %s32, 1
        %s202 = scalar_lea.sflag [#allocation4], %s201
        %s203 = sand.u32 %s32, 1
        %s204 = smul.addr %s203, 256
        %s205 = scalar_lea.vmem [#allocation3], %s204
        // Predicated region
        $region33: #{hfusion_forward.1} parent=31 // pred_check
          %p206 = pneg %p45
        $region34: #{hfusion_forward.1} parent=31 // pred_check_branch
          %208 = sbr.rel (%p206) target = $region36
        $region35: #{hfusion_forward.1} parent=31 // pred_region
          %209 = dma.done %s202, 4096
        $region36: #{hfusion_forward.1} parent=31 // pred_fallthru
          _
        %s210 = sand.u32 %s58, 1
        %s211 = scalar_lea.sflag [#allocation7], %s210
        %s212 = sand.u32 %s58, 1
        %s213 = smul.addr %s212, 256
        %s214 = scalar_lea.vmem [#allocation6], %s213
        // Predicated region
        $region37: #{hfusion_forward.1} parent=31 // pred_check
          %p215 = pneg %p71
        $region38: #{hfusion_forward.1} parent=31 // pred_check_branch
          %217 = sbr.rel (%p215) target = $region40
        $region39: #{hfusion_forward.1} parent=31 // pred_region
          %218 = dma.done %s211, 4096
        $region40: #{hfusion_forward.1} parent=31 // pred_fallthru
          _
        %s219 = sand.u32 %s32, 1
        %s220 = scalar_lea.sflag [#allocation4], %s219
        %s221 = sand.u32 %s32, 1
        %s222 = smul.addr %s221, 256
        %s223 = scalar_lea.vmem [#allocation3], %s222
        %p224 = pneg %p45
        %p225 = pneg %p42
        %s226 = sand.u32 %s58, 1
        %s227 = scalar_lea.sflag [#allocation7], %s226
        %s228 = sand.u32 %s58, 1
        %s229 = smul.addr %s228, 256
        %s230 = scalar_lea.vmem [#allocation6], %s229
        %p231 = pneg %p71
        %p232 = pneg %p68
        %p233 = pneg %p92
        %p234 = pneg %p89
        %p235 = pneg %p118
        %p236 = pneg %p115
        %s237 = sand.u32 %s105, 1
        %s238 = scalar_lea.sflag [#allocation5], %s237
        %s239 = sand.u32 %s105, 1
        %s240 = smul.addr %s239, 256
        %s241 = scalar_lea.vmem [#allocation8], %s240
        %s242 = smul.u32 32, %s24
        %s243 = ssub.s32 38, %s242
        %p244 = scmp.lt.s32.totalorder %s243, 32
        %s245 = scalar_select %p244, %s243, 32
        %s246 = smul.u32 128, %s245
        %s247 = smul.u32 32, %s24
        %s248 = ssub.s32 38, %s247
        %p249 = scmp.lt.s32.totalorder %s248, 32
        %s250 = scalar_select %p249, %s248, 32
        %s251 = smul.u32 128, %s250
        %s252 = smul.u32 32, %s24
        %s253 = ssub.s32 38, %s252
        %p254 = scmp.lt.s32.totalorder %s253, 32
        %s255 = scalar_select %p254, %s253, 32
        %s256 = smul.u32 128, %s255
        %v257 = vld [vmem:[%s205] sm:$0xff]
        %v258 = vld [vmem:[%s205 + $0x8] sm:$0xff]
        %v259 = vld [vmem:[%s205 + $0x10] sm:$0xff]
        %v260 = vld [vmem:[%s205 + $0x18] sm:$0xff]
        %v261 = vld [vmem:[%s205 + $0x20] sm:$0xff]
        %v262 = vld [vmem:[%s205 + $0x28] sm:$0xff]
        %v263 = vld [vmem:[%s205 + $0x30] sm:$0xff]
        %v264 = vld [vmem:[%s205 + $0x38] sm:$0xff]
        %v265 = vld [vmem:[%s205 + $0x40] sm:$0xff]
        %v266 = vld [vmem:[%s205 + $0x48] sm:$0xff]
        %v267 = vld [vmem:[%s205 + $0x50] sm:$0xff]
        %v268 = vld [vmem:[%s205 + $0x58] sm:$0xff]
        %v269 = vld [vmem:[%s205 + $0x60] sm:$0xff]
        %v270 = vld [vmem:[%s205 + $0x68] sm:$0xff]
        %v271 = vld [vmem:[%s205 + $0x70] sm:$0xff]
        %v272 = vld [vmem:[%s205 + $0x78] sm:$0xff]
        %v273 = vld [vmem:[%s205 + $0x80] sm:$0xff]
        %v274 = vld [vmem:[%s205 + $0x88] sm:$0xff]
        %v275 = vld [vmem:[%s205 + $0x90] sm:$0xff]
        %v276 = vld [vmem:[%s205 + $0x98] sm:$0xff]
        %v277 = vld [vmem:[%s205 + $0xa0] sm:$0xff]
        %v278 = vld [vmem:[%s205 + $0xa8] sm:$0xff]
        %v279 = vld [vmem:[%s205 + $0xb0] sm:$0xff]
        %v280 = vld [vmem:[%s205 + $0xb8] sm:$0xff]
        %v281 = vld [vmem:[%s205 + $0xc0] sm:$0xff]
        %v282 = vld [vmem:[%s205 + $0xc8] sm:$0xff]
        %v283 = vld [vmem:[%s205 + $0xd0] sm:$0xff]
        %v284 = vld [vmem:[%s205 + $0xd8] sm:$0xff]
        %v285 = vld [vmem:[%s205 + $0xe0] sm:$0xff]
        %v286 = vld [vmem:[%s205 + $0xe8] sm:$0xff]
        %v287 = vld [vmem:[%s205 + $0xf0] sm:$0xff]
        %v288 = vld [vmem:[%s205 + $0xf8] sm:$0xff]
        %v289 = vld [vmem:[%s214] sm:$0xff]
        %v290 = vld [vmem:[%s214 + $0x8] sm:$0xff]
        %v291 = vld [vmem:[%s214 + $0x10] sm:$0xff]
        %v292 = vld [vmem:[%s214 + $0x18] sm:$0xff]
        %v293 = vld [vmem:[%s214 + $0x20] sm:$0xff]
        %v294 = vld [vmem:[%s214 + $0x28] sm:$0xff]
        %v295 = vld [vmem:[%s214 + $0x30] sm:$0xff]
        %v296 = vld [vmem:[%s214 + $0x38] sm:$0xff]
        %v297 = vld [vmem:[%s214 + $0x40] sm:$0xff]
        %v298 = vld [vmem:[%s214 + $0x48] sm:$0xff]
        %v299 = vld [vmem:[%s214 + $0x50] sm:$0xff]
        %v300 = vld [vmem:[%s214 + $0x58] sm:$0xff]
        %v301 = vld [vmem:[%s214 + $0x60] sm:$0xff]
        %v302 = vld [vmem:[%s214 + $0x68] sm:$0xff]
        %v303 = vld [vmem:[%s214 + $0x70] sm:$0xff]
        %v304 = vld [vmem:[%s214 + $0x78] sm:$0xff]
        %v305 = vld [vmem:[%s214 + $0x80] sm:$0xff]
        %v306 = vld [vmem:[%s214 + $0x88] sm:$0xff]
        %v307 = vld [vmem:[%s214 + $0x90] sm:$0xff]
        %v308 = vld [vmem:[%s214 + $0x98] sm:$0xff]
        %v309 = vld [vmem:[%s214 + $0xa0] sm:$0xff]
        %v310 = vld [vmem:[%s214 + $0xa8] sm:$0xff]
        %v311 = vld [vmem:[%s214 + $0xb0] sm:$0xff]
        %v312 = vld [vmem:[%s214 + $0xb8] sm:$0xff]
        %v313 = vld [vmem:[%s214 + $0xc0] sm:$0xff]
        %v314 = vld [vmem:[%s214 + $0xc8] sm:$0xff]
        %v315 = vld [vmem:[%s214 + $0xd0] sm:$0xff]
        %v316 = vld [vmem:[%s214 + $0xd8] sm:$0xff]
        %v317 = vld [vmem:[%s214 + $0xe0] sm:$0xff]
        %v318 = vld [vmem:[%s214 + $0xe8] sm:$0xff]
        %v319 = vld [vmem:[%s214 + $0xf0] sm:$0xff]
        %v320 = vld [vmem:[%s214 + $0xf8] sm:$0xff]
        %s321 = sld [smem:[#allocation2]]
        %v322 = vlaneseq
        %v323 = vand.u32 %v322, 127
        %vm324 = vcmp.eq.s32.totalorder %v323, 0
        %v325 = vmul.f32 %v257, %v257
        %v326 = vmul.f32 %v258, %v258
        %v327 = vmul.f32 %v259, %v259
        %v328 = vmul.f32 %v260, %v260
        %v329 = vmul.f32 %v261, %v261
        %v330 = vmul.f32 %v262, %v262
        %v331 = vmul.f32 %v263, %v263
        %v332 = vmul.f32 %v264, %v264
        %v333 = vmul.f32 %v265, %v265
        %v334 = vmul.f32 %v266, %v266
        %v335 = vmul.f32 %v267, %v267
        %v336 = vmul.f32 %v268, %v268
        %v337 = vmul.f32 %v269, %v269
        %v338 = vmul.f32 %v270, %v270
        %v339 = vmul.f32 %v271, %v271
        %v340 = vmul.f32 %v272, %v272
        %v341 = vmul.f32 %v273, %v273
        %v342 = vmul.f32 %v274, %v274
        %v343 = vmul.f32 %v275, %v275
        %v344 = vmul.f32 %v276, %v276
        %v345 = vmul.f32 %v277, %v277
        %v346 = vmul.f32 %v278, %v278
        %v347 = vmul.f32 %v279, %v279
        %v348 = vmul.f32 %v280, %v280
        %v349 = vmul.f32 %v281, %v281
        %v350 = vmul.f32 %v282, %v282
        %v351 = vmul.f32 %v283, %v283
        %v352 = vmul.f32 %v284, %v284
        %v353 = vmul.f32 %v285, %v285
        %v354 = vmul.f32 %v286, %v286
        %v355 = vmul.f32 %v287, %v287
        %v356 = vmul.f32 %v288, %v288
        %357 = vadd.xlane.f32.xlu0 %v325
        %v358 = vpop.xlane.xlu0 %357
        %359 = vadd.xlane.f32.xlu0 %v326
        %v360 = vpop.xlane.xlu0 %359
        %361 = vadd.xlane.f32.xlu0 %v327
        %v362 = vpop.xlane.xlu0 %361
        %363 = vadd.xlane.f32.xlu0 %v328
        %v364 = vpop.xlane.xlu0 %363
        %365 = vadd.xlane.f32.xlu0 %v329
        %v366 = vpop.xlane.xlu0 %365
        %367 = vadd.xlane.f32.xlu0 %v330
        %v368 = vpop.xlane.xlu0 %367
        %369 = vadd.xlane.f32.xlu0 %v331
        %v370 = vpop.xlane.xlu0 %369
        %371 = vadd.xlane.f32.xlu0 %v332
        %v372 = vpop.xlane.xlu0 %371
        %373 = vadd.xlane.f32.xlu0 %v333
        %v374 = vpop.xlane.xlu0 %373
        %375 = vadd.xlane.f32.xlu0 %v334
        %v376 = vpop.xlane.xlu0 %375
        %377 = vadd.xlane.f32.xlu0 %v335
        %v378 = vpop.xlane.xlu0 %377
        %379 = vadd.xlane.f32.xlu0 %v336
        %v380 = vpop.xlane.xlu0 %379
        %381 = vadd.xlane.f32.xlu0 %v337
        %v382 = vpop.xlane.xlu0 %381
        %383 = vadd.xlane.f32.xlu0 %v338
        %v384 = vpop.xlane.xlu0 %383
        %385 = vadd.xlane.f32.xlu0 %v339
        %v386 = vpop.xlane.xlu0 %385
        %387 = vadd.xlane.f32.xlu0 %v340
        %v388 = vpop.xlane.xlu0 %387
        %389 = vadd.xlane.f32.xlu0 %v341
        %v390 = vpop.xlane.xlu0 %389
        %391 = vadd.xlane.f32.xlu0 %v342
        %v392 = vpop.xlane.xlu0 %391
        %393 = vadd.xlane.f32.xlu0 %v343
        %v394 = vpop.xlane.xlu0 %393
        %395 = vadd.xlane.f32.xlu0 %v344
        %v396 = vpop.xlane.xlu0 %395
        %397 = vadd.xlane.f32.xlu0 %v345
        %v398 = vpop.xlane.xlu0 %397
        %399 = vadd.xlane.f32.xlu0 %v346
        %v400 = vpop.xlane.xlu0 %399
        %401 = vadd.xlane.f32.xlu0 %v347
        %v402 = vpop.xlane.xlu0 %401
        %403 = vadd.xlane.f32.xlu0 %v348
        %v404 = vpop.xlane.xlu0 %403
        %405 = vadd.xlane.f32.xlu0 %v349
        %v406 = vpop.xlane.xlu0 %405
        %407 = vadd.xlane.f32.xlu0 %v350
        %v408 = vpop.xlane.xlu0 %407
        %409 = vadd.xlane.f32.xlu0 %v351
        %v410 = vpop.xlane.xlu0 %409
        %411 = vadd.xlane.f32.xlu0 %v352
        %v412 = vpop.xlane.xlu0 %411
        %413 = vadd.xlane.f32.xlu0 %v353
        %v414 = vpop.xlane.xlu0 %413
        %415 = vadd.xlane.f32.xlu0 %v354
        %v416 = vpop.xlane.xlu0 %415
        %417 = vadd.xlane.f32.xlu0 %v355
        %v418 = vpop.xlane.xlu0 %417
        %419 = vadd.xlane.f32.xlu0 %v356
        %v420 = vpop.xlane.xlu0 %419
        %v421 = vsub.f32 %v358, %v325
        %v422 = vsub.f32 %v360, %v326
        %v423 = vsub.f32 %v362, %v327
        %v424 = vsub.f32 %v364, %v328
        %v425 = vsub.f32 %v366, %v329
        %v426 = vsub.f32 %v368, %v330
        %v427 = vsub.f32 %v370, %v331
        %v428 = vsub.f32 %v372, %v332
        %v429 = vsub.f32 %v374, %v333
        %v430 = vsub.f32 %v376, %v334
        %v431 = vsub.f32 %v378, %v335
        %v432 = vsub.f32 %v380, %v336
        %v433 = vsub.f32 %v382, %v337
        %v434 = vsub.f32 %v384, %v338
        %v435 = vsub.f32 %v386, %v339
        %v436 = vsub.f32 %v388, %v340
        %v437 = vsub.f32 %v390, %v341
        %v438 = vsub.f32 %v392, %v342
        %v439 = vsub.f32 %v394, %v343
        %v440 = vsub.f32 %v396, %v344
        %v441 = vsub.f32 %v398, %v345
        %v442 = vsub.f32 %v400, %v346
        %v443 = vsub.f32 %v402, %v347
        %v444 = vsub.f32 %v404, %v348
        %v445 = vsub.f32 %v406, %v349
        %v446 = vsub.f32 %v408, %v350
        %v447 = vsub.f32 %v410, %v351
        %v448 = vsub.f32 %v412, %v352
        %v449 = vsub.f32 %v414, %v353
        %v450 = vsub.f32 %v416, %v354
        %v451 = vsub.f32 %v418, %v355
        %v452 = vsub.f32 %v420, %v356
        %v453 = vmax.f32 %v421, 0.0
        %v454 = vmax.f32 %v422, 0.0
        %v455 = vmax.f32 %v423, 0.0
        %v456 = vmax.f32 %v424, 0.0
        %v457 = vmax.f32 %v425, 0.0
        %v458 = vmax.f32 %v426, 0.0
        %v459 = vmax.f32 %v427, 0.0
        %v460 = vmax.f32 %v428, 0.0
        %v461 = vmax.f32 %v429, 0.0
        %v462 = vmax.f32 %v430, 0.0
        %v463 = vmax.f32 %v431, 0.0
        %v464 = vmax.f32 %v432, 0.0
        %v465 = vmax.f32 %v433, 0.0
        %v466 = vmax.f32 %v434, 0.0
        %v467 = vmax.f32 %v435, 0.0
        %v468 = vmax.f32 %v436, 0.0
        %v469 = vmax.f32 %v437, 0.0
        %v470 = vmax.f32 %v438, 0.0
        %v471 = vmax.f32 %v439, 0.0
        %v472 = vmax.f32 %v440, 0.0
        %v473 = vmax.f32 %v441, 0.0
        %v474 = vmax.f32 %v442, 0.0
        %v475 = vmax.f32 %v443, 0.0
        %v476 = vmax.f32 %v444, 0.0
        %v477 = vmax.f32 %v445, 0.0
        %v478 = vmax.f32 %v446, 0.0
        %v479 = vmax.f32 %v447, 0.0
        %v480 = vmax.f32 %v448, 0.0
        %v481 = vmax.f32 %v449, 0.0
        %v482 = vmax.f32 %v450, 0.0
        %v483 = vmax.f32 %v451, 0.0
        %v484 = vmax.f32 %v452, 0.0
        %v485 = vrsqrt.pop %v453
        %v486 = vmul.f32 %v453, %v485
        %vm487 = vcmp.eq.f32.partialorder %v453, inf
        %v488 = vsel %vm487, %v453, %v486
        %vm489 = vcmp.eq.f32.partialorder %v453, 0.0
        %v490 = vand.u32 %v453, 2147483648
        %v491 = vsel %vm489, %v490, %v488
        %v492 = vrsqrt.pop %v454
        %v493 = vmul.f32 %v454, %v492
        %vm494 = vcmp.eq.f32.partialorder %v454, inf
        %v495 = vsel %vm494, %v454, %v493
        %vm496 = vcmp.eq.f32.partialorder %v454, 0.0
        %v497 = vand.u32 %v454, 2147483648
        %v498 = vsel %vm496, %v497, %v495
        %v499 = vrsqrt.pop %v455
        %v500 = vmul.f32 %v455, %v499
        %vm501 = vcmp.eq.f32.partialorder %v455, inf
        %v502 = vsel %vm501, %v455, %v500
        %vm503 = vcmp.eq.f32.partialorder %v455, 0.0
        %v504 = vand.u32 %v455, 2147483648
        %v505 = vsel %vm503, %v504, %v502
        %v506 = vrsqrt.pop %v456
        %v507 = vmul.f32 %v456, %v506
        %vm508 = vcmp.eq.f32.partialorder %v456, inf
        %v509 = vsel %vm508, %v456, %v507
        %vm510 = vcmp.eq.f32.partialorder %v456, 0.0
        %v511 = vand.u32 %v456, 2147483648
        %v512 = vsel %vm510, %v511, %v509
        %v513 = vrsqrt.pop %v457
        %v514 = vmul.f32 %v457, %v513
        %vm515 = vcmp.eq.f32.partialorder %v457, inf
        %v516 = vsel %vm515, %v457, %v514
        %vm517 = vcmp.eq.f32.partialorder %v457, 0.0
        %v518 = vand.u32 %v457, 2147483648
        %v519 = vsel %vm517, %v518, %v516
        %v520 = vrsqrt.pop %v458
        %v521 = vmul.f32 %v458, %v520
        %vm522 = vcmp.eq.f32.partialorder %v458, inf
        %v523 = vsel %vm522, %v458, %v521
        %vm524 = vcmp.eq.f32.partialorder %v458, 0.0
        %v525 = vand.u32 %v458, 2147483648
        %v526 = vsel %vm524, %v525, %v523
        %v527 = vrsqrt.pop %v459
        %v528 = vmul.f32 %v459, %v527
        %vm529 = vcmp.eq.f32.partialorder %v459, inf
        %v530 = vsel %vm529, %v459, %v528
        %vm531 = vcmp.eq.f32.partialorder %v459, 0.0
        %v532 = vand.u32 %v459, 2147483648
        %v533 = vsel %vm531, %v532, %v530
        %v534 = vrsqrt.pop %v460
        %v535 = vmul.f32 %v460, %v534
        %vm536 = vcmp.eq.f32.partialorder %v460, inf
        %v537 = vsel %vm536, %v460, %v535
        %vm538 = vcmp.eq.f32.partialorder %v460, 0.0
        %v539 = vand.u32 %v460, 2147483648
        %v540 = vsel %vm538, %v539, %v537
        %v541 = vrsqrt.pop %v461
        %v542 = vmul.f32 %v461, %v541
        %vm543 = vcmp.eq.f32.partialorder %v461, inf
        %v544 = vsel %vm543, %v461, %v542
        %vm545 = vcmp.eq.f32.partialorder %v461, 0.0
        %v546 = vand.u32 %v461, 2147483648
        %v547 = vsel %vm545, %v546, %v544
        %v548 = vrsqrt.pop %v462
        %v549 = vmul.f32 %v462, %v548
        %vm550 = vcmp.eq.f32.partialorder %v462, inf
        %v551 = vsel %vm550, %v462, %v549
        %vm552 = vcmp.eq.f32.partialorder %v462, 0.0
        %v553 = vand.u32 %v462, 2147483648
        %v554 = vsel %vm552, %v553, %v551
        %v555 = vrsqrt.pop %v463
        %v556 = vmul.f32 %v463, %v555
        %vm557 = vcmp.eq.f32.partialorder %v463, inf
        %v558 = vsel %vm557, %v463, %v556
        %vm559 = vcmp.eq.f32.partialorder %v463, 0.0
        %v560 = vand.u32 %v463, 2147483648
        %v561 = vsel %vm559, %v560, %v558
        %v562 = vrsqrt.pop %v464
        %v563 = vmul.f32 %v464, %v562
        %vm564 = vcmp.eq.f32.partialorder %v464, inf
        %v565 = vsel %vm564, %v464, %v563
        %vm566 = vcmp.eq.f32.partialorder %v464, 0.0
        %v567 = vand.u32 %v464, 2147483648
        %v568 = vsel %vm566, %v567, %v565
        %v569 = vrsqrt.pop %v465
        %v570 = vmul.f32 %v465, %v569
        %vm571 = vcmp.eq.f32.partialorder %v465, inf
        %v572 = vsel %vm571, %v465, %v570
        %vm573 = vcmp.eq.f32.partialorder %v465, 0.0
        %v574 = vand.u32 %v465, 2147483648
        %v575 = vsel %vm573, %v574, %v572
        %v576 = vrsqrt.pop %v466
        %v577 = vmul.f32 %v466, %v576
        %vm578 = vcmp.eq.f32.partialorder %v466, inf
        %v579 = vsel %vm578, %v466, %v577
        %vm580 = vcmp.eq.f32.partialorder %v466, 0.0
        %v581 = vand.u32 %v466, 2147483648
        %v582 = vsel %vm580, %v581, %v579
        %v583 = vrsqrt.pop %v467
        %v584 = vmul.f32 %v467, %v583
        %vm585 = vcmp.eq.f32.partialorder %v467, inf
        %v586 = vsel %vm585, %v467, %v584
        %vm587 = vcmp.eq.f32.partialorder %v467, 0.0
        %v588 = vand.u32 %v467, 2147483648
        %v589 = vsel %vm587, %v588, %v586
        %v590 = vrsqrt.pop %v468
        %v591 = vmul.f32 %v468, %v590
        %vm592 = vcmp.eq.f32.partialorder %v468, inf
        %v593 = vsel %vm592, %v468, %v591
        %vm594 = vcmp.eq.f32.partialorder %v468, 0.0
        %v595 = vand.u32 %v468, 2147483648
        %v596 = vsel %vm594, %v595, %v593
        %v597 = vrsqrt.pop %v469
        %v598 = vmul.f32 %v469, %v597
        %vm599 = vcmp.eq.f32.partialorder %v469, inf
        %v600 = vsel %vm599, %v469, %v598
        %vm601 = vcmp.eq.f32.partialorder %v469, 0.0
        %v602 = vand.u32 %v469, 2147483648
        %v603 = vsel %vm601, %v602, %v600
        %v604 = vrsqrt.pop %v470
        %v605 = vmul.f32 %v470, %v604
        %vm606 = vcmp.eq.f32.partialorder %v470, inf
        %v607 = vsel %vm606, %v470, %v605
        %vm608 = vcmp.eq.f32.partialorder %v470, 0.0
        %v609 = vand.u32 %v470, 2147483648
        %v610 = vsel %vm608, %v609, %v607
        %v611 = vrsqrt.pop %v471
        %v612 = vmul.f32 %v471, %v611
        %vm613 = vcmp.eq.f32.partialorder %v471, inf
        %v614 = vsel %vm613, %v471, %v612
        %vm615 = vcmp.eq.f32.partialorder %v471, 0.0
        %v616 = vand.u32 %v471, 2147483648
        %v617 = vsel %vm615, %v616, %v614
        %v618 = vrsqrt.pop %v472
        %v619 = vmul.f32 %v472, %v618
        %vm620 = vcmp.eq.f32.partialorder %v472, inf
        %v621 = vsel %vm620, %v472, %v619
        %vm622 = vcmp.eq.f32.partialorder %v472, 0.0
        %v623 = vand.u32 %v472, 2147483648
        %v624 = vsel %vm622, %v623, %v621
        %v625 = vrsqrt.pop %v473
        %v626 = vmul.f32 %v473, %v625
        %vm627 = vcmp.eq.f32.partialorder %v473, inf
        %v628 = vsel %vm627, %v473, %v626
        %vm629 = vcmp.eq.f32.partialorder %v473, 0.0
        %v630 = vand.u32 %v473, 2147483648
        %v631 = vsel %vm629, %v630, %v628
        %v632 = vrsqrt.pop %v474
        %v633 = vmul.f32 %v474, %v632
        %vm634 = vcmp.eq.f32.partialorder %v474, inf
        %v635 = vsel %vm634, %v474, %v633
        %vm636 = vcmp.eq.f32.partialorder %v474, 0.0
        %v637 = vand.u32 %v474, 2147483648
        %v638 = vsel %vm636, %v637, %v635
        %v639 = vrsqrt.pop %v475
        %v640 = vmul.f32 %v475, %v639
        %vm641 = vcmp.eq.f32.partialorder %v475, inf
        %v642 = vsel %vm641, %v475, %v640
        %vm643 = vcmp.eq.f32.partialorder %v475, 0.0
        %v644 = vand.u32 %v475, 2147483648
        %v645 = vsel %vm643, %v644, %v642
        %v646 = vrsqrt.pop %v476
        %v647 = vmul.f32 %v476, %v646
        %vm648 = vcmp.eq.f32.partialorder %v476, inf
        %v649 = vsel %vm648, %v476, %v647
        %vm650 = vcmp.eq.f32.partialorder %v476, 0.0
        %v651 = vand.u32 %v476, 2147483648
        %v652 = vsel %vm650, %v651, %v649
        %v653 = vrsqrt.pop %v477
        %v654 = vmul.f32 %v477, %v653
        %vm655 = vcmp.eq.f32.partialorder %v477, inf
        %v656 = vsel %vm655, %v477, %v654
        %vm657 = vcmp.eq.f32.partialorder %v477, 0.0
        %v658 = vand.u32 %v477, 2147483648
        %v659 = vsel %vm657, %v658, %v656
        %v660 = vrsqrt.pop %v478
        %v661 = vmul.f32 %v478, %v660
        %vm662 = vcmp.eq.f32.partialorder %v478, inf
        %v663 = vsel %vm662, %v478, %v661
        %vm664 = vcmp.eq.f32.partialorder %v478, 0.0
        %v665 = vand.u32 %v478, 2147483648
        %v666 = vsel %vm664, %v665, %v663
        %v667 = vrsqrt.pop %v479
        %v668 = vmul.f32 %v479, %v667
        %vm669 = vcmp.eq.f32.partialorder %v479, inf
        %v670 = vsel %vm669, %v479, %v668
        %vm671 = vcmp.eq.f32.partialorder %v479, 0.0
        %v672 = vand.u32 %v479, 2147483648
        %v673 = vsel %vm671, %v672, %v670
        %v674 = vrsqrt.pop %v480
        %v675 = vmul.f32 %v480, %v674
        %vm676 = vcmp.eq.f32.partialorder %v480, inf
        %v677 = vsel %vm676, %v480, %v675
        %vm678 = vcmp.eq.f32.partialorder %v480, 0.0
        %v679 = vand.u32 %v480, 2147483648
        %v680 = vsel %vm678, %v679, %v677
        %v681 = vrsqrt.pop %v481
        %v682 = vmul.f32 %v481, %v681
        %vm683 = vcmp.eq.f32.partialorder %v481, inf
        %v684 = vsel %vm683, %v481, %v682
        %vm685 = vcmp.eq.f32.partialorder %v481, 0.0
        %v686 = vand.u32 %v481, 2147483648
        %v687 = vsel %vm685, %v686, %v684
        %v688 = vrsqrt.pop %v482
        %v689 = vmul.f32 %v482, %v688
        %vm690 = vcmp.eq.f32.partialorder %v482, inf
        %v691 = vsel %vm690, %v482, %v689
        %vm692 = vcmp.eq.f32.partialorder %v482, 0.0
        %v693 = vand.u32 %v482, 2147483648
        %v694 = vsel %vm692, %v693, %v691
        %v695 = vrsqrt.pop %v483
        %v696 = vmul.f32 %v483, %v695
        %vm697 = vcmp.eq.f32.partialorder %v483, inf
        %v698 = vsel %vm697, %v483, %v696
        %vm699 = vcmp.eq.f32.partialorder %v483, 0.0
        %v700 = vand.u32 %v483, 2147483648
        %v701 = vsel %vm699, %v700, %v698
        %v702 = vrsqrt.pop %v484
        %v703 = vmul.f32 %v484, %v702
        %vm704 = vcmp.eq.f32.partialorder %v484, inf
        %v705 = vsel %vm704, %v484, %v703
        %vm706 = vcmp.eq.f32.partialorder %v484, 0.0
        %v707 = vand.u32 %v484, 2147483648
        %v708 = vsel %vm706, %v707, %v705
        %v709 = vmax.f32 %v491, 1e-08
        %v710 = vmax.f32 %v498, 1e-08
        %v711 = vmax.f32 %v505, 1e-08
        %v712 = vmax.f32 %v512, 1e-08
        %v713 = vmax.f32 %v519, 1e-08
        %v714 = vmax.f32 %v526, 1e-08
        %v715 = vmax.f32 %v533, 1e-08
        %v716 = vmax.f32 %v540, 1e-08
        %v717 = vmax.f32 %v547, 1e-08
        %v718 = vmax.f32 %v554, 1e-08
        %v719 = vmax.f32 %v561, 1e-08
        %v720 = vmax.f32 %v568, 1e-08
        %v721 = vmax.f32 %v575, 1e-08
        %v722 = vmax.f32 %v582, 1e-08
        %v723 = vmax.f32 %v589, 1e-08
        %v724 = vmax.f32 %v596, 1e-08
        %v725 = vmax.f32 %v603, 1e-08
        %v726 = vmax.f32 %v610, 1e-08
        %v727 = vmax.f32 %v617, 1e-08
        %v728 = vmax.f32 %v624, 1e-08
        %v729 = vmax.f32 %v631, 1e-08
        %v730 = vmax.f32 %v638, 1e-08
        %v731 = vmax.f32 %v645, 1e-08
        %v732 = vmax.f32 %v652, 1e-08
        %v733 = vmax.f32 %v659, 1e-08
        %v734 = vmax.f32 %v666, 1e-08
        %v735 = vmax.f32 %v673, 1e-08
        %v736 = vmax.f32 %v680, 1e-08
        %v737 = vmax.f32 %v687, 1e-08
        %v738 = vmax.f32 %v694, 1e-08
        %v739 = vmax.f32 %v701, 1e-08
        %v740 = vmax.f32 %v708, 1e-08
        %v741 = vmul.f32 %v491, 1.442695
        %v742 = vpow.pop %v741
        %v743 = vmul.f32 %v498, 1.442695
        %v744 = vpow.pop %v743
        %v745 = vmul.f32 %v505, 1.442695
        %v746 = vpow.pop %v745
        %v747 = vmul.f32 %v512, 1.442695
        %v748 = vpow.pop %v747
        %v749 = vmul.f32 %v519, 1.442695
        %v750 = vpow.pop %v749
        %v751 = vmul.f32 %v526, 1.442695
        %v752 = vpow.pop %v751
        %v753 = vmul.f32 %v533, 1.442695
        %v754 = vpow.pop %v753
        %v755 = vmul.f32 %v540, 1.442695
        %v756 = vpow.pop %v755
        %v757 = vmul.f32 %v547, 1.442695
        %v758 = vpow.pop %v757
        %v759 = vmul.f32 %v554, 1.442695
        %v760 = vpow.pop %v759
        %v761 = vmul.f32 %v561, 1.442695
        %v762 = vpow.pop %v761
        %v763 = vmul.f32 %v568, 1.442695
        %v764 = vpow.pop %v763
        %v765 = vmul.f32 %v575, 1.442695
        %v766 = vpow.pop %v765
        %v767 = vmul.f32 %v582, 1.442695
        %v768 = vpow.pop %v767
        %v769 = vmul.f32 %v589, 1.442695
        %v770 = vpow.pop %v769
        %v771 = vmul.f32 %v596, 1.442695
        %v772 = vpow.pop %v771
        %v773 = vmul.f32 %v603, 1.442695
        %v774 = vpow.pop %v773
        %v775 = vmul.f32 %v610, 1.442695
        %v776 = vpow.pop %v775
        %v777 = vmul.f32 %v617, 1.442695
        %v778 = vpow.pop %v777
        %v779 = vmul.f32 %v624, 1.442695
        %v780 = vpow.pop %v779
        %v781 = vmul.f32 %v631, 1.442695
        %v782 = vpow.pop %v781
        %v783 = vmul.f32 %v638, 1.442695
        %v784 = vpow.pop %v783
        %v785 = vmul.f32 %v645, 1.442695
        %v786 = vpow.pop %v785
        %v787 = vmul.f32 %v652, 1.442695
        %v788 = vpow.pop %v787
        %v789 = vmul.f32 %v659, 1.442695
        %v790 = vpow.pop %v789
        %v791 = vmul.f32 %v666, 1.442695
        %v792 = vpow.pop %v791
        %v793 = vmul.f32 %v673, 1.442695
        %v794 = vpow.pop %v793
        %v795 = vmul.f32 %v680, 1.442695
        %v796 = vpow.pop %v795
        %v797 = vmul.f32 %v687, 1.442695
        %v798 = vpow.pop %v797
        %v799 = vmul.f32 %v694, 1.442695
        %v800 = vpow.pop %v799
        %v801 = vmul.f32 %v701, 1.442695
        %v802 = vpow.pop %v801
        %v803 = vmul.f32 %v708, 1.442695
        %v804 = vpow.pop %v803
        %v805 = vrcp.pop %v742
        %v806 = vmul.f32 1.0, %v805
        %v807 = vrcp.pop %v744
        %v808 = vmul.f32 1.0, %v807
        %v809 = vrcp.pop %v746
        %v810 = vmul.f32 1.0, %v809
        %v811 = vrcp.pop %v748
        %v812 = vmul.f32 1.0, %v811
        %v813 = vrcp.pop %v750
        %v814 = vmul.f32 1.0, %v813
        %v815 = vrcp.pop %v752
        %v816 = vmul.f32 1.0, %v815
        %v817 = vrcp.pop %v754
        %v818 = vmul.f32 1.0, %v817
        %v819 = vrcp.pop %v756
        %v820 = vmul.f32 1.0, %v819
        %v821 = vrcp.pop %v758
        %v822 = vmul.f32 1.0, %v821
        %v823 = vrcp.pop %v760
        %v824 = vmul.f32 1.0, %v823
        %v825 = vrcp.pop %v762
        %v826 = vmul.f32 1.0, %v825
        %v827 = vrcp.pop %v764
        %v828 = vmul.f32 1.0, %v827
        %v829 = vrcp.pop %v766
        %v830 = vmul.f32 1.0, %v829
        %v831 = vrcp.pop %v768
        %v832 = vmul.f32 1.0, %v831
        %v833 = vrcp.pop %v770
        %v834 = vmul.f32 1.0, %v833
        %v835 = vrcp.pop %v772
        %v836 = vmul.f32 1.0, %v835
        %v837 = vrcp.pop %v774
        %v838 = vmul.f32 1.0, %v837
        %v839 = vrcp.pop %v776
        %v840 = vmul.f32 1.0, %v839
        %v841 = vrcp.pop %v778
        %v842 = vmul.f32 1.0, %v841
        %v843 = vrcp.pop %v780
        %v844 = vmul.f32 1.0, %v843
        %v845 = vrcp.pop %v782
        %v846 = vmul.f32 1.0, %v845
        %v847 = vrcp.pop %v784
        %v848 = vmul.f32 1.0, %v847
        %v849 = vrcp.pop %v786
        %v850 = vmul.f32 1.0, %v849
        %v851 = vrcp.pop %v788
        %v852 = vmul.f32 1.0, %v851
        %v853 = vrcp.pop %v790
        %v854 = vmul.f32 1.0, %v853
        %v855 = vrcp.pop %v792
        %v856 = vmul.f32 1.0, %v855
        %v857 = vrcp.pop %v794
        %v858 = vmul.f32 1.0, %v857
        %v859 = vrcp.pop %v796
        %v860 = vmul.f32 1.0, %v859
        %v861 = vrcp.pop %v798
        %v862 = vmul.f32 1.0, %v861
        %v863 = vrcp.pop %v800
        %v864 = vmul.f32 1.0, %v863
        %v865 = vrcp.pop %v802
        %v866 = vmul.f32 1.0, %v865
        %v867 = vrcp.pop %v804
        %v868 = vmul.f32 1.0, %v867
        %v869 = vadd.f32 %v742, %v806
        %v870 = vadd.f32 %v744, %v808
        %v871 = vadd.f32 %v746, %v810
        %v872 = vadd.f32 %v748, %v812
        %v873 = vadd.f32 %v750, %v814
        %v874 = vadd.f32 %v752, %v816
        %v875 = vadd.f32 %v754, %v818
        %v876 = vadd.f32 %v756, %v820
        %v877 = vadd.f32 %v758, %v822
        %v878 = vadd.f32 %v760, %v824
        %v879 = vadd.f32 %v762, %v826
        %v880 = vadd.f32 %v764, %v828
        %v881 = vadd.f32 %v766, %v830
        %v882 = vadd.f32 %v768, %v832
        %v883 = vadd.f32 %v770, %v834
        %v884 = vadd.f32 %v772, %v836
        %v885 = vadd.f32 %v774, %v838
        %v886 = vadd.f32 %v776, %v840
        %v887 = vadd.f32 %v778, %v842
        %v888 = vadd.f32 %v780, %v844
        %v889 = vadd.f32 %v782, %v846
        %v890 = vadd.f32 %v784, %v848
        %v891 = vadd.f32 %v786, %v850
        %v892 = vadd.f32 %v788, %v852
        %v893 = vadd.f32 %v790, %v854
        %v894 = vadd.f32 %v792, %v856
        %v895 = vadd.f32 %v794, %v858
        %v896 = vadd.f32 %v796, %v860
        %v897 = vadd.f32 %v798, %v862
        %v898 = vadd.f32 %v800, %v864
        %v899 = vadd.f32 %v802, %v866
        %v900 = vadd.f32 %v804, %v868
        %v901 = vmul.f32 %v869, 0.5
        %v902 = vmul.f32 %v870, 0.5
        %v903 = vmul.f32 %v871, 0.5
        %v904 = vmul.f32 %v872, 0.5
        %v905 = vmul.f32 %v873, 0.5
        %v906 = vmul.f32 %v874, 0.5
        %v907 = vmul.f32 %v875, 0.5
        %v908 = vmul.f32 %v876, 0.5
        %v909 = vmul.f32 %v877, 0.5
        %v910 = vmul.f32 %v878, 0.5
        %v911 = vmul.f32 %v879, 0.5
        %v912 = vmul.f32 %v880, 0.5
        %v913 = vmul.f32 %v881, 0.5
        %v914 = vmul.f32 %v882, 0.5
        %v915 = vmul.f32 %v883, 0.5
        %v916 = vmul.f32 %v884, 0.5
        %v917 = vmul.f32 %v885, 0.5
        %v918 = vmul.f32 %v886, 0.5
        %v919 = vmul.f32 %v887, 0.5
        %v920 = vmul.f32 %v888, 0.5
        %v921 = vmul.f32 %v889, 0.5
        %v922 = vmul.f32 %v890, 0.5
        %v923 = vmul.f32 %v891, 0.5
        %v924 = vmul.f32 %v892, 0.5
        %v925 = vmul.f32 %v893, 0.5
        %v926 = vmul.f32 %v894, 0.5
        %v927 = vmul.f32 %v895, 0.5
        %v928 = vmul.f32 %v896, 0.5
        %v929 = vmul.f32 %v897, 0.5
        %v930 = vmul.f32 %v898, 0.5
        %v931 = vmul.f32 %v899, 0.5
        %v932 = vmul.f32 %v900, 0.5
        %v933 = vsub.f32 %v742, %v806
        %v934 = vsub.f32 %v744, %v808
        %v935 = vsub.f32 %v746, %v810
        %v936 = vsub.f32 %v748, %v812
        %v937 = vsub.f32 %v750, %v814
        %v938 = vsub.f32 %v752, %v816
        %v939 = vsub.f32 %v754, %v818
        %v940 = vsub.f32 %v756, %v820
        %v941 = vsub.f32 %v758, %v822
        %v942 = vsub.f32 %v760, %v824
        %v943 = vsub.f32 %v762, %v826
        %v944 = vsub.f32 %v764, %v828
        %v945 = vsub.f32 %v766, %v830
        %v946 = vsub.f32 %v768, %v832
        %v947 = vsub.f32 %v770, %v834
        %v948 = vsub.f32 %v772, %v836
        %v949 = vsub.f32 %v774, %v838
        %v950 = vsub.f32 %v776, %v840
        %v951 = vsub.f32 %v778, %v842
        %v952 = vsub.f32 %v780, %v844
        %v953 = vsub.f32 %v782, %v846
        %v954 = vsub.f32 %v784, %v848
        %v955 = vsub.f32 %v786, %v850
        %v956 = vsub.f32 %v788, %v852
        %v957 = vsub.f32 %v790, %v854
        %v958 = vsub.f32 %v792, %v856
        %v959 = vsub.f32 %v794, %v858
        %v960 = vsub.f32 %v796, %v860
        %v961 = vsub.f32 %v798, %v862
        %v962 = vsub.f32 %v800, %v864
        %v963 = vsub.f32 %v802, %v866
        %v964 = vsub.f32 %v804, %v868
        %v965 = vmul.f32 %v933, 0.5
        %v966 = vmul.f32 %v934, 0.5
        %v967 = vmul.f32 %v935, 0.5
        %v968 = vmul.f32 %v936, 0.5
        %v969 = vmul.f32 %v937, 0.5
        %v970 = vmul.f32 %v938, 0.5
        %v971 = vmul.f32 %v939, 0.5
        %v972 = vmul.f32 %v940, 0.5
        %v973 = vmul.f32 %v941, 0.5
        %v974 = vmul.f32 %v942, 0.5
        %v975 = vmul.f32 %v943, 0.5
        %v976 = vmul.f32 %v944, 0.5
        %v977 = vmul.f32 %v945, 0.5
        %v978 = vmul.f32 %v946, 0.5
        %v979 = vmul.f32 %v947, 0.5
        %v980 = vmul.f32 %v948, 0.5
        %v981 = vmul.f32 %v949, 0.5
        %v982 = vmul.f32 %v950, 0.5
        %v983 = vmul.f32 %v951, 0.5
        %v984 = vmul.f32 %v952, 0.5
        %v985 = vmul.f32 %v953, 0.5
        %v986 = vmul.f32 %v954, 0.5
        %v987 = vmul.f32 %v955, 0.5
        %v988 = vmul.f32 %v956, 0.5
        %v989 = vmul.f32 %v957, 0.5
        %v990 = vmul.f32 %v958, 0.5
        %v991 = vmul.f32 %v959, 0.5
        %v992 = vmul.f32 %v960, 0.5
        %v993 = vmul.f32 %v961, 0.5
        %v994 = vmul.f32 %v962, 0.5
        %v995 = vmul.f32 %v963, 0.5
        %v996 = vmul.f32 %v964, 0.5
        %v997 = vrcp.pop %v709
        %v998 = vmul.f32 1.0, %v997
        %v999 = vrcp.pop %v710
        %v1000 = vmul.f32 1.0, %v999
        %v1001 = vrcp.pop %v711
        %v1002 = vmul.f32 1.0, %v1001
        %v1003 = vrcp.pop %v712
        %v1004 = vmul.f32 1.0, %v1003
        %v1005 = vrcp.pop %v713
        %v1006 = vmul.f32 1.0, %v1005
        %v1007 = vrcp.pop %v714
        %v1008 = vmul.f32 1.0, %v1007
        %v1009 = vrcp.pop %v715
        %v1010 = vmul.f32 1.0, %v1009
        %v1011 = vrcp.pop %v716
        %v1012 = vmul.f32 1.0, %v1011
        %v1013 = vrcp.pop %v717
        %v1014 = vmul.f32 1.0, %v1013
        %v1015 = vrcp.pop %v718
        %v1016 = vmul.f32 1.0, %v1015
        %v1017 = vrcp.pop %v719
        %v1018 = vmul.f32 1.0, %v1017
        %v1019 = vrcp.pop %v720
        %v1020 = vmul.f32 1.0, %v1019
        %v1021 = vrcp.pop %v721
        %v1022 = vmul.f32 1.0, %v1021
        %v1023 = vrcp.pop %v722
        %v1024 = vmul.f32 1.0, %v1023
        %v1025 = vrcp.pop %v723
        %v1026 = vmul.f32 1.0, %v1025
        %v1027 = vrcp.pop %v724
        %v1028 = vmul.f32 1.0, %v1027
        %v1029 = vrcp.pop %v725
        %v1030 = vmul.f32 1.0, %v1029
        %v1031 = vrcp.pop %v726
        %v1032 = vmul.f32 1.0, %v1031
        %v1033 = vrcp.pop %v727
        %v1034 = vmul.f32 1.0, %v1033
        %v1035 = vrcp.pop %v728
        %v1036 = vmul.f32 1.0, %v1035
        %v1037 = vrcp.pop %v729
        %v1038 = vmul.f32 1.0, %v1037
        %v1039 = vrcp.pop %v730
        %v1040 = vmul.f32 1.0, %v1039
        %v1041 = vrcp.pop %v731
        %v1042 = vmul.f32 1.0, %v1041
        %v1043 = vrcp.pop %v732
        %v1044 = vmul.f32 1.0, %v1043
        %v1045 = vrcp.pop %v733
        %v1046 = vmul.f32 1.0, %v1045
        %v1047 = vrcp.pop %v734
        %v1048 = vmul.f32 1.0, %v1047
        %v1049 = vrcp.pop %v735
        %v1050 = vmul.f32 1.0, %v1049
        %v1051 = vrcp.pop %v736
        %v1052 = vmul.f32 1.0, %v1051
        %v1053 = vrcp.pop %v737
        %v1054 = vmul.f32 1.0, %v1053
        %v1055 = vrcp.pop %v738
        %v1056 = vmul.f32 1.0, %v1055
        %v1057 = vrcp.pop %v739
        %v1058 = vmul.f32 1.0, %v1057
        %v1059 = vrcp.pop %v740
        %v1060 = vmul.f32 1.0, %v1059
        %v1061 = vmul.f32 %v965, %v998
        %v1062 = vmul.f32 %v966, %v1000
        %v1063 = vmul.f32 %v967, %v1002
        %v1064 = vmul.f32 %v968, %v1004
        %v1065 = vmul.f32 %v969, %v1006
        %v1066 = vmul.f32 %v970, %v1008
        %v1067 = vmul.f32 %v971, %v1010
        %v1068 = vmul.f32 %v972, %v1012
        %v1069 = vmul.f32 %v973, %v1014
        %v1070 = vmul.f32 %v974, %v1016
        %v1071 = vmul.f32 %v975, %v1018
        %v1072 = vmul.f32 %v976, %v1020
        %v1073 = vmul.f32 %v977, %v1022
        %v1074 = vmul.f32 %v978, %v1024
        %v1075 = vmul.f32 %v979, %v1026
        %v1076 = vmul.f32 %v980, %v1028
        %v1077 = vmul.f32 %v981, %v1030
        %v1078 = vmul.f32 %v982, %v1032
        %v1079 = vmul.f32 %v983, %v1034
        %v1080 = vmul.f32 %v984, %v1036
        %v1081 = vmul.f32 %v985, %v1038
        %v1082 = vmul.f32 %v986, %v1040
        %v1083 = vmul.f32 %v987, %v1042
        %v1084 = vmul.f32 %v988, %v1044
        %v1085 = vmul.f32 %v989, %v1046
        %v1086 = vmul.f32 %v990, %v1048
        %v1087 = vmul.f32 %v991, %v1050
        %v1088 = vmul.f32 %v992, %v1052
        %v1089 = vmul.f32 %v993, %v1054
        %v1090 = vmul.f32 %v994, %v1056
        %v1091 = vmul.f32 %v995, %v1058
        %v1092 = vmul.f32 %v996, %v1060
        %1094 = vset.pattern.permute.xlu0 0
        %1095 = vperm.xlu0 %1094, %v1061
        %v1096 = vpop.permute.xlu0 %1095
        %1099 = vset.pattern.permute.xlu0 0
        %1100 = vperm.xlu0 %1099, %v1062
        %v1101 = vpop.permute.xlu0 %1100
        %1104 = vset.pattern.permute.xlu0 0
        %1105 = vperm.xlu0 %1104, %v1063
        %v1106 = vpop.permute.xlu0 %1105
        %1109 = vset.pattern.permute.xlu0 0
        %1110 = vperm.xlu0 %1109, %v1064
        %v1111 = vpop.permute.xlu0 %1110
        %1114 = vset.pattern.permute.xlu0 0
        %1115 = vperm.xlu0 %1114, %v1065
        %v1116 = vpop.permute.xlu0 %1115
        %1119 = vset.pattern.permute.xlu0 0
        %1120 = vperm.xlu0 %1119, %v1066
        %v1121 = vpop.permute.xlu0 %1120
        %1124 = vset.pattern.permute.xlu0 0
        %1125 = vperm.xlu0 %1124, %v1067
        %v1126 = vpop.permute.xlu0 %1125
        %1129 = vset.pattern.permute.xlu0 0
        %1130 = vperm.xlu0 %1129, %v1068
        %v1131 = vpop.permute.xlu0 %1130
        %1134 = vset.pattern.permute.xlu0 0
        %1135 = vperm.xlu0 %1134, %v1069
        %v1136 = vpop.permute.xlu0 %1135
        %1139 = vset.pattern.permute.xlu0 0
        %1140 = vperm.xlu0 %1139, %v1070
        %v1141 = vpop.permute.xlu0 %1140
        %1144 = vset.pattern.permute.xlu0 0
        %1145 = vperm.xlu0 %1144, %v1071
        %v1146 = vpop.permute.xlu0 %1145
        %1149 = vset.pattern.permute.xlu0 0
        %1150 = vperm.xlu0 %1149, %v1072
        %v1151 = vpop.permute.xlu0 %1150
        %1154 = vset.pattern.permute.xlu0 0
        %1155 = vperm.xlu0 %1154, %v1073
        %v1156 = vpop.permute.xlu0 %1155
        %1159 = vset.pattern.permute.xlu0 0
        %1160 = vperm.xlu0 %1159, %v1074
        %v1161 = vpop.permute.xlu0 %1160
        %1164 = vset.pattern.permute.xlu0 0
        %1165 = vperm.xlu0 %1164, %v1075
        %v1166 = vpop.permute.xlu0 %1165
        %1169 = vset.pattern.permute.xlu0 0
        %1170 = vperm.xlu0 %1169, %v1076
        %v1171 = vpop.permute.xlu0 %1170
        %1174 = vset.pattern.permute.xlu0 0
        %1175 = vperm.xlu0 %1174, %v1077
        %v1176 = vpop.permute.xlu0 %1175
        %1179 = vset.pattern.permute.xlu0 0
        %1180 = vperm.xlu0 %1179, %v1078
        %v1181 = vpop.permute.xlu0 %1180
        %1184 = vset.pattern.permute.xlu0 0
        %1185 = vperm.xlu0 %1184, %v1079
        %v1186 = vpop.permute.xlu0 %1185
        %1189 = vset.pattern.permute.xlu0 0
        %1190 = vperm.xlu0 %1189, %v1080
        %v1191 = vpop.permute.xlu0 %1190
        %1194 = vset.pattern.permute.xlu0 0
        %1195 = vperm.xlu0 %1194, %v1081
        %v1196 = vpop.permute.xlu0 %1195
        %1199 = vset.pattern.permute.xlu0 0
        %1200 = vperm.xlu0 %1199, %v1082
        %v1201 = vpop.permute.xlu0 %1200
        %1204 = vset.pattern.permute.xlu0 0
        %1205 = vperm.xlu0 %1204, %v1083
        %v1206 = vpop.permute.xlu0 %1205
        %1209 = vset.pattern.permute.xlu0 0
        %1210 = vperm.xlu0 %1209, %v1084
        %v1211 = vpop.permute.xlu0 %1210
        %1214 = vset.pattern.permute.xlu0 0
        %1215 = vperm.xlu0 %1214, %v1085
        %v1216 = vpop.permute.xlu0 %1215
        %1219 = vset.pattern.permute.xlu0 0
        %1220 = vperm.xlu0 %1219, %v1086
        %v1221 = vpop.permute.xlu0 %1220
        %1224 = vset.pattern.permute.xlu0 0
        %1225 = vperm.xlu0 %1224, %v1087
        %v1226 = vpop.permute.xlu0 %1225
        %1229 = vset.pattern.permute.xlu0 0
        %1230 = vperm.xlu0 %1229, %v1088
        %v1231 = vpop.permute.xlu0 %1230
        %1234 = vset.pattern.permute.xlu0 0
        %1235 = vperm.xlu0 %1234, %v1089
        %v1236 = vpop.permute.xlu0 %1235
        %1239 = vset.pattern.permute.xlu0 0
        %1240 = vperm.xlu0 %1239, %v1090
        %v1241 = vpop.permute.xlu0 %1240
        %1244 = vset.pattern.permute.xlu0 0
        %1245 = vperm.xlu0 %1244, %v1091
        %v1246 = vpop.permute.xlu0 %1245
        %1249 = vset.pattern.permute.xlu0 0
        %1250 = vperm.xlu0 %1249, %v1092
        %v1251 = vpop.permute.xlu0 %1250
        %v1253 = vmul.f32 %v1096, %v257
        %v1254 = vmul.f32 %v1101, %v258
        %v1255 = vmul.f32 %v1106, %v259
        %v1256 = vmul.f32 %v1111, %v260
        %v1257 = vmul.f32 %v1116, %v261
        %v1258 = vmul.f32 %v1121, %v262
        %v1259 = vmul.f32 %v1126, %v263
        %v1260 = vmul.f32 %v1131, %v264
        %v1261 = vmul.f32 %v1136, %v265
        %v1262 = vmul.f32 %v1141, %v266
        %v1263 = vmul.f32 %v1146, %v267
        %v1264 = vmul.f32 %v1151, %v268
        %v1265 = vmul.f32 %v1156, %v269
        %v1266 = vmul.f32 %v1161, %v270
        %v1267 = vmul.f32 %v1166, %v271
        %v1268 = vmul.f32 %v1171, %v272
        %v1269 = vmul.f32 %v1176, %v273
        %v1270 = vmul.f32 %v1181, %v274
        %v1271 = vmul.f32 %v1186, %v275
        %v1272 = vmul.f32 %v1191, %v276
        %v1273 = vmul.f32 %v1196, %v277
        %v1274 = vmul.f32 %v1201, %v278
        %v1275 = vmul.f32 %v1206, %v279
        %v1276 = vmul.f32 %v1211, %v280
        %v1277 = vmul.f32 %v1216, %v281
        %v1278 = vmul.f32 %v1221, %v282
        %v1279 = vmul.f32 %v1226, %v283
        %v1280 = vmul.f32 %v1231, %v284
        %v1281 = vmul.f32 %v1236, %v285
        %v1282 = vmul.f32 %v1241, %v286
        %v1283 = vmul.f32 %v1246, %v287
        %v1284 = vmul.f32 %v1251, %v288
        %1286 = vset.pattern.permute.xlu0 0
        %1287 = vperm.xlu0 %1286, %v901
        %v1288 = vpop.permute.xlu0 %1287
        %1291 = vset.pattern.permute.xlu0 0
        %1292 = vperm.xlu0 %1291, %v902
        %v1293 = vpop.permute.xlu0 %1292
        %1296 = vset.pattern.permute.xlu0 0
        %1297 = vperm.xlu0 %1296, %v903
        %v1298 = vpop.permute.xlu0 %1297
        %1301 = vset.pattern.permute.xlu0 0
        %1302 = vperm.xlu0 %1301, %v904
        %v1303 = vpop.permute.xlu0 %1302
        %1306 = vset.pattern.permute.xlu0 0
        %1307 = vperm.xlu0 %1306, %v905
        %v1308 = vpop.permute.xlu0 %1307
        %1311 = vset.pattern.permute.xlu0 0
        %1312 = vperm.xlu0 %1311, %v906
        %v1313 = vpop.permute.xlu0 %1312
        %1316 = vset.pattern.permute.xlu0 0
        %1317 = vperm.xlu0 %1316, %v907
        %v1318 = vpop.permute.xlu0 %1317
        %1321 = vset.pattern.permute.xlu0 0
        %1322 = vperm.xlu0 %1321, %v908
        %v1323 = vpop.permute.xlu0 %1322
        %1326 = vset.pattern.permute.xlu0 0
        %1327 = vperm.xlu0 %1326, %v909
        %v1328 = vpop.permute.xlu0 %1327
        %1331 = vset.pattern.permute.xlu0 0
        %1332 = vperm.xlu0 %1331, %v910
        %v1333 = vpop.permute.xlu0 %1332
        %1336 = vset.pattern.permute.xlu0 0
        %1337 = vperm.xlu0 %1336, %v911
        %v1338 = vpop.permute.xlu0 %1337
        %1341 = vset.pattern.permute.xlu0 0
        %1342 = vperm.xlu0 %1341, %v912
        %v1343 = vpop.permute.xlu0 %1342
        %1346 = vset.pattern.permute.xlu0 0
        %1347 = vperm.xlu0 %1346, %v913
        %v1348 = vpop.permute.xlu0 %1347
        %1351 = vset.pattern.permute.xlu0 0
        %1352 = vperm.xlu0 %1351, %v914
        %v1353 = vpop.permute.xlu0 %1352
        %1356 = vset.pattern.permute.xlu0 0
        %1357 = vperm.xlu0 %1356, %v915
        %v1358 = vpop.permute.xlu0 %1357
        %1361 = vset.pattern.permute.xlu0 0
        %1362 = vperm.xlu0 %1361, %v916
        %v1363 = vpop.permute.xlu0 %1362
        %1366 = vset.pattern.permute.xlu0 0
        %1367 = vperm.xlu0 %1366, %v917
        %v1368 = vpop.permute.xlu0 %1367
        %1371 = vset.pattern.permute.xlu0 0
        %1372 = vperm.xlu0 %1371, %v918
        %v1373 = vpop.permute.xlu0 %1372
        %1376 = vset.pattern.permute.xlu0 0
        %1377 = vperm.xlu0 %1376, %v919
        %v1378 = vpop.permute.xlu0 %1377
        %1381 = vset.pattern.permute.xlu0 0
        %1382 = vperm.xlu0 %1381, %v920
        %v1383 = vpop.permute.xlu0 %1382
        %1386 = vset.pattern.permute.xlu0 0
        %1387 = vperm.xlu0 %1386, %v921
        %v1388 = vpop.permute.xlu0 %1387
        %1391 = vset.pattern.permute.xlu0 0
        %1392 = vperm.xlu0 %1391, %v922
        %v1393 = vpop.permute.xlu0 %1392
        %1396 = vset.pattern.permute.xlu0 0
        %1397 = vperm.xlu0 %1396, %v923
        %v1398 = vpop.permute.xlu0 %1397
        %1401 = vset.pattern.permute.xlu0 0
        %1402 = vperm.xlu0 %1401, %v924
        %v1403 = vpop.permute.xlu0 %1402
        %1406 = vset.pattern.permute.xlu0 0
        %1407 = vperm.xlu0 %1406, %v925
        %v1408 = vpop.permute.xlu0 %1407
        %1411 = vset.pattern.permute.xlu0 0
        %1412 = vperm.xlu0 %1411, %v926
        %v1413 = vpop.permute.xlu0 %1412
        %1416 = vset.pattern.permute.xlu0 0
        %1417 = vperm.xlu0 %1416, %v927
        %v1418 = vpop.permute.xlu0 %1417
        %1421 = vset.pattern.permute.xlu0 0
        %1422 = vperm.xlu0 %1421, %v928
        %v1423 = vpop.permute.xlu0 %1422
        %1426 = vset.pattern.permute.xlu0 0
        %1427 = vperm.xlu0 %1426, %v929
        %v1428 = vpop.permute.xlu0 %1427
        %1431 = vset.pattern.permute.xlu0 0
        %1432 = vperm.xlu0 %1431, %v930
        %v1433 = vpop.permute.xlu0 %1432
        %1436 = vset.pattern.permute.xlu0 0
        %1437 = vperm.xlu0 %1436, %v931
        %v1438 = vpop.permute.xlu0 %1437
        %1441 = vset.pattern.permute.xlu0 0
        %1442 = vperm.xlu0 %1441, %v932
        %v1443 = vpop.permute.xlu0 %1442
        %v1445 = vsel %vm324, %v1288, %v1253
        %v1446 = vsel %vm324, %v1293, %v1254
        %v1447 = vsel %vm324, %v1298, %v1255
        %v1448 = vsel %vm324, %v1303, %v1256
        %v1449 = vsel %vm324, %v1308, %v1257
        %v1450 = vsel %vm324, %v1313, %v1258
        %v1451 = vsel %vm324, %v1318, %v1259
        %v1452 = vsel %vm324, %v1323, %v1260
        %v1453 = vsel %vm324, %v1328, %v1261
        %v1454 = vsel %vm324, %v1333, %v1262
        %v1455 = vsel %vm324, %v1338, %v1263
        %v1456 = vsel %vm324, %v1343, %v1264
        %v1457 = vsel %vm324, %v1348, %v1265
        %v1458 = vsel %vm324, %v1353, %v1266
        %v1459 = vsel %vm324, %v1358, %v1267
        %v1460 = vsel %vm324, %v1363, %v1268
        %v1461 = vsel %vm324, %v1368, %v1269
        %v1462 = vsel %vm324, %v1373, %v1270
        %v1463 = vsel %vm324, %v1378, %v1271
        %v1464 = vsel %vm324, %v1383, %v1272
        %v1465 = vsel %vm324, %v1388, %v1273
        %v1466 = vsel %vm324, %v1393, %v1274
        %v1467 = vsel %vm324, %v1398, %v1275
        %v1468 = vsel %vm324, %v1403, %v1276
        %v1469 = vsel %vm324, %v1408, %v1277
        %v1470 = vsel %vm324, %v1413, %v1278
        %v1471 = vsel %vm324, %v1418, %v1279
        %v1472 = vsel %vm324, %v1423, %v1280
        %v1473 = vsel %vm324, %v1428, %v1281
        %v1474 = vsel %vm324, %v1433, %v1282
        %v1475 = vsel %vm324, %v1438, %v1283
        %v1476 = vsel %vm324, %v1443, %v1284
        %v1477 = vmul.f32 %v289, %v289
        %v1478 = vmul.f32 %v290, %v290
        %v1479 = vmul.f32 %v291, %v291
        %v1480 = vmul.f32 %v292, %v292
        %v1481 = vmul.f32 %v293, %v293
        %v1482 = vmul.f32 %v294, %v294
        %v1483 = vmul.f32 %v295, %v295
        %v1484 = vmul.f32 %v296, %v296
        %v1485 = vmul.f32 %v297, %v297
        %v1486 = vmul.f32 %v298, %v298
        %v1487 = vmul.f32 %v299, %v299
        %v1488 = vmul.f32 %v300, %v300
        %v1489 = vmul.f32 %v301, %v301
        %v1490 = vmul.f32 %v302, %v302
        %v1491 = vmul.f32 %v303, %v303
        %v1492 = vmul.f32 %v304, %v304
        %v1493 = vmul.f32 %v305, %v305
        %v1494 = vmul.f32 %v306, %v306
        %v1495 = vmul.f32 %v307, %v307
        %v1496 = vmul.f32 %v308, %v308
        %v1497 = vmul.f32 %v309, %v309
        %v1498 = vmul.f32 %v310, %v310
        %v1499 = vmul.f32 %v311, %v311
        %v1500 = vmul.f32 %v312, %v312
        %v1501 = vmul.f32 %v313, %v313
        %v1502 = vmul.f32 %v314, %v314
        %v1503 = vmul.f32 %v315, %v315
        %v1504 = vmul.f32 %v316, %v316
        %v1505 = vmul.f32 %v317, %v317
        %v1506 = vmul.f32 %v318, %v318
        %v1507 = vmul.f32 %v319, %v319
        %v1508 = vmul.f32 %v320, %v320
        %1509 = vadd.xlane.f32.xlu0 %v1477
        %v1510 = vpop.xlane.xlu0 %1509
        %1511 = vadd.xlane.f32.xlu0 %v1478
        %v1512 = vpop.xlane.xlu0 %1511
        %1513 = vadd.xlane.f32.xlu0 %v1479
        %v1514 = vpop.xlane.xlu0 %1513
        %1515 = vadd.xlane.f32.xlu0 %v1480
        %v1516 = vpop.xlane.xlu0 %1515
        %1517 = vadd.xlane.f32.xlu0 %v1481
        %v1518 = vpop.xlane.xlu0 %1517
        %1519 = vadd.xlane.f32.xlu0 %v1482
        %v1520 = vpop.xlane.xlu0 %1519
        %1521 = vadd.xlane.f32.xlu0 %v1483
        %v1522 = vpop.xlane.xlu0 %1521
        %1523 = vadd.xlane.f32.xlu0 %v1484
        %v1524 = vpop.xlane.xlu0 %1523
        %1525 = vadd.xlane.f32.xlu0 %v1485
        %v1526 = vpop.xlane.xlu0 %1525
        %1527 = vadd.xlane.f32.xlu0 %v1486
        %v1528 = vpop.xlane.xlu0 %1527
        %1529 = vadd.xlane.f32.xlu0 %v1487
        %v1530 = vpop.xlane.xlu0 %1529
        %1531 = vadd.xlane.f32.xlu0 %v1488
        %v1532 = vpop.xlane.xlu0 %1531
        %1533 = vadd.xlane.f32.xlu0 %v1489
        %v1534 = vpop.xlane.xlu0 %1533
        %1535 = vadd.xlane.f32.xlu0 %v1490
        %v1536 = vpop.xlane.xlu0 %1535
        %1537 = vadd.xlane.f32.xlu0 %v1491
        %v1538 = vpop.xlane.xlu0 %1537
        %1539 = vadd.xlane.f32.xlu0 %v1492
        %v1540 = vpop.xlane.xlu0 %1539
        %1541 = vadd.xlane.f32.xlu0 %v1493
        %v1542 = vpop.xlane.xlu0 %1541
        %1543 = vadd.xlane.f32.xlu0 %v1494
        %v1544 = vpop.xlane.xlu0 %1543
        %1545 = vadd.xlane.f32.xlu0 %v1495
        %v1546 = vpop.xlane.xlu0 %1545
        %1547 = vadd.xlane.f32.xlu0 %v1496
        %v1548 = vpop.xlane.xlu0 %1547
        %1549 = vadd.xlane.f32.xlu0 %v1497
        %v1550 = vpop.xlane.xlu0 %1549
        %1551 = vadd.xlane.f32.xlu0 %v1498
        %v1552 = vpop.xlane.xlu0 %1551
        %1553 = vadd.xlane.f32.xlu0 %v1499
        %v1554 = vpop.xlane.xlu0 %1553
        %1555 = vadd.xlane.f32.xlu0 %v1500
        %v1556 = vpop.xlane.xlu0 %1555
        %1557 = vadd.xlane.f32.xlu0 %v1501
        %v1558 = vpop.xlane.xlu0 %1557
        %1559 = vadd.xlane.f32.xlu0 %v1502
        %v1560 = vpop.xlane.xlu0 %1559
        %1561 = vadd.xlane.f32.xlu0 %v1503
        %v1562 = vpop.xlane.xlu0 %1561
        %1563 = vadd.xlane.f32.xlu0 %v1504
        %v1564 = vpop.xlane.xlu0 %1563
        %1565 = vadd.xlane.f32.xlu0 %v1505
        %v1566 = vpop.xlane.xlu0 %1565
        %1567 = vadd.xlane.f32.xlu0 %v1506
        %v1568 = vpop.xlane.xlu0 %1567
        %1569 = vadd.xlane.f32.xlu0 %v1507
        %v1570 = vpop.xlane.xlu0 %1569
        %1571 = vadd.xlane.f32.xlu0 %v1508
        %v1572 = vpop.xlane.xlu0 %1571
        %v1573 = vsub.f32 %v1510, %v1477
        %v1574 = vsub.f32 %v1512, %v1478
        %v1575 = vsub.f32 %v1514, %v1479
        %v1576 = vsub.f32 %v1516, %v1480
        %v1577 = vsub.f32 %v1518, %v1481
        %v1578 = vsub.f32 %v1520, %v1482
        %v1579 = vsub.f32 %v1522, %v1483
        %v1580 = vsub.f32 %v1524, %v1484
        %v1581 = vsub.f32 %v1526, %v1485
        %v1582 = vsub.f32 %v1528, %v1486
        %v1583 = vsub.f32 %v1530, %v1487
        %v1584 = vsub.f32 %v1532, %v1488
        %v1585 = vsub.f32 %v1534, %v1489
        %v1586 = vsub.f32 %v1536, %v1490
        %v1587 = vsub.f32 %v1538, %v1491
        %v1588 = vsub.f32 %v1540, %v1492
        %v1589 = vsub.f32 %v1542, %v1493
        %v1590 = vsub.f32 %v1544, %v1494
        %v1591 = vsub.f32 %v1546, %v1495
        %v1592 = vsub.f32 %v1548, %v1496
        %v1593 = vsub.f32 %v1550, %v1497
        %v1594 = vsub.f32 %v1552, %v1498
        %v1595 = vsub.f32 %v1554, %v1499
        %v1596 = vsub.f32 %v1556, %v1500
        %v1597 = vsub.f32 %v1558, %v1501
        %v1598 = vsub.f32 %v1560, %v1502
        %v1599 = vsub.f32 %v1562, %v1503
        %v1600 = vsub.f32 %v1564, %v1504
        %v1601 = vsub.f32 %v1566, %v1505
        %v1602 = vsub.f32 %v1568, %v1506
        %v1603 = vsub.f32 %v1570, %v1507
        %v1604 = vsub.f32 %v1572, %v1508
        %v1605 = vmax.f32 %v1573, 0.0
        %v1606 = vmax.f32 %v1574, 0.0
        %v1607 = vmax.f32 %v1575, 0.0
        %v1608 = vmax.f32 %v1576, 0.0
        %v1609 = vmax.f32 %v1577, 0.0
        %v1610 = vmax.f32 %v1578, 0.0
        %v1611 = vmax.f32 %v1579, 0.0
        %v1612 = vmax.f32 %v1580, 0.0
        %v1613 = vmax.f32 %v1581, 0.0
        %v1614 = vmax.f32 %v1582, 0.0
        %v1615 = vmax.f32 %v1583, 0.0
        %v1616 = vmax.f32 %v1584, 0.0
        %v1617 = vmax.f32 %v1585, 0.0
        %v1618 = vmax.f32 %v1586, 0.0
        %v1619 = vmax.f32 %v1587, 0.0
        %v1620 = vmax.f32 %v1588, 0.0
        %v1621 = vmax.f32 %v1589, 0.0
        %v1622 = vmax.f32 %v1590, 0.0
        %v1623 = vmax.f32 %v1591, 0.0
        %v1624 = vmax.f32 %v1592, 0.0
        %v1625 = vmax.f32 %v1593, 0.0
        %v1626 = vmax.f32 %v1594, 0.0
        %v1627 = vmax.f32 %v1595, 0.0
        %v1628 = vmax.f32 %v1596, 0.0
        %v1629 = vmax.f32 %v1597, 0.0
        %v1630 = vmax.f32 %v1598, 0.0
        %v1631 = vmax.f32 %v1599, 0.0
        %v1632 = vmax.f32 %v1600, 0.0
        %v1633 = vmax.f32 %v1601, 0.0
        %v1634 = vmax.f32 %v1602, 0.0
        %v1635 = vmax.f32 %v1603, 0.0
        %v1636 = vmax.f32 %v1604, 0.0
        %v1637 = vrsqrt.pop %v1605
        %v1638 = vmul.f32 %v1605, %v1637
        %vm1639 = vcmp.eq.f32.partialorder %v1605, inf
        %v1640 = vsel %vm1639, %v1605, %v1638
        %vm1641 = vcmp.eq.f32.partialorder %v1605, 0.0
        %v1642 = vand.u32 %v1605, 2147483648
        %v1643 = vsel %vm1641, %v1642, %v1640
        %v1644 = vrsqrt.pop %v1606
        %v1645 = vmul.f32 %v1606, %v1644
        %vm1646 = vcmp.eq.f32.partialorder %v1606, inf
        %v1647 = vsel %vm1646, %v1606, %v1645
        %vm1648 = vcmp.eq.f32.partialorder %v1606, 0.0
        %v1649 = vand.u32 %v1606, 2147483648
        %v1650 = vsel %vm1648, %v1649, %v1647
        %v1651 = vrsqrt.pop %v1607
        %v1652 = vmul.f32 %v1607, %v1651
        %vm1653 = vcmp.eq.f32.partialorder %v1607, inf
        %v1654 = vsel %vm1653, %v1607, %v1652
        %vm1655 = vcmp.eq.f32.partialorder %v1607, 0.0
        %v1656 = vand.u32 %v1607, 2147483648
        %v1657 = vsel %vm1655, %v1656, %v1654
        %v1658 = vrsqrt.pop %v1608
        %v1659 = vmul.f32 %v1608, %v1658
        %vm1660 = vcmp.eq.f32.partialorder %v1608, inf
        %v1661 = vsel %vm1660, %v1608, %v1659
        %vm1662 = vcmp.eq.f32.partialorder %v1608, 0.0
        %v1663 = vand.u32 %v1608, 2147483648
        %v1664 = vsel %vm1662, %v1663, %v1661
        %v1665 = vrsqrt.pop %v1609
        %v1666 = vmul.f32 %v1609, %v1665
        %vm1667 = vcmp.eq.f32.partialorder %v1609, inf
        %v1668 = vsel %vm1667, %v1609, %v1666
        %vm1669 = vcmp.eq.f32.partialorder %v1609, 0.0
        %v1670 = vand.u32 %v1609, 2147483648
        %v1671 = vsel %vm1669, %v1670, %v1668
        %v1672 = vrsqrt.pop %v1610
        %v1673 = vmul.f32 %v1610, %v1672
        %vm1674 = vcmp.eq.f32.partialorder %v1610, inf
        %v1675 = vsel %vm1674, %v1610, %v1673
        %vm1676 = vcmp.eq.f32.partialorder %v1610, 0.0
        %v1677 = vand.u32 %v1610, 2147483648
        %v1678 = vsel %vm1676, %v1677, %v1675
        %v1679 = vrsqrt.pop %v1611
        %v1680 = vmul.f32 %v1611, %v1679
        %vm1681 = vcmp.eq.f32.partialorder %v1611, inf
        %v1682 = vsel %vm1681, %v1611, %v1680
        %vm1683 = vcmp.eq.f32.partialorder %v1611, 0.0
        %v1684 = vand.u32 %v1611, 2147483648
        %v1685 = vsel %vm1683, %v1684, %v1682
        %v1686 = vrsqrt.pop %v1612
        %v1687 = vmul.f32 %v1612, %v1686
        %vm1688 = vcmp.eq.f32.partialorder %v1612, inf
        %v1689 = vsel %vm1688, %v1612, %v1687
        %vm1690 = vcmp.eq.f32.partialorder %v1612, 0.0
        %v1691 = vand.u32 %v1612, 2147483648
        %v1692 = vsel %vm1690, %v1691, %v1689
        %v1693 = vrsqrt.pop %v1613
        %v1694 = vmul.f32 %v1613, %v1693
        %vm1695 = vcmp.eq.f32.partialorder %v1613, inf
        %v1696 = vsel %vm1695, %v1613, %v1694
        %vm1697 = vcmp.eq.f32.partialorder %v1613, 0.0
        %v1698 = vand.u32 %v1613, 2147483648
        %v1699 = vsel %vm1697, %v1698, %v1696
        %v1700 = vrsqrt.pop %v1614
        %v1701 = vmul.f32 %v1614, %v1700
        %vm1702 = vcmp.eq.f32.partialorder %v1614, inf
        %v1703 = vsel %vm1702, %v1614, %v1701
        %vm1704 = vcmp.eq.f32.partialorder %v1614, 0.0
        %v1705 = vand.u32 %v1614, 2147483648
        %v1706 = vsel %vm1704, %v1705, %v1703
        %v1707 = vrsqrt.pop %v1615
        %v1708 = vmul.f32 %v1615, %v1707
        %vm1709 = vcmp.eq.f32.partialorder %v1615, inf
        %v1710 = vsel %vm1709, %v1615, %v1708
        %vm1711 = vcmp.eq.f32.partialorder %v1615, 0.0
        %v1712 = vand.u32 %v1615, 2147483648
        %v1713 = vsel %vm1711, %v1712, %v1710
        %v1714 = vrsqrt.pop %v1616
        %v1715 = vmul.f32 %v1616, %v1714
        %vm1716 = vcmp.eq.f32.partialorder %v1616, inf
        %v1717 = vsel %vm1716, %v1616, %v1715
        %vm1718 = vcmp.eq.f32.partialorder %v1616, 0.0
        %v1719 = vand.u32 %v1616, 2147483648
        %v1720 = vsel %vm1718, %v1719, %v1717
        %v1721 = vrsqrt.pop %v1617
        %v1722 = vmul.f32 %v1617, %v1721
        %vm1723 = vcmp.eq.f32.partialorder %v1617, inf
        %v1724 = vsel %vm1723, %v1617, %v1722
        %vm1725 = vcmp.eq.f32.partialorder %v1617, 0.0
        %v1726 = vand.u32 %v1617, 2147483648
        %v1727 = vsel %vm1725, %v1726, %v1724
        %v1728 = vrsqrt.pop %v1618
        %v1729 = vmul.f32 %v1618, %v1728
        %vm1730 = vcmp.eq.f32.partialorder %v1618, inf
        %v1731 = vsel %vm1730, %v1618, %v1729
        %vm1732 = vcmp.eq.f32.partialorder %v1618, 0.0
        %v1733 = vand.u32 %v1618, 2147483648
        %v1734 = vsel %vm1732, %v1733, %v1731
        %v1735 = vrsqrt.pop %v1619
        %v1736 = vmul.f32 %v1619, %v1735
        %vm1737 = vcmp.eq.f32.partialorder %v1619, inf
        %v1738 = vsel %vm1737, %v1619, %v1736
        %vm1739 = vcmp.eq.f32.partialorder %v1619, 0.0
        %v1740 = vand.u32 %v1619, 2147483648
        %v1741 = vsel %vm1739, %v1740, %v1738
        %v1742 = vrsqrt.pop %v1620
        %v1743 = vmul.f32 %v1620, %v1742
        %vm1744 = vcmp.eq.f32.partialorder %v1620, inf
        %v1745 = vsel %vm1744, %v1620, %v1743
        %vm1746 = vcmp.eq.f32.partialorder %v1620, 0.0
        %v1747 = vand.u32 %v1620, 2147483648
        %v1748 = vsel %vm1746, %v1747, %v1745
        %v1749 = vrsqrt.pop %v1621
        %v1750 = vmul.f32 %v1621, %v1749
        %vm1751 = vcmp.eq.f32.partialorder %v1621, inf
        %v1752 = vsel %vm1751, %v1621, %v1750
        %vm1753 = vcmp.eq.f32.partialorder %v1621, 0.0
        %v1754 = vand.u32 %v1621, 2147483648
        %v1755 = vsel %vm1753, %v1754, %v1752
        %v1756 = vrsqrt.pop %v1622
        %v1757 = vmul.f32 %v1622, %v1756
        %vm1758 = vcmp.eq.f32.partialorder %v1622, inf
        %v1759 = vsel %vm1758, %v1622, %v1757
        %vm1760 = vcmp.eq.f32.partialorder %v1622, 0.0
        %v1761 = vand.u32 %v1622, 2147483648
        %v1762 = vsel %vm1760, %v1761, %v1759
        %v1763 = vrsqrt.pop %v1623
        %v1764 = vmul.f32 %v1623, %v1763
        %vm1765 = vcmp.eq.f32.partialorder %v1623, inf
        %v1766 = vsel %vm1765, %v1623, %v1764
        %vm1767 = vcmp.eq.f32.partialorder %v1623, 0.0
        %v1768 = vand.u32 %v1623, 2147483648
        %v1769 = vsel %vm1767, %v1768, %v1766
        %v1770 = vrsqrt.pop %v1624
        %v1771 = vmul.f32 %v1624, %v1770
        %vm1772 = vcmp.eq.f32.partialorder %v1624, inf
        %v1773 = vsel %vm1772, %v1624, %v1771
        %vm1774 = vcmp.eq.f32.partialorder %v1624, 0.0
        %v1775 = vand.u32 %v1624, 2147483648
        %v1776 = vsel %vm1774, %v1775, %v1773
        %v1777 = vrsqrt.pop %v1625
        %v1778 = vmul.f32 %v1625, %v1777
        %vm1779 = vcmp.eq.f32.partialorder %v1625, inf
        %v1780 = vsel %vm1779, %v1625, %v1778
        %vm1781 = vcmp.eq.f32.partialorder %v1625, 0.0
        %v1782 = vand.u32 %v1625, 2147483648
        %v1783 = vsel %vm1781, %v1782, %v1780
        %v1784 = vrsqrt.pop %v1626
        %v1785 = vmul.f32 %v1626, %v1784
        %vm1786 = vcmp.eq.f32.partialorder %v1626, inf
        %v1787 = vsel %vm1786, %v1626, %v1785
        %vm1788 = vcmp.eq.f32.partialorder %v1626, 0.0
        %v1789 = vand.u32 %v1626, 2147483648
        %v1790 = vsel %vm1788, %v1789, %v1787
        %v1791 = vrsqrt.pop %v1627
        %v1792 = vmul.f32 %v1627, %v1791
        %vm1793 = vcmp.eq.f32.partialorder %v1627, inf
        %v1794 = vsel %vm1793, %v1627, %v1792
        %vm1795 = vcmp.eq.f32.partialorder %v1627, 0.0
        %v1796 = vand.u32 %v1627, 2147483648
        %v1797 = vsel %vm1795, %v1796, %v1794
        %v1798 = vrsqrt.pop %v1628
        %v1799 = vmul.f32 %v1628, %v1798
        %vm1800 = vcmp.eq.f32.partialorder %v1628, inf
        %v1801 = vsel %vm1800, %v1628, %v1799
        %vm1802 = vcmp.eq.f32.partialorder %v1628, 0.0
        %v1803 = vand.u32 %v1628, 2147483648
        %v1804 = vsel %vm1802, %v1803, %v1801
        %v1805 = vrsqrt.pop %v1629
        %v1806 = vmul.f32 %v1629, %v1805
        %vm1807 = vcmp.eq.f32.partialorder %v1629, inf
        %v1808 = vsel %vm1807, %v1629, %v1806
        %vm1809 = vcmp.eq.f32.partialorder %v1629, 0.0
        %v1810 = vand.u32 %v1629, 2147483648
        %v1811 = vsel %vm1809, %v1810, %v1808
        %v1812 = vrsqrt.pop %v1630
        %v1813 = vmul.f32 %v1630, %v1812
        %vm1814 = vcmp.eq.f32.partialorder %v1630, inf
        %v1815 = vsel %vm1814, %v1630, %v1813
        %vm1816 = vcmp.eq.f32.partialorder %v1630, 0.0
        %v1817 = vand.u32 %v1630, 2147483648
        %v1818 = vsel %vm1816, %v1817, %v1815
        %v1819 = vrsqrt.pop %v1631
        %v1820 = vmul.f32 %v1631, %v1819
        %vm1821 = vcmp.eq.f32.partialorder %v1631, inf
        %v1822 = vsel %vm1821, %v1631, %v1820
        %vm1823 = vcmp.eq.f32.partialorder %v1631, 0.0
        %v1824 = vand.u32 %v1631, 2147483648
        %v1825 = vsel %vm1823, %v1824, %v1822
        %v1826 = vrsqrt.pop %v1632
        %v1827 = vmul.f32 %v1632, %v1826
        %vm1828 = vcmp.eq.f32.partialorder %v1632, inf
        %v1829 = vsel %vm1828, %v1632, %v1827
        %vm1830 = vcmp.eq.f32.partialorder %v1632, 0.0
        %v1831 = vand.u32 %v1632, 2147483648
        %v1832 = vsel %vm1830, %v1831, %v1829
        %v1833 = vrsqrt.pop %v1633
        %v1834 = vmul.f32 %v1633, %v1833
        %vm1835 = vcmp.eq.f32.partialorder %v1633, inf
        %v1836 = vsel %vm1835, %v1633, %v1834
        %vm1837 = vcmp.eq.f32.partialorder %v1633, 0.0
        %v1838 = vand.u32 %v1633, 2147483648
        %v1839 = vsel %vm1837, %v1838, %v1836
        %v1840 = vrsqrt.pop %v1634
        %v1841 = vmul.f32 %v1634, %v1840
        %vm1842 = vcmp.eq.f32.partialorder %v1634, inf
        %v1843 = vsel %vm1842, %v1634, %v1841
        %vm1844 = vcmp.eq.f32.partialorder %v1634, 0.0
        %v1845 = vand.u32 %v1634, 2147483648
        %v1846 = vsel %vm1844, %v1845, %v1843
        %v1847 = vrsqrt.pop %v1635
        %v1848 = vmul.f32 %v1635, %v1847
        %vm1849 = vcmp.eq.f32.partialorder %v1635, inf
        %v1850 = vsel %vm1849, %v1635, %v1848
        %vm1851 = vcmp.eq.f32.partialorder %v1635, 0.0
        %v1852 = vand.u32 %v1635, 2147483648
        %v1853 = vsel %vm1851, %v1852, %v1850
        %v1854 = vrsqrt.pop %v1636
        %v1855 = vmul.f32 %v1636, %v1854
        %vm1856 = vcmp.eq.f32.partialorder %v1636, inf
        %v1857 = vsel %vm1856, %v1636, %v1855
        %vm1858 = vcmp.eq.f32.partialorder %v1636, 0.0
        %v1859 = vand.u32 %v1636, 2147483648
        %v1860 = vsel %vm1858, %v1859, %v1857
        %v1861 = vmax.f32 %v1643, 1e-08
        %v1862 = vmax.f32 %v1650, 1e-08
        %v1863 = vmax.f32 %v1657, 1e-08
        %v1864 = vmax.f32 %v1664, 1e-08
        %v1865 = vmax.f32 %v1671, 1e-08
        %v1866 = vmax.f32 %v1678, 1e-08
        %v1867 = vmax.f32 %v1685, 1e-08
        %v1868 = vmax.f32 %v1692, 1e-08
        %v1869 = vmax.f32 %v1699, 1e-08
        %v1870 = vmax.f32 %v1706, 1e-08
        %v1871 = vmax.f32 %v1713, 1e-08
        %v1872 = vmax.f32 %v1720, 1e-08
        %v1873 = vmax.f32 %v1727, 1e-08
        %v1874 = vmax.f32 %v1734, 1e-08
        %v1875 = vmax.f32 %v1741, 1e-08
        %v1876 = vmax.f32 %v1748, 1e-08
        %v1877 = vmax.f32 %v1755, 1e-08
        %v1878 = vmax.f32 %v1762, 1e-08
        %v1879 = vmax.f32 %v1769, 1e-08
        %v1880 = vmax.f32 %v1776, 1e-08
        %v1881 = vmax.f32 %v1783, 1e-08
        %v1882 = vmax.f32 %v1790, 1e-08
        %v1883 = vmax.f32 %v1797, 1e-08
        %v1884 = vmax.f32 %v1804, 1e-08
        %v1885 = vmax.f32 %v1811, 1e-08
        %v1886 = vmax.f32 %v1818, 1e-08
        %v1887 = vmax.f32 %v1825, 1e-08
        %v1888 = vmax.f32 %v1832, 1e-08
        %v1889 = vmax.f32 %v1839, 1e-08
        %v1890 = vmax.f32 %v1846, 1e-08
        %v1891 = vmax.f32 %v1853, 1e-08
        %v1892 = vmax.f32 %v1860, 1e-08
        %v1893 = vmul.f32 %v1643, 1.442695
        %v1894 = vpow.pop %v1893
        %v1895 = vmul.f32 %v1650, 1.442695
        %v1896 = vpow.pop %v1895
        %v1897 = vmul.f32 %v1657, 1.442695
        %v1898 = vpow.pop %v1897
        %v1899 = vmul.f32 %v1664, 1.442695
        %v1900 = vpow.pop %v1899
        %v1901 = vmul.f32 %v1671, 1.442695
        %v1902 = vpow.pop %v1901
        %v1903 = vmul.f32 %v1678, 1.442695
        %v1904 = vpow.pop %v1903
        %v1905 = vmul.f32 %v1685, 1.442695
        %v1906 = vpow.pop %v1905
        %v1907 = vmul.f32 %v1692, 1.442695
        %v1908 = vpow.pop %v1907
        %v1909 = vmul.f32 %v1699, 1.442695
        %v1910 = vpow.pop %v1909
        %v1911 = vmul.f32 %v1706, 1.442695
        %v1912 = vpow.pop %v1911
        %v1913 = vmul.f32 %v1713, 1.442695
        %v1914 = vpow.pop %v1913
        %v1915 = vmul.f32 %v1720, 1.442695
        %v1916 = vpow.pop %v1915
        %v1917 = vmul.f32 %v1727, 1.442695
        %v1918 = vpow.pop %v1917
        %v1919 = vmul.f32 %v1734, 1.442695
        %v1920 = vpow.pop %v1919
        %v1921 = vmul.f32 %v1741, 1.442695
        %v1922 = vpow.pop %v1921
        %v1923 = vmul.f32 %v1748, 1.442695
        %v1924 = vpow.pop %v1923
        %v1925 = vmul.f32 %v1755, 1.442695
        %v1926 = vpow.pop %v1925
        %v1927 = vmul.f32 %v1762, 1.442695
        %v1928 = vpow.pop %v1927
        %v1929 = vmul.f32 %v1769, 1.442695
        %v1930 = vpow.pop %v1929
        %v1931 = vmul.f32 %v1776, 1.442695
        %v1932 = vpow.pop %v1931
        %v1933 = vmul.f32 %v1783, 1.442695
        %v1934 = vpow.pop %v1933
        %v1935 = vmul.f32 %v1790, 1.442695
        %v1936 = vpow.pop %v1935
        %v1937 = vmul.f32 %v1797, 1.442695
        %v1938 = vpow.pop %v1937
        %v1939 = vmul.f32 %v1804, 1.442695
        %v1940 = vpow.pop %v1939
        %v1941 = vmul.f32 %v1811, 1.442695
        %v1942 = vpow.pop %v1941
        %v1943 = vmul.f32 %v1818, 1.442695
        %v1944 = vpow.pop %v1943
        %v1945 = vmul.f32 %v1825, 1.442695
        %v1946 = vpow.pop %v1945
        %v1947 = vmul.f32 %v1832, 1.442695
        %v1948 = vpow.pop %v1947
        %v1949 = vmul.f32 %v1839, 1.442695
        %v1950 = vpow.pop %v1949
        %v1951 = vmul.f32 %v1846, 1.442695
        %v1952 = vpow.pop %v1951
        %v1953 = vmul.f32 %v1853, 1.442695
        %v1954 = vpow.pop %v1953
        %v1955 = vmul.f32 %v1860, 1.442695
        %v1956 = vpow.pop %v1955
        %v1957 = vrcp.pop %v1894
        %v1958 = vmul.f32 1.0, %v1957
        %v1959 = vrcp.pop %v1896
        %v1960 = vmul.f32 1.0, %v1959
        %v1961 = vrcp.pop %v1898
        %v1962 = vmul.f32 1.0, %v1961
        %v1963 = vrcp.pop %v1900
        %v1964 = vmul.f32 1.0, %v1963
        %v1965 = vrcp.pop %v1902
        %v1966 = vmul.f32 1.0, %v1965
        %v1967 = vrcp.pop %v1904
        %v1968 = vmul.f32 1.0, %v1967
        %v1969 = vrcp.pop %v1906
        %v1970 = vmul.f32 1.0, %v1969
        %v1971 = vrcp.pop %v1908
        %v1972 = vmul.f32 1.0, %v1971
        %v1973 = vrcp.pop %v1910
        %v1974 = vmul.f32 1.0, %v1973
        %v1975 = vrcp.pop %v1912
        %v1976 = vmul.f32 1.0, %v1975
        %v1977 = vrcp.pop %v1914
        %v1978 = vmul.f32 1.0, %v1977
        %v1979 = vrcp.pop %v1916
        %v1980 = vmul.f32 1.0, %v1979
        %v1981 = vrcp.pop %v1918
        %v1982 = vmul.f32 1.0, %v1981
        %v1983 = vrcp.pop %v1920
        %v1984 = vmul.f32 1.0, %v1983
        %v1985 = vrcp.pop %v1922
        %v1986 = vmul.f32 1.0, %v1985
        %v1987 = vrcp.pop %v1924
        %v1988 = vmul.f32 1.0, %v1987
        %v1989 = vrcp.pop %v1926
        %v1990 = vmul.f32 1.0, %v1989
        %v1991 = vrcp.pop %v1928
        %v1992 = vmul.f32 1.0, %v1991
        %v1993 = vrcp.pop %v1930
        %v1994 = vmul.f32 1.0, %v1993
        %v1995 = vrcp.pop %v1932
        %v1996 = vmul.f32 1.0, %v1995
        %v1997 = vrcp.pop %v1934
        %v1998 = vmul.f32 1.0, %v1997
        %v1999 = vrcp.pop %v1936
        %v2000 = vmul.f32 1.0, %v1999
        %v2001 = vrcp.pop %v1938
        %v2002 = vmul.f32 1.0, %v2001
        %v2003 = vrcp.pop %v1940
        %v2004 = vmul.f32 1.0, %v2003
        %v2005 = vrcp.pop %v1942
        %v2006 = vmul.f32 1.0, %v2005
        %v2007 = vrcp.pop %v1944
        %v2008 = vmul.f32 1.0, %v2007
        %v2009 = vrcp.pop %v1946
        %v2010 = vmul.f32 1.0, %v2009
        %v2011 = vrcp.pop %v1948
        %v2012 = vmul.f32 1.0, %v2011
        %v2013 = vrcp.pop %v1950
        %v2014 = vmul.f32 1.0, %v2013
        %v2015 = vrcp.pop %v1952
        %v2016 = vmul.f32 1.0, %v2015
        %v2017 = vrcp.pop %v1954
        %v2018 = vmul.f32 1.0, %v2017
        %v2019 = vrcp.pop %v1956
        %v2020 = vmul.f32 1.0, %v2019
        %v2021 = vadd.f32 %v1894, %v1958
        %v2022 = vadd.f32 %v1896, %v1960
        %v2023 = vadd.f32 %v1898, %v1962
        %v2024 = vadd.f32 %v1900, %v1964
        %v2025 = vadd.f32 %v1902, %v1966
        %v2026 = vadd.f32 %v1904, %v1968
        %v2027 = vadd.f32 %v1906, %v1970
        %v2028 = vadd.f32 %v1908, %v1972
        %v2029 = vadd.f32 %v1910, %v1974
        %v2030 = vadd.f32 %v1912, %v1976
        %v2031 = vadd.f32 %v1914, %v1978
        %v2032 = vadd.f32 %v1916, %v1980
        %v2033 = vadd.f32 %v1918, %v1982
        %v2034 = vadd.f32 %v1920, %v1984
        %v2035 = vadd.f32 %v1922, %v1986
        %v2036 = vadd.f32 %v1924, %v1988
        %v2037 = vadd.f32 %v1926, %v1990
        %v2038 = vadd.f32 %v1928, %v1992
        %v2039 = vadd.f32 %v1930, %v1994
        %v2040 = vadd.f32 %v1932, %v1996
        %v2041 = vadd.f32 %v1934, %v1998
        %v2042 = vadd.f32 %v1936, %v2000
        %v2043 = vadd.f32 %v1938, %v2002
        %v2044 = vadd.f32 %v1940, %v2004
        %v2045 = vadd.f32 %v1942, %v2006
        %v2046 = vadd.f32 %v1944, %v2008
        %v2047 = vadd.f32 %v1946, %v2010
        %v2048 = vadd.f32 %v1948, %v2012
        %v2049 = vadd.f32 %v1950, %v2014
        %v2050 = vadd.f32 %v1952, %v2016
        %v2051 = vadd.f32 %v1954, %v2018
        %v2052 = vadd.f32 %v1956, %v2020
        %v2053 = vmul.f32 %v2021, 0.5
        %v2054 = vmul.f32 %v2022, 0.5
        %v2055 = vmul.f32 %v2023, 0.5
        %v2056 = vmul.f32 %v2024, 0.5
        %v2057 = vmul.f32 %v2025, 0.5
        %v2058 = vmul.f32 %v2026, 0.5
        %v2059 = vmul.f32 %v2027, 0.5
        %v2060 = vmul.f32 %v2028, 0.5
        %v2061 = vmul.f32 %v2029, 0.5
        %v2062 = vmul.f32 %v2030, 0.5
        %v2063 = vmul.f32 %v2031, 0.5
        %v2064 = vmul.f32 %v2032, 0.5
        %v2065 = vmul.f32 %v2033, 0.5
        %v2066 = vmul.f32 %v2034, 0.5
        %v2067 = vmul.f32 %v2035, 0.5
        %v2068 = vmul.f32 %v2036, 0.5
        %v2069 = vmul.f32 %v2037, 0.5
        %v2070 = vmul.f32 %v2038, 0.5
        %v2071 = vmul.f32 %v2039, 0.5
        %v2072 = vmul.f32 %v2040, 0.5
        %v2073 = vmul.f32 %v2041, 0.5
        %v2074 = vmul.f32 %v2042, 0.5
        %v2075 = vmul.f32 %v2043, 0.5
        %v2076 = vmul.f32 %v2044, 0.5
        %v2077 = vmul.f32 %v2045, 0.5
        %v2078 = vmul.f32 %v2046, 0.5
        %v2079 = vmul.f32 %v2047, 0.5
        %v2080 = vmul.f32 %v2048, 0.5
        %v2081 = vmul.f32 %v2049, 0.5
        %v2082 = vmul.f32 %v2050, 0.5
        %v2083 = vmul.f32 %v2051, 0.5
        %v2084 = vmul.f32 %v2052, 0.5
        %v2085 = vsub.f32 %v1894, %v1958
        %v2086 = vsub.f32 %v1896, %v1960
        %v2087 = vsub.f32 %v1898, %v1962
        %v2088 = vsub.f32 %v1900, %v1964
        %v2089 = vsub.f32 %v1902, %v1966
        %v2090 = vsub.f32 %v1904, %v1968
        %v2091 = vsub.f32 %v1906, %v1970
        %v2092 = vsub.f32 %v1908, %v1972
        %v2093 = vsub.f32 %v1910, %v1974
        %v2094 = vsub.f32 %v1912, %v1976
        %v2095 = vsub.f32 %v1914, %v1978
        %v2096 = vsub.f32 %v1916, %v1980
        %v2097 = vsub.f32 %v1918, %v1982
        %v2098 = vsub.f32 %v1920, %v1984
        %v2099 = vsub.f32 %v1922, %v1986
        %v2100 = vsub.f32 %v1924, %v1988
        %v2101 = vsub.f32 %v1926, %v1990
        %v2102 = vsub.f32 %v1928, %v1992
        %v2103 = vsub.f32 %v1930, %v1994
        %v2104 = vsub.f32 %v1932, %v1996
        %v2105 = vsub.f32 %v1934, %v1998
        %v2106 = vsub.f32 %v1936, %v2000
        %v2107 = vsub.f32 %v1938, %v2002
        %v2108 = vsub.f32 %v1940, %v2004
        %v2109 = vsub.f32 %v1942, %v2006
        %v2110 = vsub.f32 %v1944, %v2008
        %v2111 = vsub.f32 %v1946, %v2010
        %v2112 = vsub.f32 %v1948, %v2012
        %v2113 = vsub.f32 %v1950, %v2014
        %v2114 = vsub.f32 %v1952, %v2016
        %v2115 = vsub.f32 %v1954, %v2018
        %v2116 = vsub.f32 %v1956, %v2020
        %v2117 = vmul.f32 %v2085, 0.5
        %v2118 = vmul.f32 %v2086, 0.5
        %v2119 = vmul.f32 %v2087, 0.5
        %v2120 = vmul.f32 %v2088, 0.5
        %v2121 = vmul.f32 %v2089, 0.5
        %v2122 = vmul.f32 %v2090, 0.5
        %v2123 = vmul.f32 %v2091, 0.5
        %v2124 = vmul.f32 %v2092, 0.5
        %v2125 = vmul.f32 %v2093, 0.5
        %v2126 = vmul.f32 %v2094, 0.5
        %v2127 = vmul.f32 %v2095, 0.5
        %v2128 = vmul.f32 %v2096, 0.5
        %v2129 = vmul.f32 %v2097, 0.5
        %v2130 = vmul.f32 %v2098, 0.5
        %v2131 = vmul.f32 %v2099, 0.5
        %v2132 = vmul.f32 %v2100, 0.5
        %v2133 = vmul.f32 %v2101, 0.5
        %v2134 = vmul.f32 %v2102, 0.5
        %v2135 = vmul.f32 %v2103, 0.5
        %v2136 = vmul.f32 %v2104, 0.5
        %v2137 = vmul.f32 %v2105, 0.5
        %v2138 = vmul.f32 %v2106, 0.5
        %v2139 = vmul.f32 %v2107, 0.5
        %v2140 = vmul.f32 %v2108, 0.5
        %v2141 = vmul.f32 %v2109, 0.5
        %v2142 = vmul.f32 %v2110, 0.5
        %v2143 = vmul.f32 %v2111, 0.5
        %v2144 = vmul.f32 %v2112, 0.5
        %v2145 = vmul.f32 %v2113, 0.5
        %v2146 = vmul.f32 %v2114, 0.5
        %v2147 = vmul.f32 %v2115, 0.5
        %v2148 = vmul.f32 %v2116, 0.5
        %v2149 = vrcp.pop %v1861
        %v2150 = vmul.f32 1.0, %v2149
        %v2151 = vrcp.pop %v1862
        %v2152 = vmul.f32 1.0, %v2151
        %v2153 = vrcp.pop %v1863
        %v2154 = vmul.f32 1.0, %v2153
        %v2155 = vrcp.pop %v1864
        %v2156 = vmul.f32 1.0, %v2155
        %v2157 = vrcp.pop %v1865
        %v2158 = vmul.f32 1.0, %v2157
        %v2159 = vrcp.pop %v1866
        %v2160 = vmul.f32 1.0, %v2159
        %v2161 = vrcp.pop %v1867
        %v2162 = vmul.f32 1.0, %v2161
        %v2163 = vrcp.pop %v1868
        %v2164 = vmul.f32 1.0, %v2163
        %v2165 = vrcp.pop %v1869
        %v2166 = vmul.f32 1.0, %v2165
        %v2167 = vrcp.pop %v1870
        %v2168 = vmul.f32 1.0, %v2167
        %v2169 = vrcp.pop %v1871
        %v2170 = vmul.f32 1.0, %v2169
        %v2171 = vrcp.pop %v1872
        %v2172 = vmul.f32 1.0, %v2171
        %v2173 = vrcp.pop %v1873
        %v2174 = vmul.f32 1.0, %v2173
        %v2175 = vrcp.pop %v1874
        %v2176 = vmul.f32 1.0, %v2175
        %v2177 = vrcp.pop %v1875
        %v2178 = vmul.f32 1.0, %v2177
        %v2179 = vrcp.pop %v1876
        %v2180 = vmul.f32 1.0, %v2179
        %v2181 = vrcp.pop %v1877
        %v2182 = vmul.f32 1.0, %v2181
        %v2183 = vrcp.pop %v1878
        %v2184 = vmul.f32 1.0, %v2183
        %v2185 = vrcp.pop %v1879
        %v2186 = vmul.f32 1.0, %v2185
        %v2187 = vrcp.pop %v1880
        %v2188 = vmul.f32 1.0, %v2187
        %v2189 = vrcp.pop %v1881
        %v2190 = vmul.f32 1.0, %v2189
        %v2191 = vrcp.pop %v1882
        %v2192 = vmul.f32 1.0, %v2191
        %v2193 = vrcp.pop %v1883
        %v2194 = vmul.f32 1.0, %v2193
        %v2195 = vrcp.pop %v1884
        %v2196 = vmul.f32 1.0, %v2195
        %v2197 = vrcp.pop %v1885
        %v2198 = vmul.f32 1.0, %v2197
        %v2199 = vrcp.pop %v1886
        %v2200 = vmul.f32 1.0, %v2199
        %v2201 = vrcp.pop %v1887
        %v2202 = vmul.f32 1.0, %v2201
        %v2203 = vrcp.pop %v1888
        %v2204 = vmul.f32 1.0, %v2203
        %v2205 = vrcp.pop %v1889
        %v2206 = vmul.f32 1.0, %v2205
        %v2207 = vrcp.pop %v1890
        %v2208 = vmul.f32 1.0, %v2207
        %v2209 = vrcp.pop %v1891
        %v2210 = vmul.f32 1.0, %v2209
        %v2211 = vrcp.pop %v1892
        %v2212 = vmul.f32 1.0, %v2211
        %v2213 = vmul.f32 %v2117, %v2150
        %v2214 = vmul.f32 %v2118, %v2152
        %v2215 = vmul.f32 %v2119, %v2154
        %v2216 = vmul.f32 %v2120, %v2156
        %v2217 = vmul.f32 %v2121, %v2158
        %v2218 = vmul.f32 %v2122, %v2160
        %v2219 = vmul.f32 %v2123, %v2162
        %v2220 = vmul.f32 %v2124, %v2164
        %v2221 = vmul.f32 %v2125, %v2166
        %v2222 = vmul.f32 %v2126, %v2168
        %v2223 = vmul.f32 %v2127, %v2170
        %v2224 = vmul.f32 %v2128, %v2172
        %v2225 = vmul.f32 %v2129, %v2174
        %v2226 = vmul.f32 %v2130, %v2176
        %v2227 = vmul.f32 %v2131, %v2178
        %v2228 = vmul.f32 %v2132, %v2180
        %v2229 = vmul.f32 %v2133, %v2182
        %v2230 = vmul.f32 %v2134, %v2184
        %v2231 = vmul.f32 %v2135, %v2186
        %v2232 = vmul.f32 %v2136, %v2188
        %v2233 = vmul.f32 %v2137, %v2190
        %v2234 = vmul.f32 %v2138, %v2192
        %v2235 = vmul.f32 %v2139, %v2194
        %v2236 = vmul.f32 %v2140, %v2196
        %v2237 = vmul.f32 %v2141, %v2198
        %v2238 = vmul.f32 %v2142, %v2200
        %v2239 = vmul.f32 %v2143, %v2202
        %v2240 = vmul.f32 %v2144, %v2204
        %v2241 = vmul.f32 %v2145, %v2206
        %v2242 = vmul.f32 %v2146, %v2208
        %v2243 = vmul.f32 %v2147, %v2210
        %v2244 = vmul.f32 %v2148, %v2212
        %2246 = vset.pattern.permute.xlu0 0
        %2247 = vperm.xlu0 %2246, %v2213
        %v2248 = vpop.permute.xlu0 %2247
        %2251 = vset.pattern.permute.xlu0 0
        %2252 = vperm.xlu0 %2251, %v2214
        %v2253 = vpop.permute.xlu0 %2252
        %2256 = vset.pattern.permute.xlu0 0
        %2257 = vperm.xlu0 %2256, %v2215
        %v2258 = vpop.permute.xlu0 %2257
        %2261 = vset.pattern.permute.xlu0 0
        %2262 = vperm.xlu0 %2261, %v2216
        %v2263 = vpop.permute.xlu0 %2262
        %2266 = vset.pattern.permute.xlu0 0
        %2267 = vperm.xlu0 %2266, %v2217
        %v2268 = vpop.permute.xlu0 %2267
        %2271 = vset.pattern.permute.xlu0 0
        %2272 = vperm.xlu0 %2271, %v2218
        %v2273 = vpop.permute.xlu0 %2272
        %2276 = vset.pattern.permute.xlu0 0
        %2277 = vperm.xlu0 %2276, %v2219
        %v2278 = vpop.permute.xlu0 %2277
        %2281 = vset.pattern.permute.xlu0 0
        %2282 = vperm.xlu0 %2281, %v2220
        %v2283 = vpop.permute.xlu0 %2282
        %2286 = vset.pattern.permute.xlu0 0
        %2287 = vperm.xlu0 %2286, %v2221
        %v2288 = vpop.permute.xlu0 %2287
        %2291 = vset.pattern.permute.xlu0 0
        %2292 = vperm.xlu0 %2291, %v2222
        %v2293 = vpop.permute.xlu0 %2292
        %2296 = vset.pattern.permute.xlu0 0
        %2297 = vperm.xlu0 %2296, %v2223
        %v2298 = vpop.permute.xlu0 %2297
        %2301 = vset.pattern.permute.xlu0 0
        %2302 = vperm.xlu0 %2301, %v2224
        %v2303 = vpop.permute.xlu0 %2302
        %2306 = vset.pattern.permute.xlu0 0
        %2307 = vperm.xlu0 %2306, %v2225
        %v2308 = vpop.permute.xlu0 %2307
        %2311 = vset.pattern.permute.xlu0 0
        %2312 = vperm.xlu0 %2311, %v2226
        %v2313 = vpop.permute.xlu0 %2312
        %2316 = vset.pattern.permute.xlu0 0
        %2317 = vperm.xlu0 %2316, %v2227
        %v2318 = vpop.permute.xlu0 %2317
        %2321 = vset.pattern.permute.xlu0 0
        %2322 = vperm.xlu0 %2321, %v2228
        %v2323 = vpop.permute.xlu0 %2322
        %2326 = vset.pattern.permute.xlu0 0
        %2327 = vperm.xlu0 %2326, %v2229
        %v2328 = vpop.permute.xlu0 %2327
        %2331 = vset.pattern.permute.xlu0 0
        %2332 = vperm.xlu0 %2331, %v2230
        %v2333 = vpop.permute.xlu0 %2332
        %2336 = vset.pattern.permute.xlu0 0
        %2337 = vperm.xlu0 %2336, %v2231
        %v2338 = vpop.permute.xlu0 %2337
        %2341 = vset.pattern.permute.xlu0 0
        %2342 = vperm.xlu0 %2341, %v2232
        %v2343 = vpop.permute.xlu0 %2342
        %2346 = vset.pattern.permute.xlu0 0
        %2347 = vperm.xlu0 %2346, %v2233
        %v2348 = vpop.permute.xlu0 %2347
        %2351 = vset.pattern.permute.xlu0 0
        %2352 = vperm.xlu0 %2351, %v2234
        %v2353 = vpop.permute.xlu0 %2352
        %2356 = vset.pattern.permute.xlu0 0
        %2357 = vperm.xlu0 %2356, %v2235
        %v2358 = vpop.permute.xlu0 %2357
        %2361 = vset.pattern.permute.xlu0 0
        %2362 = vperm.xlu0 %2361, %v2236
        %v2363 = vpop.permute.xlu0 %2362
        %2366 = vset.pattern.permute.xlu0 0
        %2367 = vperm.xlu0 %2366, %v2237
        %v2368 = vpop.permute.xlu0 %2367
        %2371 = vset.pattern.permute.xlu0 0
        %2372 = vperm.xlu0 %2371, %v2238
        %v2373 = vpop.permute.xlu0 %2372
        %2376 = vset.pattern.permute.xlu0 0
        %2377 = vperm.xlu0 %2376, %v2239
        %v2378 = vpop.permute.xlu0 %2377
        %2381 = vset.pattern.permute.xlu0 0
        %2382 = vperm.xlu0 %2381, %v2240
        %v2383 = vpop.permute.xlu0 %2382
        %2386 = vset.pattern.permute.xlu0 0
        %2387 = vperm.xlu0 %2386, %v2241
        %v2388 = vpop.permute.xlu0 %2387
        %2391 = vset.pattern.permute.xlu0 0
        %2392 = vperm.xlu0 %2391, %v2242
        %v2393 = vpop.permute.xlu0 %2392
        %2396 = vset.pattern.permute.xlu0 0
        %2397 = vperm.xlu0 %2396, %v2243
        %v2398 = vpop.permute.xlu0 %2397
        %2401 = vset.pattern.permute.xlu0 0
        %2402 = vperm.xlu0 %2401, %v2244
        %v2403 = vpop.permute.xlu0 %2402
        %v2405 = vmul.f32 %v2248, %v289
        %v2406 = vmul.f32 %v2253, %v290
        %v2407 = vmul.f32 %v2258, %v291
        %v2408 = vmul.f32 %v2263, %v292
        %v2409 = vmul.f32 %v2268, %v293
        %v2410 = vmul.f32 %v2273, %v294
        %v2411 = vmul.f32 %v2278, %v295
        %v2412 = vmul.f32 %v2283, %v296
        %v2413 = vmul.f32 %v2288, %v297
        %v2414 = vmul.f32 %v2293, %v298
        %v2415 = vmul.f32 %v2298, %v299
        %v2416 = vmul.f32 %v2303, %v300
        %v2417 = vmul.f32 %v2308, %v301
        %v2418 = vmul.f32 %v2313, %v302
        %v2419 = vmul.f32 %v2318, %v303
        %v2420 = vmul.f32 %v2323, %v304
        %v2421 = vmul.f32 %v2328, %v305
        %v2422 = vmul.f32 %v2333, %v306
        %v2423 = vmul.f32 %v2338, %v307
        %v2424 = vmul.f32 %v2343, %v308
        %v2425 = vmul.f32 %v2348, %v309
        %v2426 = vmul.f32 %v2353, %v310
        %v2427 = vmul.f32 %v2358, %v311
        %v2428 = vmul.f32 %v2363, %v312
        %v2429 = vmul.f32 %v2368, %v313
        %v2430 = vmul.f32 %v2373, %v314
        %v2431 = vmul.f32 %v2378, %v315
        %v2432 = vmul.f32 %v2383, %v316
        %v2433 = vmul.f32 %v2388, %v317
        %v2434 = vmul.f32 %v2393, %v318
        %v2435 = vmul.f32 %v2398, %v319
        %v2436 = vmul.f32 %v2403, %v320
        %2438 = vset.pattern.permute.xlu0 0
        %2439 = vperm.xlu0 %2438, %v2053
        %v2440 = vpop.permute.xlu0 %2439
        %2443 = vset.pattern.permute.xlu0 0
        %2444 = vperm.xlu0 %2443, %v2054
        %v2445 = vpop.permute.xlu0 %2444
        %2448 = vset.pattern.permute.xlu0 0
        %2449 = vperm.xlu0 %2448, %v2055
        %v2450 = vpop.permute.xlu0 %2449
        %2453 = vset.pattern.permute.xlu0 0
        %2454 = vperm.xlu0 %2453, %v2056
        %v2455 = vpop.permute.xlu0 %2454
        %2458 = vset.pattern.permute.xlu0 0
        %2459 = vperm.xlu0 %2458, %v2057
        %v2460 = vpop.permute.xlu0 %2459
        %2463 = vset.pattern.permute.xlu0 0
        %2464 = vperm.xlu0 %2463, %v2058
        %v2465 = vpop.permute.xlu0 %2464
        %2468 = vset.pattern.permute.xlu0 0
        %2469 = vperm.xlu0 %2468, %v2059
        %v2470 = vpop.permute.xlu0 %2469
        %2473 = vset.pattern.permute.xlu0 0
        %2474 = vperm.xlu0 %2473, %v2060
        %v2475 = vpop.permute.xlu0 %2474
        %2478 = vset.pattern.permute.xlu0 0
        %2479 = vperm.xlu0 %2478, %v2061
        %v2480 = vpop.permute.xlu0 %2479
        %2483 = vset.pattern.permute.xlu0 0
        %2484 = vperm.xlu0 %2483, %v2062
        %v2485 = vpop.permute.xlu0 %2484
        %2488 = vset.pattern.permute.xlu0 0
        %2489 = vperm.xlu0 %2488, %v2063
        %v2490 = vpop.permute.xlu0 %2489
        %2493 = vset.pattern.permute.xlu0 0
        %2494 = vperm.xlu0 %2493, %v2064
        %v2495 = vpop.permute.xlu0 %2494
        %2498 = vset.pattern.permute.xlu0 0
        %2499 = vperm.xlu0 %2498, %v2065
        %v2500 = vpop.permute.xlu0 %2499
        %2503 = vset.pattern.permute.xlu0 0
        %2504 = vperm.xlu0 %2503, %v2066
        %v2505 = vpop.permute.xlu0 %2504
        %2508 = vset.pattern.permute.xlu0 0
        %2509 = vperm.xlu0 %2508, %v2067
        %v2510 = vpop.permute.xlu0 %2509
        %2513 = vset.pattern.permute.xlu0 0
        %2514 = vperm.xlu0 %2513, %v2068
        %v2515 = vpop.permute.xlu0 %2514
        %2518 = vset.pattern.permute.xlu0 0
        %2519 = vperm.xlu0 %2518, %v2069
        %v2520 = vpop.permute.xlu0 %2519
        %2523 = vset.pattern.permute.xlu0 0
        %2524 = vperm.xlu0 %2523, %v2070
        %v2525 = vpop.permute.xlu0 %2524
        %2528 = vset.pattern.permute.xlu0 0
        %2529 = vperm.xlu0 %2528, %v2071
        %v2530 = vpop.permute.xlu0 %2529
        %2533 = vset.pattern.permute.xlu0 0
        %2534 = vperm.xlu0 %2533, %v2072
        %v2535 = vpop.permute.xlu0 %2534
        %2538 = vset.pattern.permute.xlu0 0
        %2539 = vperm.xlu0 %2538, %v2073
        %v2540 = vpop.permute.xlu0 %2539
        %2543 = vset.pattern.permute.xlu0 0
        %2544 = vperm.xlu0 %2543, %v2074
        %v2545 = vpop.permute.xlu0 %2544
        %2548 = vset.pattern.permute.xlu0 0
        %2549 = vperm.xlu0 %2548, %v2075
        %v2550 = vpop.permute.xlu0 %2549
        %2553 = vset.pattern.permute.xlu0 0
        %2554 = vperm.xlu0 %2553, %v2076
        %v2555 = vpop.permute.xlu0 %2554
        %2558 = vset.pattern.permute.xlu0 0
        %2559 = vperm.xlu0 %2558, %v2077
        %v2560 = vpop.permute.xlu0 %2559
        %2563 = vset.pattern.permute.xlu0 0
        %2564 = vperm.xlu0 %2563, %v2078
        %v2565 = vpop.permute.xlu0 %2564
        %2568 = vset.pattern.permute.xlu0 0
        %2569 = vperm.xlu0 %2568, %v2079
        %v2570 = vpop.permute.xlu0 %2569
        %2573 = vset.pattern.permute.xlu0 0
        %2574 = vperm.xlu0 %2573, %v2080
        %v2575 = vpop.permute.xlu0 %2574
        %2578 = vset.pattern.permute.xlu0 0
        %2579 = vperm.xlu0 %2578, %v2081
        %v2580 = vpop.permute.xlu0 %2579
        %2583 = vset.pattern.permute.xlu0 0
        %2584 = vperm.xlu0 %2583, %v2082
        %v2585 = vpop.permute.xlu0 %2584
        %2588 = vset.pattern.permute.xlu0 0
        %2589 = vperm.xlu0 %2588, %v2083
        %v2590 = vpop.permute.xlu0 %2589
        %2593 = vset.pattern.permute.xlu0 0
        %2594 = vperm.xlu0 %2593, %v2084
        %v2595 = vpop.permute.xlu0 %2594
        %v2597 = vsel %vm324, %v2440, %v2405
        %v2598 = vsel %vm324, %v2445, %v2406
        %v2599 = vsel %vm324, %v2450, %v2407
        %v2600 = vsel %vm324, %v2455, %v2408
        %v2601 = vsel %vm324, %v2460, %v2409
        %v2602 = vsel %vm324, %v2465, %v2410
        %v2603 = vsel %vm324, %v2470, %v2411
        %v2604 = vsel %vm324, %v2475, %v2412
        %v2605 = vsel %vm324, %v2480, %v2413
        %v2606 = vsel %vm324, %v2485, %v2414
        %v2607 = vsel %vm324, %v2490, %v2415
        %v2608 = vsel %vm324, %v2495, %v2416
        %v2609 = vsel %vm324, %v2500, %v2417
        %v2610 = vsel %vm324, %v2505, %v2418
        %v2611 = vsel %vm324, %v2510, %v2419
        %v2612 = vsel %vm324, %v2515, %v2420
        %v2613 = vsel %vm324, %v2520, %v2421
        %v2614 = vsel %vm324, %v2525, %v2422
        %v2615 = vsel %vm324, %v2530, %v2423
        %v2616 = vsel %vm324, %v2535, %v2424
        %v2617 = vsel %vm324, %v2540, %v2425
        %v2618 = vsel %vm324, %v2545, %v2426
        %v2619 = vsel %vm324, %v2550, %v2427
        %v2620 = vsel %vm324, %v2555, %v2428
        %v2621 = vsel %vm324, %v2560, %v2429
        %v2622 = vsel %vm324, %v2565, %v2430
        %v2623 = vsel %vm324, %v2570, %v2431
        %v2624 = vsel %vm324, %v2575, %v2432
        %v2625 = vsel %vm324, %v2580, %v2433
        %v2626 = vsel %vm324, %v2585, %v2434
        %v2627 = vsel %vm324, %v2590, %v2435
        %v2628 = vsel %vm324, %v2595, %v2436
        %v2629 = vmul.f32 %v1445, %v2597
        %v2630 = vmul.f32 %v1446, %v2598
        %v2631 = vmul.f32 %v1447, %v2599
        %v2632 = vmul.f32 %v1448, %v2600
        %v2633 = vmul.f32 %v1449, %v2601
        %v2634 = vmul.f32 %v1450, %v2602
        %v2635 = vmul.f32 %v1451, %v2603
        %v2636 = vmul.f32 %v1452, %v2604
        %v2637 = vmul.f32 %v1453, %v2605
        %v2638 = vmul.f32 %v1454, %v2606
        %v2639 = vmul.f32 %v1455, %v2607
        %v2640 = vmul.f32 %v1456, %v2608
        %v2641 = vmul.f32 %v1457, %v2609
        %v2642 = vmul.f32 %v1458, %v2610
        %v2643 = vmul.f32 %v1459, %v2611
        %v2644 = vmul.f32 %v1460, %v2612
        %v2645 = vmul.f32 %v1461, %v2613
        %v2646 = vmul.f32 %v1462, %v2614
        %v2647 = vmul.f32 %v1463, %v2615
        %v2648 = vmul.f32 %v1464, %v2616
        %v2649 = vmul.f32 %v1465, %v2617
        %v2650 = vmul.f32 %v1466, %v2618
        %v2651 = vmul.f32 %v1467, %v2619
        %v2652 = vmul.f32 %v1468, %v2620
        %v2653 = vmul.f32 %v1469, %v2621
        %v2654 = vmul.f32 %v1470, %v2622
        %v2655 = vmul.f32 %v1471, %v2623
        %v2656 = vmul.f32 %v1472, %v2624
        %v2657 = vmul.f32 %v1473, %v2625
        %v2658 = vmul.f32 %v1474, %v2626
        %v2659 = vmul.f32 %v1475, %v2627
        %v2660 = vmul.f32 %v1476, %v2628
        %2661 = vadd.xlane.f32.xlu0 %v2629
        %v2662 = vpop.xlane.xlu0 %2661
        %2663 = vadd.xlane.f32.xlu0 %v2630
        %v2664 = vpop.xlane.xlu0 %2663
        %2665 = vadd.xlane.f32.xlu0 %v2631
        %v2666 = vpop.xlane.xlu0 %2665
        %2667 = vadd.xlane.f32.xlu0 %v2632
        %v2668 = vpop.xlane.xlu0 %2667
        %2669 = vadd.xlane.f32.xlu0 %v2633
        %v2670 = vpop.xlane.xlu0 %2669
        %2671 = vadd.xlane.f32.xlu0 %v2634
        %v2672 = vpop.xlane.xlu0 %2671
        %2673 = vadd.xlane.f32.xlu0 %v2635
        %v2674 = vpop.xlane.xlu0 %2673
        %2675 = vadd.xlane.f32.xlu0 %v2636
        %v2676 = vpop.xlane.xlu0 %2675
        %2677 = vadd.xlane.f32.xlu0 %v2637
        %v2678 = vpop.xlane.xlu0 %2677
        %2679 = vadd.xlane.f32.xlu0 %v2638
        %v2680 = vpop.xlane.xlu0 %2679
        %2681 = vadd.xlane.f32.xlu0 %v2639
        %v2682 = vpop.xlane.xlu0 %2681
        %2683 = vadd.xlane.f32.xlu0 %v2640
        %v2684 = vpop.xlane.xlu0 %2683
        %2685 = vadd.xlane.f32.xlu0 %v2641
        %v2686 = vpop.xlane.xlu0 %2685
        %2687 = vadd.xlane.f32.xlu0 %v2642
        %v2688 = vpop.xlane.xlu0 %2687
        %2689 = vadd.xlane.f32.xlu0 %v2643
        %v2690 = vpop.xlane.xlu0 %2689
        %2691 = vadd.xlane.f32.xlu0 %v2644
        %v2692 = vpop.xlane.xlu0 %2691
        %2693 = vadd.xlane.f32.xlu0 %v2645
        %v2694 = vpop.xlane.xlu0 %2693
        %2695 = vadd.xlane.f32.xlu0 %v2646
        %v2696 = vpop.xlane.xlu0 %2695
        %2697 = vadd.xlane.f32.xlu0 %v2647
        %v2698 = vpop.xlane.xlu0 %2697
        %2699 = vadd.xlane.f32.xlu0 %v2648
        %v2700 = vpop.xlane.xlu0 %2699
        %2701 = vadd.xlane.f32.xlu0 %v2649
        %v2702 = vpop.xlane.xlu0 %2701
        %2703 = vadd.xlane.f32.xlu0 %v2650
        %v2704 = vpop.xlane.xlu0 %2703
        %2705 = vadd.xlane.f32.xlu0 %v2651
        %v2706 = vpop.xlane.xlu0 %2705
        %2707 = vadd.xlane.f32.xlu0 %v2652
        %v2708 = vpop.xlane.xlu0 %2707
        %2709 = vadd.xlane.f32.xlu0 %v2653
        %v2710 = vpop.xlane.xlu0 %2709
        %2711 = vadd.xlane.f32.xlu0 %v2654
        %v2712 = vpop.xlane.xlu0 %2711
        %2713 = vadd.xlane.f32.xlu0 %v2655
        %v2714 = vpop.xlane.xlu0 %2713
        %2715 = vadd.xlane.f32.xlu0 %v2656
        %v2716 = vpop.xlane.xlu0 %2715
        %2717 = vadd.xlane.f32.xlu0 %v2657
        %v2718 = vpop.xlane.xlu0 %2717
        %2719 = vadd.xlane.f32.xlu0 %v2658
        %v2720 = vpop.xlane.xlu0 %2719
        %2721 = vadd.xlane.f32.xlu0 %v2659
        %v2722 = vpop.xlane.xlu0 %2721
        %2723 = vadd.xlane.f32.xlu0 %v2660
        %v2724 = vpop.xlane.xlu0 %2723
        %v2725 = vmul.f32 %v901, 2.0
        %v2726 = vmul.f32 %v902, 2.0
        %v2727 = vmul.f32 %v903, 2.0
        %v2728 = vmul.f32 %v904, 2.0
        %v2729 = vmul.f32 %v905, 2.0
        %v2730 = vmul.f32 %v906, 2.0
        %v2731 = vmul.f32 %v907, 2.0
        %v2732 = vmul.f32 %v908, 2.0
        %v2733 = vmul.f32 %v909, 2.0
        %v2734 = vmul.f32 %v910, 2.0
        %v2735 = vmul.f32 %v911, 2.0
        %v2736 = vmul.f32 %v912, 2.0
        %v2737 = vmul.f32 %v913, 2.0
        %v2738 = vmul.f32 %v914, 2.0
        %v2739 = vmul.f32 %v915, 2.0
        %v2740 = vmul.f32 %v916, 2.0
        %v2741 = vmul.f32 %v917, 2.0
        %v2742 = vmul.f32 %v918, 2.0
        %v2743 = vmul.f32 %v919, 2.0
        %v2744 = vmul.f32 %v920, 2.0
        %v2745 = vmul.f32 %v921, 2.0
        %v2746 = vmul.f32 %v922, 2.0
        %v2747 = vmul.f32 %v923, 2.0
        %v2748 = vmul.f32 %v924, 2.0
        %v2749 = vmul.f32 %v925, 2.0
        %v2750 = vmul.f32 %v926, 2.0
        %v2751 = vmul.f32 %v927, 2.0
        %v2752 = vmul.f32 %v928, 2.0
        %v2753 = vmul.f32 %v929, 2.0
        %v2754 = vmul.f32 %v930, 2.0
        %v2755 = vmul.f32 %v931, 2.0
        %v2756 = vmul.f32 %v932, 2.0
        %v2757 = vmul.f32 %v2725, %v2053
        %v2758 = vmul.f32 %v2726, %v2054
        %v2759 = vmul.f32 %v2727, %v2055
        %v2760 = vmul.f32 %v2728, %v2056
        %v2761 = vmul.f32 %v2729, %v2057
        %v2762 = vmul.f32 %v2730, %v2058
        %v2763 = vmul.f32 %v2731, %v2059
        %v2764 = vmul.f32 %v2732, %v2060
        %v2765 = vmul.f32 %v2733, %v2061
        %v2766 = vmul.f32 %v2734, %v2062
        %v2767 = vmul.f32 %v2735, %v2063
        %v2768 = vmul.f32 %v2736, %v2064
        %v2769 = vmul.f32 %v2737, %v2065
        %v2770 = vmul.f32 %v2738, %v2066
        %v2771 = vmul.f32 %v2739, %v2067
        %v2772 = vmul.f32 %v2740, %v2068
        %v2773 = vmul.f32 %v2741, %v2069
        %v2774 = vmul.f32 %v2742, %v2070
        %v2775 = vmul.f32 %v2743, %v2071
        %v2776 = vmul.f32 %v2744, %v2072
        %v2777 = vmul.f32 %v2745, %v2073
        %v2778 = vmul.f32 %v2746, %v2074
        %v2779 = vmul.f32 %v2747, %v2075
        %v2780 = vmul.f32 %v2748, %v2076
        %v2781 = vmul.f32 %v2749, %v2077
        %v2782 = vmul.f32 %v2750, %v2078
        %v2783 = vmul.f32 %v2751, %v2079
        %v2784 = vmul.f32 %v2752, %v2080
        %v2785 = vmul.f32 %v2753, %v2081
        %v2786 = vmul.f32 %v2754, %v2082
        %v2787 = vmul.f32 %v2755, %v2083
        %v2788 = vmul.f32 %v2756, %v2084
        %v2789 = vsub.f32 %v2662, %v2757
        %v2790 = vsub.f32 %v2664, %v2758
        %v2791 = vsub.f32 %v2666, %v2759
        %v2792 = vsub.f32 %v2668, %v2760
        %v2793 = vsub.f32 %v2670, %v2761
        %v2794 = vsub.f32 %v2672, %v2762
        %v2795 = vsub.f32 %v2674, %v2763
        %v2796 = vsub.f32 %v2676, %v2764
        %v2797 = vsub.f32 %v2678, %v2765
        %v2798 = vsub.f32 %v2680, %v2766
        %v2799 = vsub.f32 %v2682, %v2767
        %v2800 = vsub.f32 %v2684, %v2768
        %v2801 = vsub.f32 %v2686, %v2769
        %v2802 = vsub.f32 %v2688, %v2770
        %v2803 = vsub.f32 %v2690, %v2771
        %v2804 = vsub.f32 %v2692, %v2772
        %v2805 = vsub.f32 %v2694, %v2773
        %v2806 = vsub.f32 %v2696, %v2774
        %v2807 = vsub.f32 %v2698, %v2775
        %v2808 = vsub.f32 %v2700, %v2776
        %v2809 = vsub.f32 %v2702, %v2777
        %v2810 = vsub.f32 %v2704, %v2778
        %v2811 = vsub.f32 %v2706, %v2779
        %v2812 = vsub.f32 %v2708, %v2780
        %v2813 = vsub.f32 %v2710, %v2781
        %v2814 = vsub.f32 %v2712, %v2782
        %v2815 = vsub.f32 %v2714, %v2783
        %v2816 = vsub.f32 %v2716, %v2784
        %v2817 = vsub.f32 %v2718, %v2785
        %v2818 = vsub.f32 %v2720, %v2786
        %v2819 = vsub.f32 %v2722, %v2787
        %v2820 = vsub.f32 %v2724, %v2788
        %v2821 = vsub.f32 0.0, %v2789
        %v2822 = vsub.f32 0.0, %v2790
        %v2823 = vsub.f32 0.0, %v2791
        %v2824 = vsub.f32 0.0, %v2792
        %v2825 = vsub.f32 0.0, %v2793
        %v2826 = vsub.f32 0.0, %v2794
        %v2827 = vsub.f32 0.0, %v2795
        %v2828 = vsub.f32 0.0, %v2796
        %v2829 = vsub.f32 0.0, %v2797
        %v2830 = vsub.f32 0.0, %v2798
        %v2831 = vsub.f32 0.0, %v2799
        %v2832 = vsub.f32 0.0, %v2800
        %v2833 = vsub.f32 0.0, %v2801
        %v2834 = vsub.f32 0.0, %v2802
        %v2835 = vsub.f32 0.0, %v2803
        %v2836 = vsub.f32 0.0, %v2804
        %v2837 = vsub.f32 0.0, %v2805
        %v2838 = vsub.f32 0.0, %v2806
        %v2839 = vsub.f32 0.0, %v2807
        %v2840 = vsub.f32 0.0, %v2808
        %v2841 = vsub.f32 0.0, %v2809
        %v2842 = vsub.f32 0.0, %v2810
        %v2843 = vsub.f32 0.0, %v2811
        %v2844 = vsub.f32 0.0, %v2812
        %v2845 = vsub.f32 0.0, %v2813
        %v2846 = vsub.f32 0.0, %v2814
        %v2847 = vsub.f32 0.0, %v2815
        %v2848 = vsub.f32 0.0, %v2816
        %v2849 = vsub.f32 0.0, %v2817
        %v2850 = vsub.f32 0.0, %v2818
        %v2851 = vsub.f32 0.0, %v2819
        %v2852 = vsub.f32 0.0, %v2820
        %v2853 = vmax.f32 %v2821, 1.0000001
        %v2854 = vmax.f32 %v2822, 1.0000001
        %v2855 = vmax.f32 %v2823, 1.0000001
        %v2856 = vmax.f32 %v2824, 1.0000001
        %v2857 = vmax.f32 %v2825, 1.0000001
        %v2858 = vmax.f32 %v2826, 1.0000001
        %v2859 = vmax.f32 %v2827, 1.0000001
        %v2860 = vmax.f32 %v2828, 1.0000001
        %v2861 = vmax.f32 %v2829, 1.0000001
        %v2862 = vmax.f32 %v2830, 1.0000001
        %v2863 = vmax.f32 %v2831, 1.0000001
        %v2864 = vmax.f32 %v2832, 1.0000001
        %v2865 = vmax.f32 %v2833, 1.0000001
        %v2866 = vmax.f32 %v2834, 1.0000001
        %v2867 = vmax.f32 %v2835, 1.0000001
        %v2868 = vmax.f32 %v2836, 1.0000001
        %v2869 = vmax.f32 %v2837, 1.0000001
        %v2870 = vmax.f32 %v2838, 1.0000001
        %v2871 = vmax.f32 %v2839, 1.0000001
        %v2872 = vmax.f32 %v2840, 1.0000001
        %v2873 = vmax.f32 %v2841, 1.0000001
        %v2874 = vmax.f32 %v2842, 1.0000001
        %v2875 = vmax.f32 %v2843, 1.0000001
        %v2876 = vmax.f32 %v2844, 1.0000001
        %v2877 = vmax.f32 %v2845, 1.0000001
        %v2878 = vmax.f32 %v2846, 1.0000001
        %v2879 = vmax.f32 %v2847, 1.0000001
        %v2880 = vmax.f32 %v2848, 1.0000001
        %v2881 = vmax.f32 %v2849, 1.0000001
        %v2882 = vmax.f32 %v2850, 1.0000001
        %v2883 = vmax.f32 %v2851, 1.0000001
        %v2884 = vmax.f32 %v2852, 1.0000001
        %v2885 = vmul.f32 %v2853, %v2853
        %v2886 = vmul.f32 %v2854, %v2854
        %v2887 = vmul.f32 %v2855, %v2855
        %v2888 = vmul.f32 %v2856, %v2856
        %v2889 = vmul.f32 %v2857, %v2857
        %v2890 = vmul.f32 %v2858, %v2858
        %v2891 = vmul.f32 %v2859, %v2859
        %v2892 = vmul.f32 %v2860, %v2860
        %v2893 = vmul.f32 %v2861, %v2861
        %v2894 = vmul.f32 %v2862, %v2862
        %v2895 = vmul.f32 %v2863, %v2863
        %v2896 = vmul.f32 %v2864, %v2864
        %v2897 = vmul.f32 %v2865, %v2865
        %v2898 = vmul.f32 %v2866, %v2866
        %v2899 = vmul.f32 %v2867, %v2867
        %v2900 = vmul.f32 %v2868, %v2868
        %v2901 = vmul.f32 %v2869, %v2869
        %v2902 = vmul.f32 %v2870, %v2870
        %v2903 = vmul.f32 %v2871, %v2871
        %v2904 = vmul.f32 %v2872, %v2872
        %v2905 = vmul.f32 %v2873, %v2873
        %v2906 = vmul.f32 %v2874, %v2874
        %v2907 = vmul.f32 %v2875, %v2875
        %v2908 = vmul.f32 %v2876, %v2876
        %v2909 = vmul.f32 %v2877, %v2877
        %v2910 = vmul.f32 %v2878, %v2878
        %v2911 = vmul.f32 %v2879, %v2879
        %v2912 = vmul.f32 %v2880, %v2880
        %v2913 = vmul.f32 %v2881, %v2881
        %v2914 = vmul.f32 %v2882, %v2882
        %v2915 = vmul.f32 %v2883, %v2883
        %v2916 = vmul.f32 %v2884, %v2884
        %v2917 = vsub.f32 %v2885, 1.0
        %v2918 = vsub.f32 %v2886, 1.0
        %v2919 = vsub.f32 %v2887, 1.0
        %v2920 = vsub.f32 %v2888, 1.0
        %v2921 = vsub.f32 %v2889, 1.0
        %v2922 = vsub.f32 %v2890, 1.0
        %v2923 = vsub.f32 %v2891, 1.0
        %v2924 = vsub.f32 %v2892, 1.0
        %v2925 = vsub.f32 %v2893, 1.0
        %v2926 = vsub.f32 %v2894, 1.0
        %v2927 = vsub.f32 %v2895, 1.0
        %v2928 = vsub.f32 %v2896, 1.0
        %v2929 = vsub.f32 %v2897, 1.0
        %v2930 = vsub.f32 %v2898, 1.0
        %v2931 = vsub.f32 %v2899, 1.0
        %v2932 = vsub.f32 %v2900, 1.0
        %v2933 = vsub.f32 %v2901, 1.0
        %v2934 = vsub.f32 %v2902, 1.0
        %v2935 = vsub.f32 %v2903, 1.0
        %v2936 = vsub.f32 %v2904, 1.0
        %v2937 = vsub.f32 %v2905, 1.0
        %v2938 = vsub.f32 %v2906, 1.0
        %v2939 = vsub.f32 %v2907, 1.0
        %v2940 = vsub.f32 %v2908, 1.0
        %v2941 = vsub.f32 %v2909, 1.0
        %v2942 = vsub.f32 %v2910, 1.0
        %v2943 = vsub.f32 %v2911, 1.0
        %v2944 = vsub.f32 %v2912, 1.0
        %v2945 = vsub.f32 %v2913, 1.0
        %v2946 = vsub.f32 %v2914, 1.0
        %v2947 = vsub.f32 %v2915, 1.0
        %v2948 = vsub.f32 %v2916, 1.0
        %v2949 = vrsqrt.pop %v2917
        %v2950 = vmul.f32 %v2917, %v2949
        %vm2951 = vcmp.eq.f32.partialorder %v2917, inf
        %v2952 = vsel %vm2951, %v2917, %v2950
        %vm2953 = vcmp.eq.f32.partialorder %v2917, 0.0
        %v2954 = vand.u32 %v2917, 2147483648
        %v2955 = vsel %vm2953, %v2954, %v2952
        %v2956 = vrsqrt.pop %v2918
        %v2957 = vmul.f32 %v2918, %v2956
        %vm2958 = vcmp.eq.f32.partialorder %v2918, inf
        %v2959 = vsel %vm2958, %v2918, %v2957
        %vm2960 = vcmp.eq.f32.partialorder %v2918, 0.0
        %v2961 = vand.u32 %v2918, 2147483648
        %v2962 = vsel %vm2960, %v2961, %v2959
        %v2963 = vrsqrt.pop %v2919
        %v2964 = vmul.f32 %v2919, %v2963
        %vm2965 = vcmp.eq.f32.partialorder %v2919, inf
        %v2966 = vsel %vm2965, %v2919, %v2964
        %vm2967 = vcmp.eq.f32.partialorder %v2919, 0.0
        %v2968 = vand.u32 %v2919, 2147483648
        %v2969 = vsel %vm2967, %v2968, %v2966
        %v2970 = vrsqrt.pop %v2920
        %v2971 = vmul.f32 %v2920, %v2970
        %vm2972 = vcmp.eq.f32.partialorder %v2920, inf
        %v2973 = vsel %vm2972, %v2920, %v2971
        %vm2974 = vcmp.eq.f32.partialorder %v2920, 0.0
        %v2975 = vand.u32 %v2920, 2147483648
        %v2976 = vsel %vm2974, %v2975, %v2973
        %v2977 = vrsqrt.pop %v2921
        %v2978 = vmul.f32 %v2921, %v2977
        %vm2979 = vcmp.eq.f32.partialorder %v2921, inf
        %v2980 = vsel %vm2979, %v2921, %v2978
        %vm2981 = vcmp.eq.f32.partialorder %v2921, 0.0
        %v2982 = vand.u32 %v2921, 2147483648
        %v2983 = vsel %vm2981, %v2982, %v2980
        %v2984 = vrsqrt.pop %v2922
        %v2985 = vmul.f32 %v2922, %v2984
        %vm2986 = vcmp.eq.f32.partialorder %v2922, inf
        %v2987 = vsel %vm2986, %v2922, %v2985
        %vm2988 = vcmp.eq.f32.partialorder %v2922, 0.0
        %v2989 = vand.u32 %v2922, 2147483648
        %v2990 = vsel %vm2988, %v2989, %v2987
        %v2991 = vrsqrt.pop %v2923
        %v2992 = vmul.f32 %v2923, %v2991
        %vm2993 = vcmp.eq.f32.partialorder %v2923, inf
        %v2994 = vsel %vm2993, %v2923, %v2992
        %vm2995 = vcmp.eq.f32.partialorder %v2923, 0.0
        %v2996 = vand.u32 %v2923, 2147483648
        %v2997 = vsel %vm2995, %v2996, %v2994
        %v2998 = vrsqrt.pop %v2924
        %v2999 = vmul.f32 %v2924, %v2998
        %vm3000 = vcmp.eq.f32.partialorder %v2924, inf
        %v3001 = vsel %vm3000, %v2924, %v2999
        %vm3002 = vcmp.eq.f32.partialorder %v2924, 0.0
        %v3003 = vand.u32 %v2924, 2147483648
        %v3004 = vsel %vm3002, %v3003, %v3001
        %v3005 = vrsqrt.pop %v2925
        %v3006 = vmul.f32 %v2925, %v3005
        %vm3007 = vcmp.eq.f32.partialorder %v2925, inf
        %v3008 = vsel %vm3007, %v2925, %v3006
        %vm3009 = vcmp.eq.f32.partialorder %v2925, 0.0
        %v3010 = vand.u32 %v2925, 2147483648
        %v3011 = vsel %vm3009, %v3010, %v3008
        %v3012 = vrsqrt.pop %v2926
        %v3013 = vmul.f32 %v2926, %v3012
        %vm3014 = vcmp.eq.f32.partialorder %v2926, inf
        %v3015 = vsel %vm3014, %v2926, %v3013
        %vm3016 = vcmp.eq.f32.partialorder %v2926, 0.0
        %v3017 = vand.u32 %v2926, 2147483648
        %v3018 = vsel %vm3016, %v3017, %v3015
        %v3019 = vrsqrt.pop %v2927
        %v3020 = vmul.f32 %v2927, %v3019
        %vm3021 = vcmp.eq.f32.partialorder %v2927, inf
        %v3022 = vsel %vm3021, %v2927, %v3020
        %vm3023 = vcmp.eq.f32.partialorder %v2927, 0.0
        %v3024 = vand.u32 %v2927, 2147483648
        %v3025 = vsel %vm3023, %v3024, %v3022
        %v3026 = vrsqrt.pop %v2928
        %v3027 = vmul.f32 %v2928, %v3026
        %vm3028 = vcmp.eq.f32.partialorder %v2928, inf
        %v3029 = vsel %vm3028, %v2928, %v3027
        %vm3030 = vcmp.eq.f32.partialorder %v2928, 0.0
        %v3031 = vand.u32 %v2928, 2147483648
        %v3032 = vsel %vm3030, %v3031, %v3029
        %v3033 = vrsqrt.pop %v2929
        %v3034 = vmul.f32 %v2929, %v3033
        %vm3035 = vcmp.eq.f32.partialorder %v2929, inf
        %v3036 = vsel %vm3035, %v2929, %v3034
        %vm3037 = vcmp.eq.f32.partialorder %v2929, 0.0
        %v3038 = vand.u32 %v2929, 2147483648
        %v3039 = vsel %vm3037, %v3038, %v3036
        %v3040 = vrsqrt.pop %v2930
        %v3041 = vmul.f32 %v2930, %v3040
        %vm3042 = vcmp.eq.f32.partialorder %v2930, inf
        %v3043 = vsel %vm3042, %v2930, %v3041
        %vm3044 = vcmp.eq.f32.partialorder %v2930, 0.0
        %v3045 = vand.u32 %v2930, 2147483648
        %v3046 = vsel %vm3044, %v3045, %v3043
        %v3047 = vrsqrt.pop %v2931
        %v3048 = vmul.f32 %v2931, %v3047
        %vm3049 = vcmp.eq.f32.partialorder %v2931, inf
        %v3050 = vsel %vm3049, %v2931, %v3048
        %vm3051 = vcmp.eq.f32.partialorder %v2931, 0.0
        %v3052 = vand.u32 %v2931, 2147483648
        %v3053 = vsel %vm3051, %v3052, %v3050
        %v3054 = vrsqrt.pop %v2932
        %v3055 = vmul.f32 %v2932, %v3054
        %vm3056 = vcmp.eq.f32.partialorder %v2932, inf
        %v3057 = vsel %vm3056, %v2932, %v3055
        %vm3058 = vcmp.eq.f32.partialorder %v2932, 0.0
        %v3059 = vand.u32 %v2932, 2147483648
        %v3060 = vsel %vm3058, %v3059, %v3057
        %v3061 = vrsqrt.pop %v2933
        %v3062 = vmul.f32 %v2933, %v3061
        %vm3063 = vcmp.eq.f32.partialorder %v2933, inf
        %v3064 = vsel %vm3063, %v2933, %v3062
        %vm3065 = vcmp.eq.f32.partialorder %v2933, 0.0
        %v3066 = vand.u32 %v2933, 2147483648
        %v3067 = vsel %vm3065, %v3066, %v3064
        %v3068 = vrsqrt.pop %v2934
        %v3069 = vmul.f32 %v2934, %v3068
        %vm3070 = vcmp.eq.f32.partialorder %v2934, inf
        %v3071 = vsel %vm3070, %v2934, %v3069
        %vm3072 = vcmp.eq.f32.partialorder %v2934, 0.0
        %v3073 = vand.u32 %v2934, 2147483648
        %v3074 = vsel %vm3072, %v3073, %v3071
        %v3075 = vrsqrt.pop %v2935
        %v3076 = vmul.f32 %v2935, %v3075
        %vm3077 = vcmp.eq.f32.partialorder %v2935, inf
        %v3078 = vsel %vm3077, %v2935, %v3076
        %vm3079 = vcmp.eq.f32.partialorder %v2935, 0.0
        %v3080 = vand.u32 %v2935, 2147483648
        %v3081 = vsel %vm3079, %v3080, %v3078
        %v3082 = vrsqrt.pop %v2936
        %v3083 = vmul.f32 %v2936, %v3082
        %vm3084 = vcmp.eq.f32.partialorder %v2936, inf
        %v3085 = vsel %vm3084, %v2936, %v3083
        %vm3086 = vcmp.eq.f32.partialorder %v2936, 0.0
        %v3087 = vand.u32 %v2936, 2147483648
        %v3088 = vsel %vm3086, %v3087, %v3085
        %v3089 = vrsqrt.pop %v2937
        %v3090 = vmul.f32 %v2937, %v3089
        %vm3091 = vcmp.eq.f32.partialorder %v2937, inf
        %v3092 = vsel %vm3091, %v2937, %v3090
        %vm3093 = vcmp.eq.f32.partialorder %v2937, 0.0
        %v3094 = vand.u32 %v2937, 2147483648
        %v3095 = vsel %vm3093, %v3094, %v3092
        %v3096 = vrsqrt.pop %v2938
        %v3097 = vmul.f32 %v2938, %v3096
        %vm3098 = vcmp.eq.f32.partialorder %v2938, inf
        %v3099 = vsel %vm3098, %v2938, %v3097
        %vm3100 = vcmp.eq.f32.partialorder %v2938, 0.0
        %v3101 = vand.u32 %v2938, 2147483648
        %v3102 = vsel %vm3100, %v3101, %v3099
        %v3103 = vrsqrt.pop %v2939
        %v3104 = vmul.f32 %v2939, %v3103
        %vm3105 = vcmp.eq.f32.partialorder %v2939, inf
        %v3106 = vsel %vm3105, %v2939, %v3104
        %vm3107 = vcmp.eq.f32.partialorder %v2939, 0.0
        %v3108 = vand.u32 %v2939, 2147483648
        %v3109 = vsel %vm3107, %v3108, %v3106
        %v3110 = vrsqrt.pop %v2940
        %v3111 = vmul.f32 %v2940, %v3110
        %vm3112 = vcmp.eq.f32.partialorder %v2940, inf
        %v3113 = vsel %vm3112, %v2940, %v3111
        %vm3114 = vcmp.eq.f32.partialorder %v2940, 0.0
        %v3115 = vand.u32 %v2940, 2147483648
        %v3116 = vsel %vm3114, %v3115, %v3113
        %v3117 = vrsqrt.pop %v2941
        %v3118 = vmul.f32 %v2941, %v3117
        %vm3119 = vcmp.eq.f32.partialorder %v2941, inf
        %v3120 = vsel %vm3119, %v2941, %v3118
        %vm3121 = vcmp.eq.f32.partialorder %v2941, 0.0
        %v3122 = vand.u32 %v2941, 2147483648
        %v3123 = vsel %vm3121, %v3122, %v3120
        %v3124 = vrsqrt.pop %v2942
        %v3125 = vmul.f32 %v2942, %v3124
        %vm3126 = vcmp.eq.f32.partialorder %v2942, inf
        %v3127 = vsel %vm3126, %v2942, %v3125
        %vm3128 = vcmp.eq.f32.partialorder %v2942, 0.0
        %v3129 = vand.u32 %v2942, 2147483648
        %v3130 = vsel %vm3128, %v3129, %v3127
        %v3131 = vrsqrt.pop %v2943
        %v3132 = vmul.f32 %v2943, %v3131
        %vm3133 = vcmp.eq.f32.partialorder %v2943, inf
        %v3134 = vsel %vm3133, %v2943, %v3132
        %vm3135 = vcmp.eq.f32.partialorder %v2943, 0.0
        %v3136 = vand.u32 %v2943, 2147483648
        %v3137 = vsel %vm3135, %v3136, %v3134
        %v3138 = vrsqrt.pop %v2944
        %v3139 = vmul.f32 %v2944, %v3138
        %vm3140 = vcmp.eq.f32.partialorder %v2944, inf
        %v3141 = vsel %vm3140, %v2944, %v3139
        %vm3142 = vcmp.eq.f32.partialorder %v2944, 0.0
        %v3143 = vand.u32 %v2944, 2147483648
        %v3144 = vsel %vm3142, %v3143, %v3141
        %v3145 = vrsqrt.pop %v2945
        %v3146 = vmul.f32 %v2945, %v3145
        %vm3147 = vcmp.eq.f32.partialorder %v2945, inf
        %v3148 = vsel %vm3147, %v2945, %v3146
        %vm3149 = vcmp.eq.f32.partialorder %v2945, 0.0
        %v3150 = vand.u32 %v2945, 2147483648
        %v3151 = vsel %vm3149, %v3150, %v3148
        %v3152 = vrsqrt.pop %v2946
        %v3153 = vmul.f32 %v2946, %v3152
        %vm3154 = vcmp.eq.f32.partialorder %v2946, inf
        %v3155 = vsel %vm3154, %v2946, %v3153
        %vm3156 = vcmp.eq.f32.partialorder %v2946, 0.0
        %v3157 = vand.u32 %v2946, 2147483648
        %v3158 = vsel %vm3156, %v3157, %v3155
        %v3159 = vrsqrt.pop %v2947
        %v3160 = vmul.f32 %v2947, %v3159
        %vm3161 = vcmp.eq.f32.partialorder %v2947, inf
        %v3162 = vsel %vm3161, %v2947, %v3160
        %vm3163 = vcmp.eq.f32.partialorder %v2947, 0.0
        %v3164 = vand.u32 %v2947, 2147483648
        %v3165 = vsel %vm3163, %v3164, %v3162
        %v3166 = vrsqrt.pop %v2948
        %v3167 = vmul.f32 %v2948, %v3166
        %vm3168 = vcmp.eq.f32.partialorder %v2948, inf
        %v3169 = vsel %vm3168, %v2948, %v3167
        %vm3170 = vcmp.eq.f32.partialorder %v2948, 0.0
        %v3171 = vand.u32 %v2948, 2147483648
        %v3172 = vsel %vm3170, %v3171, %v3169
        %v3173 = vadd.f32 %v2853, %v2955
        %v3174 = vadd.f32 %v2854, %v2962
        %v3175 = vadd.f32 %v2855, %v2969
        %v3176 = vadd.f32 %v2856, %v2976
        %v3177 = vadd.f32 %v2857, %v2983
        %v3178 = vadd.f32 %v2858, %v2990
        %v3179 = vadd.f32 %v2859, %v2997
        %v3180 = vadd.f32 %v2860, %v3004
        %v3181 = vadd.f32 %v2861, %v3011
        %v3182 = vadd.f32 %v2862, %v3018
        %v3183 = vadd.f32 %v2863, %v3025
        %v3184 = vadd.f32 %v2864, %v3032
        %v3185 = vadd.f32 %v2865, %v3039
        %v3186 = vadd.f32 %v2866, %v3046
        %v3187 = vadd.f32 %v2867, %v3053
        %v3188 = vadd.f32 %v2868, %v3060
        %v3189 = vadd.f32 %v2869, %v3067
        %v3190 = vadd.f32 %v2870, %v3074
        %v3191 = vadd.f32 %v2871, %v3081
        %v3192 = vadd.f32 %v2872, %v3088
        %v3193 = vadd.f32 %v2873, %v3095
        %v3194 = vadd.f32 %v2874, %v3102
        %v3195 = vadd.f32 %v2875, %v3109
        %v3196 = vadd.f32 %v2876, %v3116
        %v3197 = vadd.f32 %v2877, %v3123
        %v3198 = vadd.f32 %v2878, %v3130
        %v3199 = vadd.f32 %v2879, %v3137
        %v3200 = vadd.f32 %v2880, %v3144
        %v3201 = vadd.f32 %v2881, %v3151
        %v3202 = vadd.f32 %v2882, %v3158
        %v3203 = vadd.f32 %v2883, %v3165
        %v3204 = vadd.f32 %v2884, %v3172
        %v3205 = vlog2.pop %v3173
        %v3206 = vmul.f32 %v3205, 0.6931472
        %v3207 = vlog2.pop %v3174
        %v3208 = vmul.f32 %v3207, 0.6931472
        %v3209 = vlog2.pop %v3175
        %v3210 = vmul.f32 %v3209, 0.6931472
        %v3211 = vlog2.pop %v3176
        %v3212 = vmul.f32 %v3211, 0.6931472
        %v3213 = vlog2.pop %v3177
        %v3214 = vmul.f32 %v3213, 0.6931472
        %v3215 = vlog2.pop %v3178
        %v3216 = vmul.f32 %v3215, 0.6931472
        %v3217 = vlog2.pop %v3179
        %v3218 = vmul.f32 %v3217, 0.6931472
        %v3219 = vlog2.pop %v3180
        %v3220 = vmul.f32 %v3219, 0.6931472
        %v3221 = vlog2.pop %v3181
        %v3222 = vmul.f32 %v3221, 0.6931472
        %v3223 = vlog2.pop %v3182
        %v3224 = vmul.f32 %v3223, 0.6931472
        %v3225 = vlog2.pop %v3183
        %v3226 = vmul.f32 %v3225, 0.6931472
        %v3227 = vlog2.pop %v3184
        %v3228 = vmul.f32 %v3227, 0.6931472
        %v3229 = vlog2.pop %v3185
        %v3230 = vmul.f32 %v3229, 0.6931472
        %v3231 = vlog2.pop %v3186
        %v3232 = vmul.f32 %v3231, 0.6931472
        %v3233 = vlog2.pop %v3187
        %v3234 = vmul.f32 %v3233, 0.6931472
        %v3235 = vlog2.pop %v3188
        %v3236 = vmul.f32 %v3235, 0.6931472
        %v3237 = vlog2.pop %v3189
        %v3238 = vmul.f32 %v3237, 0.6931472
        %v3239 = vlog2.pop %v3190
        %v3240 = vmul.f32 %v3239, 0.6931472
        %v3241 = vlog2.pop %v3191
        %v3242 = vmul.f32 %v3241, 0.6931472
        %v3243 = vlog2.pop %v3192
        %v3244 = vmul.f32 %v3243, 0.6931472
        %v3245 = vlog2.pop %v3193
        %v3246 = vmul.f32 %v3245, 0.6931472
        %v3247 = vlog2.pop %v3194
        %v3248 = vmul.f32 %v3247, 0.6931472
        %v3249 = vlog2.pop %v3195
        %v3250 = vmul.f32 %v3249, 0.6931472
        %v3251 = vlog2.pop %v3196
        %v3252 = vmul.f32 %v3251, 0.6931472
        %v3253 = vlog2.pop %v3197
        %v3254 = vmul.f32 %v3253, 0.6931472
        %v3255 = vlog2.pop %v3198
        %v3256 = vmul.f32 %v3255, 0.6931472
        %v3257 = vlog2.pop %v3199
        %v3258 = vmul.f32 %v3257, 0.6931472
        %v3259 = vlog2.pop %v3200
        %v3260 = vmul.f32 %v3259, 0.6931472
        %v3261 = vlog2.pop %v3201
        %v3262 = vmul.f32 %v3261, 0.6931472
        %v3263 = vlog2.pop %v3202
        %v3264 = vmul.f32 %v3263, 0.6931472
        %v3265 = vlog2.pop %v3203
        %v3266 = vmul.f32 %v3265, 0.6931472
        %v3267 = vlog2.pop %v3204
        %v3268 = vmul.f32 %v3267, 0.6931472
        %v3269 = vstv %s321
        %v3270 = vmul.f32 %v3206, %v3269
        %v3271 = vmul.f32 %v3208, %v3269
        %v3272 = vmul.f32 %v3210, %v3269
        %v3273 = vmul.f32 %v3212, %v3269
        %v3274 = vmul.f32 %v3214, %v3269
        %v3275 = vmul.f32 %v3216, %v3269
        %v3276 = vmul.f32 %v3218, %v3269
        %v3277 = vmul.f32 %v3220, %v3269
        %v3278 = vmul.f32 %v3222, %v3269
        %v3279 = vmul.f32 %v3224, %v3269
        %v3280 = vmul.f32 %v3226, %v3269
        %v3281 = vmul.f32 %v3228, %v3269
        %v3282 = vmul.f32 %v3230, %v3269
        %v3283 = vmul.f32 %v3232, %v3269
        %v3284 = vmul.f32 %v3234, %v3269
        %v3285 = vmul.f32 %v3236, %v3269
        %v3286 = vmul.f32 %v3238, %v3269
        %v3287 = vmul.f32 %v3240, %v3269
        %v3288 = vmul.f32 %v3242, %v3269
        %v3289 = vmul.f32 %v3244, %v3269
        %v3290 = vmul.f32 %v3246, %v3269
        %v3291 = vmul.f32 %v3248, %v3269
        %v3292 = vmul.f32 %v3250, %v3269
        %v3293 = vmul.f32 %v3252, %v3269
        %v3294 = vmul.f32 %v3254, %v3269
        %v3295 = vmul.f32 %v3256, %v3269
        %v3296 = vmul.f32 %v3258, %v3269
        %v3297 = vmul.f32 %v3260, %v3269
        %v3298 = vmul.f32 %v3262, %v3269
        %v3299 = vmul.f32 %v3264, %v3269
        %v3300 = vmul.f32 %v3266, %v3269
        %v3301 = vmul.f32 %v3268, %v3269
        %3303 = vset.pattern.permute.xlu0 0
        %3304 = vperm.xlu0 %3303, %v3270
        %v3305 = vpop.permute.xlu0 %3304
        %3308 = vset.pattern.permute.xlu0 0
        %3309 = vperm.xlu0 %3308, %v3271
        %v3310 = vpop.permute.xlu0 %3309
        %3313 = vset.pattern.permute.xlu0 0
        %3314 = vperm.xlu0 %3313, %v3272
        %v3315 = vpop.permute.xlu0 %3314
        %3318 = vset.pattern.permute.xlu0 0
        %3319 = vperm.xlu0 %3318, %v3273
        %v3320 = vpop.permute.xlu0 %3319
        %3323 = vset.pattern.permute.xlu0 0
        %3324 = vperm.xlu0 %3323, %v3274
        %v3325 = vpop.permute.xlu0 %3324
        %3328 = vset.pattern.permute.xlu0 0
        %3329 = vperm.xlu0 %3328, %v3275
        %v3330 = vpop.permute.xlu0 %3329
        %3333 = vset.pattern.permute.xlu0 0
        %3334 = vperm.xlu0 %3333, %v3276
        %v3335 = vpop.permute.xlu0 %3334
        %3338 = vset.pattern.permute.xlu0 0
        %3339 = vperm.xlu0 %3338, %v3277
        %v3340 = vpop.permute.xlu0 %3339
        %3343 = vset.pattern.permute.xlu0 0
        %3344 = vperm.xlu0 %3343, %v3278
        %v3345 = vpop.permute.xlu0 %3344
        %3348 = vset.pattern.permute.xlu0 0
        %3349 = vperm.xlu0 %3348, %v3279
        %v3350 = vpop.permute.xlu0 %3349
        %3353 = vset.pattern.permute.xlu0 0
        %3354 = vperm.xlu0 %3353, %v3280
        %v3355 = vpop.permute.xlu0 %3354
        %3358 = vset.pattern.permute.xlu0 0
        %3359 = vperm.xlu0 %3358, %v3281
        %v3360 = vpop.permute.xlu0 %3359
        %3363 = vset.pattern.permute.xlu0 0
        %3364 = vperm.xlu0 %3363, %v3282
        %v3365 = vpop.permute.xlu0 %3364
        %3368 = vset.pattern.permute.xlu0 0
        %3369 = vperm.xlu0 %3368, %v3283
        %v3370 = vpop.permute.xlu0 %3369
        %3373 = vset.pattern.permute.xlu0 0
        %3374 = vperm.xlu0 %3373, %v3284
        %v3375 = vpop.permute.xlu0 %3374
        %3378 = vset.pattern.permute.xlu0 0
        %3379 = vperm.xlu0 %3378, %v3285
        %v3380 = vpop.permute.xlu0 %3379
        %3383 = vset.pattern.permute.xlu0 0
        %3384 = vperm.xlu0 %3383, %v3286
        %v3385 = vpop.permute.xlu0 %3384
        %3388 = vset.pattern.permute.xlu0 0
        %3389 = vperm.xlu0 %3388, %v3287
        %v3390 = vpop.permute.xlu0 %3389
        %3393 = vset.pattern.permute.xlu0 0
        %3394 = vperm.xlu0 %3393, %v3288
        %v3395 = vpop.permute.xlu0 %3394
        %3398 = vset.pattern.permute.xlu0 0
        %3399 = vperm.xlu0 %3398, %v3289
        %v3400 = vpop.permute.xlu0 %3399
        %3403 = vset.pattern.permute.xlu0 0
        %3404 = vperm.xlu0 %3403, %v3290
        %v3405 = vpop.permute.xlu0 %3404
        %3408 = vset.pattern.permute.xlu0 0
        %3409 = vperm.xlu0 %3408, %v3291
        %v3410 = vpop.permute.xlu0 %3409
        %3413 = vset.pattern.permute.xlu0 0
        %3414 = vperm.xlu0 %3413, %v3292
        %v3415 = vpop.permute.xlu0 %3414
        %3418 = vset.pattern.permute.xlu0 0
        %3419 = vperm.xlu0 %3418, %v3293
        %v3420 = vpop.permute.xlu0 %3419
        %3423 = vset.pattern.permute.xlu0 0
        %3424 = vperm.xlu0 %3423, %v3294
        %v3425 = vpop.permute.xlu0 %3424
        %3428 = vset.pattern.permute.xlu0 0
        %3429 = vperm.xlu0 %3428, %v3295
        %v3430 = vpop.permute.xlu0 %3429
        %3433 = vset.pattern.permute.xlu0 0
        %3434 = vperm.xlu0 %3433, %v3296
        %v3435 = vpop.permute.xlu0 %3434
        %3438 = vset.pattern.permute.xlu0 0
        %3439 = vperm.xlu0 %3438, %v3297
        %v3440 = vpop.permute.xlu0 %3439
        %3443 = vset.pattern.permute.xlu0 0
        %3444 = vperm.xlu0 %3443, %v3298
        %v3445 = vpop.permute.xlu0 %3444
        %3448 = vset.pattern.permute.xlu0 0
        %3449 = vperm.xlu0 %3448, %v3299
        %v3450 = vpop.permute.xlu0 %3449
        %3453 = vset.pattern.permute.xlu0 0
        %3454 = vperm.xlu0 %3453, %v3300
        %v3455 = vpop.permute.xlu0 %3454
        %3458 = vset.pattern.permute.xlu0 0
        %3459 = vperm.xlu0 %3458, %v3301
        %v3460 = vpop.permute.xlu0 %3459
        %v3462 = vmul.f32 %v3305, %v2597
        %v3463 = vmul.f32 %v3310, %v2598
        %v3464 = vmul.f32 %v3315, %v2599
        %v3465 = vmul.f32 %v3320, %v2600
        %v3466 = vmul.f32 %v3325, %v2601
        %v3467 = vmul.f32 %v3330, %v2602
        %v3468 = vmul.f32 %v3335, %v2603
        %v3469 = vmul.f32 %v3340, %v2604
        %v3470 = vmul.f32 %v3345, %v2605
        %v3471 = vmul.f32 %v3350, %v2606
        %v3472 = vmul.f32 %v3355, %v2607
        %v3473 = vmul.f32 %v3360, %v2608
        %v3474 = vmul.f32 %v3365, %v2609
        %v3475 = vmul.f32 %v3370, %v2610
        %v3476 = vmul.f32 %v3375, %v2611
        %v3477 = vmul.f32 %v3380, %v2612
        %v3478 = vmul.f32 %v3385, %v2613
        %v3479 = vmul.f32 %v3390, %v2614
        %v3480 = vmul.f32 %v3395, %v2615
        %v3481 = vmul.f32 %v3400, %v2616
        %v3482 = vmul.f32 %v3405, %v2617
        %v3483 = vmul.f32 %v3410, %v2618
        %v3484 = vmul.f32 %v3415, %v2619
        %v3485 = vmul.f32 %v3420, %v2620
        %v3486 = vmul.f32 %v3425, %v2621
        %v3487 = vmul.f32 %v3430, %v2622
        %v3488 = vmul.f32 %v3435, %v2623
        %v3489 = vmul.f32 %v3440, %v2624
        %v3490 = vmul.f32 %v3445, %v2625
        %v3491 = vmul.f32 %v3450, %v2626
        %v3492 = vmul.f32 %v3455, %v2627
        %v3493 = vmul.f32 %v3460, %v2628
        %v3494 = vadd.f32 %v1445, %v3462
        %v3495 = vadd.f32 %v1446, %v3463
        %v3496 = vadd.f32 %v1447, %v3464
        %v3497 = vadd.f32 %v1448, %v3465
        %v3498 = vadd.f32 %v1449, %v3466
        %v3499 = vadd.f32 %v1450, %v3467
        %v3500 = vadd.f32 %v1451, %v3468
        %v3501 = vadd.f32 %v1452, %v3469
        %v3502 = vadd.f32 %v1453, %v3470
        %v3503 = vadd.f32 %v1454, %v3471
        %v3504 = vadd.f32 %v1455, %v3472
        %v3505 = vadd.f32 %v1456, %v3473
        %v3506 = vadd.f32 %v1457, %v3474
        %v3507 = vadd.f32 %v1458, %v3475
        %v3508 = vadd.f32 %v1459, %v3476
        %v3509 = vadd.f32 %v1460, %v3477
        %v3510 = vadd.f32 %v1461, %v3478
        %v3511 = vadd.f32 %v1462, %v3479
        %v3512 = vadd.f32 %v1463, %v3480
        %v3513 = vadd.f32 %v1464, %v3481
        %v3514 = vadd.f32 %v1465, %v3482
        %v3515 = vadd.f32 %v1466, %v3483
        %v3516 = vadd.f32 %v1467, %v3484
        %v3517 = vadd.f32 %v1468, %v3485
        %v3518 = vadd.f32 %v1469, %v3486
        %v3519 = vadd.f32 %v1470, %v3487
        %v3520 = vadd.f32 %v1471, %v3488
        %v3521 = vadd.f32 %v1472, %v3489
        %v3522 = vadd.f32 %v1473, %v3490
        %v3523 = vadd.f32 %v1474, %v3491
        %v3524 = vadd.f32 %v1475, %v3492
        %v3525 = vadd.f32 %v1476, %v3493
        %v3526 = vmul.f32 %v3270, %v2053
        %v3527 = vmul.f32 %v3271, %v2054
        %v3528 = vmul.f32 %v3272, %v2055
        %v3529 = vmul.f32 %v3273, %v2056
        %v3530 = vmul.f32 %v3274, %v2057
        %v3531 = vmul.f32 %v3275, %v2058
        %v3532 = vmul.f32 %v3276, %v2059
        %v3533 = vmul.f32 %v3277, %v2060
        %v3534 = vmul.f32 %v3278, %v2061
        %v3535 = vmul.f32 %v3279, %v2062
        %v3536 = vmul.f32 %v3280, %v2063
        %v3537 = vmul.f32 %v3281, %v2064
        %v3538 = vmul.f32 %v3282, %v2065
        %v3539 = vmul.f32 %v3283, %v2066
        %v3540 = vmul.f32 %v3284, %v2067
        %v3541 = vmul.f32 %v3285, %v2068
        %v3542 = vmul.f32 %v3286, %v2069
        %v3543 = vmul.f32 %v3287, %v2070
        %v3544 = vmul.f32 %v3288, %v2071
        %v3545 = vmul.f32 %v3289, %v2072
        %v3546 = vmul.f32 %v3290, %v2073
        %v3547 = vmul.f32 %v3291, %v2074
        %v3548 = vmul.f32 %v3292, %v2075
        %v3549 = vmul.f32 %v3293, %v2076
        %v3550 = vmul.f32 %v3294, %v2077
        %v3551 = vmul.f32 %v3295, %v2078
        %v3552 = vmul.f32 %v3296, %v2079
        %v3553 = vmul.f32 %v3297, %v2080
        %v3554 = vmul.f32 %v3298, %v2081
        %v3555 = vmul.f32 %v3299, %v2082
        %v3556 = vmul.f32 %v3300, %v2083
        %v3557 = vmul.f32 %v3301, %v2084
        %v3558 = vadd.f32 %v901, %v3526
        %v3559 = vadd.f32 %v902, %v3527
        %v3560 = vadd.f32 %v903, %v3528
        %v3561 = vadd.f32 %v904, %v3529
        %v3562 = vadd.f32 %v905, %v3530
        %v3563 = vadd.f32 %v906, %v3531
        %v3564 = vadd.f32 %v907, %v3532
        %v3565 = vadd.f32 %v908, %v3533
        %v3566 = vadd.f32 %v909, %v3534
        %v3567 = vadd.f32 %v910, %v3535
        %v3568 = vadd.f32 %v911, %v3536
        %v3569 = vadd.f32 %v912, %v3537
        %v3570 = vadd.f32 %v913, %v3538
        %v3571 = vadd.f32 %v914, %v3539
        %v3572 = vadd.f32 %v915, %v3540
        %v3573 = vadd.f32 %v916, %v3541
        %v3574 = vadd.f32 %v917, %v3542
        %v3575 = vadd.f32 %v918, %v3543
        %v3576 = vadd.f32 %v919, %v3544
        %v3577 = vadd.f32 %v920, %v3545
        %v3578 = vadd.f32 %v921, %v3546
        %v3579 = vadd.f32 %v922, %v3547
        %v3580 = vadd.f32 %v923, %v3548
        %v3581 = vadd.f32 %v924, %v3549
        %v3582 = vadd.f32 %v925, %v3550
        %v3583 = vadd.f32 %v926, %v3551
        %v3584 = vadd.f32 %v927, %v3552
        %v3585 = vadd.f32 %v928, %v3553
        %v3586 = vadd.f32 %v929, %v3554
        %v3587 = vadd.f32 %v930, %v3555
        %v3588 = vadd.f32 %v931, %v3556
        %v3589 = vadd.f32 %v932, %v3557
        %v3590 = vmul.f32 %v3494, %v3494
        %v3591 = vmul.f32 %v3495, %v3495
        %v3592 = vmul.f32 %v3496, %v3496
        %v3593 = vmul.f32 %v3497, %v3497
        %v3594 = vmul.f32 %v3498, %v3498
        %v3595 = vmul.f32 %v3499, %v3499
        %v3596 = vmul.f32 %v3500, %v3500
        %v3597 = vmul.f32 %v3501, %v3501
        %v3598 = vmul.f32 %v3502, %v3502
        %v3599 = vmul.f32 %v3503, %v3503
        %v3600 = vmul.f32 %v3504, %v3504
        %v3601 = vmul.f32 %v3505, %v3505
        %v3602 = vmul.f32 %v3506, %v3506
        %v3603 = vmul.f32 %v3507, %v3507
        %v3604 = vmul.f32 %v3508, %v3508
        %v3605 = vmul.f32 %v3509, %v3509
        %v3606 = vmul.f32 %v3510, %v3510
        %v3607 = vmul.f32 %v3511, %v3511
        %v3608 = vmul.f32 %v3512, %v3512
        %v3609 = vmul.f32 %v3513, %v3513
        %v3610 = vmul.f32 %v3514, %v3514
        %v3611 = vmul.f32 %v3515, %v3515
        %v3612 = vmul.f32 %v3516, %v3516
        %v3613 = vmul.f32 %v3517, %v3517
        %v3614 = vmul.f32 %v3518, %v3518
        %v3615 = vmul.f32 %v3519, %v3519
        %v3616 = vmul.f32 %v3520, %v3520
        %v3617 = vmul.f32 %v3521, %v3521
        %v3618 = vmul.f32 %v3522, %v3522
        %v3619 = vmul.f32 %v3523, %v3523
        %v3620 = vmul.f32 %v3524, %v3524
        %v3621 = vmul.f32 %v3525, %v3525
        %3622 = vadd.xlane.f32.xlu0 %v3590
        %v3623 = vpop.xlane.xlu0 %3622
        %3624 = vadd.xlane.f32.xlu0 %v3591
        %v3625 = vpop.xlane.xlu0 %3624
        %3626 = vadd.xlane.f32.xlu0 %v3592
        %v3627 = vpop.xlane.xlu0 %3626
        %3628 = vadd.xlane.f32.xlu0 %v3593
        %v3629 = vpop.xlane.xlu0 %3628
        %3630 = vadd.xlane.f32.xlu0 %v3594
        %v3631 = vpop.xlane.xlu0 %3630
        %3632 = vadd.xlane.f32.xlu0 %v3595
        %v3633 = vpop.xlane.xlu0 %3632
        %3634 = vadd.xlane.f32.xlu0 %v3596
        %v3635 = vpop.xlane.xlu0 %3634
        %3636 = vadd.xlane.f32.xlu0 %v3597
        %v3637 = vpop.xlane.xlu0 %3636
        %3638 = vadd.xlane.f32.xlu0 %v3598
        %v3639 = vpop.xlane.xlu0 %3638
        %3640 = vadd.xlane.f32.xlu0 %v3599
        %v3641 = vpop.xlane.xlu0 %3640
        %3642 = vadd.xlane.f32.xlu0 %v3600
        %v3643 = vpop.xlane.xlu0 %3642
        %3644 = vadd.xlane.f32.xlu0 %v3601
        %v3645 = vpop.xlane.xlu0 %3644
        %3646 = vadd.xlane.f32.xlu0 %v3602
        %v3647 = vpop.xlane.xlu0 %3646
        %3648 = vadd.xlane.f32.xlu0 %v3603
        %v3649 = vpop.xlane.xlu0 %3648
        %3650 = vadd.xlane.f32.xlu0 %v3604
        %v3651 = vpop.xlane.xlu0 %3650
        %3652 = vadd.xlane.f32.xlu0 %v3605
        %v3653 = vpop.xlane.xlu0 %3652
        %3654 = vadd.xlane.f32.xlu0 %v3606
        %v3655 = vpop.xlane.xlu0 %3654
        %3656 = vadd.xlane.f32.xlu0 %v3607
        %v3657 = vpop.xlane.xlu0 %3656
        %3658 = vadd.xlane.f32.xlu0 %v3608
        %v3659 = vpop.xlane.xlu0 %3658
        %3660 = vadd.xlane.f32.xlu0 %v3609
        %v3661 = vpop.xlane.xlu0 %3660
        %3662 = vadd.xlane.f32.xlu0 %v3610
        %v3663 = vpop.xlane.xlu0 %3662
        %3664 = vadd.xlane.f32.xlu0 %v3611
        %v3665 = vpop.xlane.xlu0 %3664
        %3666 = vadd.xlane.f32.xlu0 %v3612
        %v3667 = vpop.xlane.xlu0 %3666
        %3668 = vadd.xlane.f32.xlu0 %v3613
        %v3669 = vpop.xlane.xlu0 %3668
        %3670 = vadd.xlane.f32.xlu0 %v3614
        %v3671 = vpop.xlane.xlu0 %3670
        %3672 = vadd.xlane.f32.xlu0 %v3615
        %v3673 = vpop.xlane.xlu0 %3672
        %3674 = vadd.xlane.f32.xlu0 %v3616
        %v3675 = vpop.xlane.xlu0 %3674
        %3676 = vadd.xlane.f32.xlu0 %v3617
        %v3677 = vpop.xlane.xlu0 %3676
        %3678 = vadd.xlane.f32.xlu0 %v3618
        %v3679 = vpop.xlane.xlu0 %3678
        %3680 = vadd.xlane.f32.xlu0 %v3619
        %v3681 = vpop.xlane.xlu0 %3680
        %3682 = vadd.xlane.f32.xlu0 %v3620
        %v3683 = vpop.xlane.xlu0 %3682
        %3684 = vadd.xlane.f32.xlu0 %v3621
        %v3685 = vpop.xlane.xlu0 %3684
        %v3686 = vmul.f32 %v3558, 2.0
        %v3687 = vmul.f32 %v3559, 2.0
        %v3688 = vmul.f32 %v3560, 2.0
        %v3689 = vmul.f32 %v3561, 2.0
        %v3690 = vmul.f32 %v3562, 2.0
        %v3691 = vmul.f32 %v3563, 2.0
        %v3692 = vmul.f32 %v3564, 2.0
        %v3693 = vmul.f32 %v3565, 2.0
        %v3694 = vmul.f32 %v3566, 2.0
        %v3695 = vmul.f32 %v3567, 2.0
        %v3696 = vmul.f32 %v3568, 2.0
        %v3697 = vmul.f32 %v3569, 2.0
        %v3698 = vmul.f32 %v3570, 2.0
        %v3699 = vmul.f32 %v3571, 2.0
        %v3700 = vmul.f32 %v3572, 2.0
        %v3701 = vmul.f32 %v3573, 2.0
        %v3702 = vmul.f32 %v3574, 2.0
        %v3703 = vmul.f32 %v3575, 2.0
        %v3704 = vmul.f32 %v3576, 2.0
        %v3705 = vmul.f32 %v3577, 2.0
        %v3706 = vmul.f32 %v3578, 2.0
        %v3707 = vmul.f32 %v3579, 2.0
        %v3708 = vmul.f32 %v3580, 2.0
        %v3709 = vmul.f32 %v3581, 2.0
        %v3710 = vmul.f32 %v3582, 2.0
        %v3711 = vmul.f32 %v3583, 2.0
        %v3712 = vmul.f32 %v3584, 2.0
        %v3713 = vmul.f32 %v3585, 2.0
        %v3714 = vmul.f32 %v3586, 2.0
        %v3715 = vmul.f32 %v3587, 2.0
        %v3716 = vmul.f32 %v3588, 2.0
        %v3717 = vmul.f32 %v3589, 2.0
        %v3718 = vmul.f32 %v3686, %v3558
        %v3719 = vmul.f32 %v3687, %v3559
        %v3720 = vmul.f32 %v3688, %v3560
        %v3721 = vmul.f32 %v3689, %v3561
        %v3722 = vmul.f32 %v3690, %v3562
        %v3723 = vmul.f32 %v3691, %v3563
        %v3724 = vmul.f32 %v3692, %v3564
        %v3725 = vmul.f32 %v3693, %v3565
        %v3726 = vmul.f32 %v3694, %v3566
        %v3727 = vmul.f32 %v3695, %v3567
        %v3728 = vmul.f32 %v3696, %v3568
        %v3729 = vmul.f32 %v3697, %v3569
        %v3730 = vmul.f32 %v3698, %v3570
        %v3731 = vmul.f32 %v3699, %v3571
        %v3732 = vmul.f32 %v3700, %v3572
        %v3733 = vmul.f32 %v3701, %v3573
        %v3734 = vmul.f32 %v3702, %v3574
        %v3735 = vmul.f32 %v3703, %v3575
        %v3736 = vmul.f32 %v3704, %v3576
        %v3737 = vmul.f32 %v3705, %v3577
        %v3738 = vmul.f32 %v3706, %v3578
        %v3739 = vmul.f32 %v3707, %v3579
        %v3740 = vmul.f32 %v3708, %v3580
        %v3741 = vmul.f32 %v3709, %v3581
        %v3742 = vmul.f32 %v3710, %v3582
        %v3743 = vmul.f32 %v3711, %v3583
        %v3744 = vmul.f32 %v3712, %v3584
        %v3745 = vmul.f32 %v3713, %v3585
        %v3746 = vmul.f32 %v3714, %v3586
        %v3747 = vmul.f32 %v3715, %v3587
        %v3748 = vmul.f32 %v3716, %v3588
        %v3749 = vmul.f32 %v3717, %v3589
        %v3750 = vsub.f32 %v3623, %v3718
        %v3751 = vsub.f32 %v3625, %v3719
        %v3752 = vsub.f32 %v3627, %v3720
        %v3753 = vsub.f32 %v3629, %v3721
        %v3754 = vsub.f32 %v3631, %v3722
        %v3755 = vsub.f32 %v3633, %v3723
        %v3756 = vsub.f32 %v3635, %v3724
        %v3757 = vsub.f32 %v3637, %v3725
        %v3758 = vsub.f32 %v3639, %v3726
        %v3759 = vsub.f32 %v3641, %v3727
        %v3760 = vsub.f32 %v3643, %v3728
        %v3761 = vsub.f32 %v3645, %v3729
        %v3762 = vsub.f32 %v3647, %v3730
        %v3763 = vsub.f32 %v3649, %v3731
        %v3764 = vsub.f32 %v3651, %v3732
        %v3765 = vsub.f32 %v3653, %v3733
        %v3766 = vsub.f32 %v3655, %v3734
        %v3767 = vsub.f32 %v3657, %v3735
        %v3768 = vsub.f32 %v3659, %v3736
        %v3769 = vsub.f32 %v3661, %v3737
        %v3770 = vsub.f32 %v3663, %v3738
        %v3771 = vsub.f32 %v3665, %v3739
        %v3772 = vsub.f32 %v3667, %v3740
        %v3773 = vsub.f32 %v3669, %v3741
        %v3774 = vsub.f32 %v3671, %v3742
        %v3775 = vsub.f32 %v3673, %v3743
        %v3776 = vsub.f32 %v3675, %v3744
        %v3777 = vsub.f32 %v3677, %v3745
        %v3778 = vsub.f32 %v3679, %v3746
        %v3779 = vsub.f32 %v3681, %v3747
        %v3780 = vsub.f32 %v3683, %v3748
        %v3781 = vsub.f32 %v3685, %v3749
        %v3782 = vand.u32 2147483647, %v3750
        %v3783 = vand.u32 2147483647, %v3751
        %v3784 = vand.u32 2147483647, %v3752
        %v3785 = vand.u32 2147483647, %v3753
        %v3786 = vand.u32 2147483647, %v3754
        %v3787 = vand.u32 2147483647, %v3755
        %v3788 = vand.u32 2147483647, %v3756
        %v3789 = vand.u32 2147483647, %v3757
        %v3790 = vand.u32 2147483647, %v3758
        %v3791 = vand.u32 2147483647, %v3759
        %v3792 = vand.u32 2147483647, %v3760
        %v3793 = vand.u32 2147483647, %v3761
        %v3794 = vand.u32 2147483647, %v3762
        %v3795 = vand.u32 2147483647, %v3763
        %v3796 = vand.u32 2147483647, %v3764
        %v3797 = vand.u32 2147483647, %v3765
        %v3798 = vand.u32 2147483647, %v3766
        %v3799 = vand.u32 2147483647, %v3767
        %v3800 = vand.u32 2147483647, %v3768
        %v3801 = vand.u32 2147483647, %v3769
        %v3802 = vand.u32 2147483647, %v3770
        %v3803 = vand.u32 2147483647, %v3771
        %v3804 = vand.u32 2147483647, %v3772
        %v3805 = vand.u32 2147483647, %v3773
        %v3806 = vand.u32 2147483647, %v3774
        %v3807 = vand.u32 2147483647, %v3775
        %v3808 = vand.u32 2147483647, %v3776
        %v3809 = vand.u32 2147483647, %v3777
        %v3810 = vand.u32 2147483647, %v3778
        %v3811 = vand.u32 2147483647, %v3779
        %v3812 = vand.u32 2147483647, %v3780
        %v3813 = vand.u32 2147483647, %v3781
        %v3814 = vmax.f32 %v3782, 1e-08
        %v3815 = vmax.f32 %v3783, 1e-08
        %v3816 = vmax.f32 %v3784, 1e-08
        %v3817 = vmax.f32 %v3785, 1e-08
        %v3818 = vmax.f32 %v3786, 1e-08
        %v3819 = vmax.f32 %v3787, 1e-08
        %v3820 = vmax.f32 %v3788, 1e-08
        %v3821 = vmax.f32 %v3789, 1e-08
        %v3822 = vmax.f32 %v3790, 1e-08
        %v3823 = vmax.f32 %v3791, 1e-08
        %v3824 = vmax.f32 %v3792, 1e-08
        %v3825 = vmax.f32 %v3793, 1e-08
        %v3826 = vmax.f32 %v3794, 1e-08
        %v3827 = vmax.f32 %v3795, 1e-08
        %v3828 = vmax.f32 %v3796, 1e-08
        %v3829 = vmax.f32 %v3797, 1e-08
        %v3830 = vmax.f32 %v3798, 1e-08
        %v3831 = vmax.f32 %v3799, 1e-08
        %v3832 = vmax.f32 %v3800, 1e-08
        %v3833 = vmax.f32 %v3801, 1e-08
        %v3834 = vmax.f32 %v3802, 1e-08
        %v3835 = vmax.f32 %v3803, 1e-08
        %v3836 = vmax.f32 %v3804, 1e-08
        %v3837 = vmax.f32 %v3805, 1e-08
        %v3838 = vmax.f32 %v3806, 1e-08
        %v3839 = vmax.f32 %v3807, 1e-08
        %v3840 = vmax.f32 %v3808, 1e-08
        %v3841 = vmax.f32 %v3809, 1e-08
        %v3842 = vmax.f32 %v3810, 1e-08
        %v3843 = vmax.f32 %v3811, 1e-08
        %v3844 = vmax.f32 %v3812, 1e-08
        %v3845 = vmax.f32 %v3813, 1e-08
        %v3846 = vrsqrt.pop %v3814
        %v3847 = vrsqrt.pop %v3815
        %v3848 = vrsqrt.pop %v3816
        %v3849 = vrsqrt.pop %v3817
        %v3850 = vrsqrt.pop %v3818
        %v3851 = vrsqrt.pop %v3819
        %v3852 = vrsqrt.pop %v3820
        %v3853 = vrsqrt.pop %v3821
        %v3854 = vrsqrt.pop %v3822
        %v3855 = vrsqrt.pop %v3823
        %v3856 = vrsqrt.pop %v3824
        %v3857 = vrsqrt.pop %v3825
        %v3858 = vrsqrt.pop %v3826
        %v3859 = vrsqrt.pop %v3827
        %v3860 = vrsqrt.pop %v3828
        %v3861 = vrsqrt.pop %v3829
        %v3862 = vrsqrt.pop %v3830
        %v3863 = vrsqrt.pop %v3831
        %v3864 = vrsqrt.pop %v3832
        %v3865 = vrsqrt.pop %v3833
        %v3866 = vrsqrt.pop %v3834
        %v3867 = vrsqrt.pop %v3835
        %v3868 = vrsqrt.pop %v3836
        %v3869 = vrsqrt.pop %v3837
        %v3870 = vrsqrt.pop %v3838
        %v3871 = vrsqrt.pop %v3839
        %v3872 = vrsqrt.pop %v3840
        %v3873 = vrsqrt.pop %v3841
        %v3874 = vrsqrt.pop %v3842
        %v3875 = vrsqrt.pop %v3843
        %v3876 = vrsqrt.pop %v3844
        %v3877 = vrsqrt.pop %v3845
        %v3878 = vmul.f32 %v3558, %v3846
        %v3879 = vmul.f32 %v3559, %v3847
        %v3880 = vmul.f32 %v3560, %v3848
        %v3881 = vmul.f32 %v3561, %v3849
        %v3882 = vmul.f32 %v3562, %v3850
        %v3883 = vmul.f32 %v3563, %v3851
        %v3884 = vmul.f32 %v3564, %v3852
        %v3885 = vmul.f32 %v3565, %v3853
        %v3886 = vmul.f32 %v3566, %v3854
        %v3887 = vmul.f32 %v3567, %v3855
        %v3888 = vmul.f32 %v3568, %v3856
        %v3889 = vmul.f32 %v3569, %v3857
        %v3890 = vmul.f32 %v3570, %v3858
        %v3891 = vmul.f32 %v3571, %v3859
        %v3892 = vmul.f32 %v3572, %v3860
        %v3893 = vmul.f32 %v3573, %v3861
        %v3894 = vmul.f32 %v3574, %v3862
        %v3895 = vmul.f32 %v3575, %v3863
        %v3896 = vmul.f32 %v3576, %v3864
        %v3897 = vmul.f32 %v3577, %v3865
        %v3898 = vmul.f32 %v3578, %v3866
        %v3899 = vmul.f32 %v3579, %v3867
        %v3900 = vmul.f32 %v3580, %v3868
        %v3901 = vmul.f32 %v3581, %v3869
        %v3902 = vmul.f32 %v3582, %v3870
        %v3903 = vmul.f32 %v3583, %v3871
        %v3904 = vmul.f32 %v3584, %v3872
        %v3905 = vmul.f32 %v3585, %v3873
        %v3906 = vmul.f32 %v3586, %v3874
        %v3907 = vmul.f32 %v3587, %v3875
        %v3908 = vmul.f32 %v3588, %v3876
        %v3909 = vmul.f32 %v3589, %v3877
        %v3910 = vmax.f32 %v3878, 1.0000001
        %v3911 = vmax.f32 %v3879, 1.0000001
        %v3912 = vmax.f32 %v3880, 1.0000001
        %v3913 = vmax.f32 %v3881, 1.0000001
        %v3914 = vmax.f32 %v3882, 1.0000001
        %v3915 = vmax.f32 %v3883, 1.0000001
        %v3916 = vmax.f32 %v3884, 1.0000001
        %v3917 = vmax.f32 %v3885, 1.0000001
        %v3918 = vmax.f32 %v3886, 1.0000001
        %v3919 = vmax.f32 %v3887, 1.0000001
        %v3920 = vmax.f32 %v3888, 1.0000001
        %v3921 = vmax.f32 %v3889, 1.0000001
        %v3922 = vmax.f32 %v3890, 1.0000001
        %v3923 = vmax.f32 %v3891, 1.0000001
        %v3924 = vmax.f32 %v3892, 1.0000001
        %v3925 = vmax.f32 %v3893, 1.0000001
        %v3926 = vmax.f32 %v3894, 1.0000001
        %v3927 = vmax.f32 %v3895, 1.0000001
        %v3928 = vmax.f32 %v3896, 1.0000001
        %v3929 = vmax.f32 %v3897, 1.0000001
        %v3930 = vmax.f32 %v3898, 1.0000001
        %v3931 = vmax.f32 %v3899, 1.0000001
        %v3932 = vmax.f32 %v3900, 1.0000001
        %v3933 = vmax.f32 %v3901, 1.0000001
        %v3934 = vmax.f32 %v3902, 1.0000001
        %v3935 = vmax.f32 %v3903, 1.0000001
        %v3936 = vmax.f32 %v3904, 1.0000001
        %v3937 = vmax.f32 %v3905, 1.0000001
        %v3938 = vmax.f32 %v3906, 1.0000001
        %v3939 = vmax.f32 %v3907, 1.0000001
        %v3940 = vmax.f32 %v3908, 1.0000001
        %v3941 = vmax.f32 %v3909, 1.0000001
        %v3942 = vmul.f32 %v3910, %v3910
        %v3943 = vmul.f32 %v3911, %v3911
        %v3944 = vmul.f32 %v3912, %v3912
        %v3945 = vmul.f32 %v3913, %v3913
        %v3946 = vmul.f32 %v3914, %v3914
        %v3947 = vmul.f32 %v3915, %v3915
        %v3948 = vmul.f32 %v3916, %v3916
        %v3949 = vmul.f32 %v3917, %v3917
        %v3950 = vmul.f32 %v3918, %v3918
        %v3951 = vmul.f32 %v3919, %v3919
        %v3952 = vmul.f32 %v3920, %v3920
        %v3953 = vmul.f32 %v3921, %v3921
        %v3954 = vmul.f32 %v3922, %v3922
        %v3955 = vmul.f32 %v3923, %v3923
        %v3956 = vmul.f32 %v3924, %v3924
        %v3957 = vmul.f32 %v3925, %v3925
        %v3958 = vmul.f32 %v3926, %v3926
        %v3959 = vmul.f32 %v3927, %v3927
        %v3960 = vmul.f32 %v3928, %v3928
        %v3961 = vmul.f32 %v3929, %v3929
        %v3962 = vmul.f32 %v3930, %v3930
        %v3963 = vmul.f32 %v3931, %v3931
        %v3964 = vmul.f32 %v3932, %v3932
        %v3965 = vmul.f32 %v3933, %v3933
        %v3966 = vmul.f32 %v3934, %v3934
        %v3967 = vmul.f32 %v3935, %v3935
        %v3968 = vmul.f32 %v3936, %v3936
        %v3969 = vmul.f32 %v3937, %v3937
        %v3970 = vmul.f32 %v3938, %v3938
        %v3971 = vmul.f32 %v3939, %v3939
        %v3972 = vmul.f32 %v3940, %v3940
        %v3973 = vmul.f32 %v3941, %v3941
        %v3974 = vsub.f32 %v3942, 1.0
        %v3975 = vsub.f32 %v3943, 1.0
        %v3976 = vsub.f32 %v3944, 1.0
        %v3977 = vsub.f32 %v3945, 1.0
        %v3978 = vsub.f32 %v3946, 1.0
        %v3979 = vsub.f32 %v3947, 1.0
        %v3980 = vsub.f32 %v3948, 1.0
        %v3981 = vsub.f32 %v3949, 1.0
        %v3982 = vsub.f32 %v3950, 1.0
        %v3983 = vsub.f32 %v3951, 1.0
        %v3984 = vsub.f32 %v3952, 1.0
        %v3985 = vsub.f32 %v3953, 1.0
        %v3986 = vsub.f32 %v3954, 1.0
        %v3987 = vsub.f32 %v3955, 1.0
        %v3988 = vsub.f32 %v3956, 1.0
        %v3989 = vsub.f32 %v3957, 1.0
        %v3990 = vsub.f32 %v3958, 1.0
        %v3991 = vsub.f32 %v3959, 1.0
        %v3992 = vsub.f32 %v3960, 1.0
        %v3993 = vsub.f32 %v3961, 1.0
        %v3994 = vsub.f32 %v3962, 1.0
        %v3995 = vsub.f32 %v3963, 1.0
        %v3996 = vsub.f32 %v3964, 1.0
        %v3997 = vsub.f32 %v3965, 1.0
        %v3998 = vsub.f32 %v3966, 1.0
        %v3999 = vsub.f32 %v3967, 1.0
        %v4000 = vsub.f32 %v3968, 1.0
        %v4001 = vsub.f32 %v3969, 1.0
        %v4002 = vsub.f32 %v3970, 1.0
        %v4003 = vsub.f32 %v3971, 1.0
        %v4004 = vsub.f32 %v3972, 1.0
        %v4005 = vsub.f32 %v3973, 1.0
        %v4006 = vrsqrt.pop %v3974
        %v4007 = vmul.f32 %v3974, %v4006
        %vm4008 = vcmp.eq.f32.partialorder %v3974, inf
        %v4009 = vsel %vm4008, %v3974, %v4007
        %vm4010 = vcmp.eq.f32.partialorder %v3974, 0.0
        %v4011 = vand.u32 %v3974, 2147483648
        %v4012 = vsel %vm4010, %v4011, %v4009
        %v4013 = vrsqrt.pop %v3975
        %v4014 = vmul.f32 %v3975, %v4013
        %vm4015 = vcmp.eq.f32.partialorder %v3975, inf
        %v4016 = vsel %vm4015, %v3975, %v4014
        %vm4017 = vcmp.eq.f32.partialorder %v3975, 0.0
        %v4018 = vand.u32 %v3975, 2147483648
        %v4019 = vsel %vm4017, %v4018, %v4016
        %v4020 = vrsqrt.pop %v3976
        %v4021 = vmul.f32 %v3976, %v4020
        %vm4022 = vcmp.eq.f32.partialorder %v3976, inf
        %v4023 = vsel %vm4022, %v3976, %v4021
        %vm4024 = vcmp.eq.f32.partialorder %v3976, 0.0
        %v4025 = vand.u32 %v3976, 2147483648
        %v4026 = vsel %vm4024, %v4025, %v4023
        %v4027 = vrsqrt.pop %v3977
        %v4028 = vmul.f32 %v3977, %v4027
        %vm4029 = vcmp.eq.f32.partialorder %v3977, inf
        %v4030 = vsel %vm4029, %v3977, %v4028
        %vm4031 = vcmp.eq.f32.partialorder %v3977, 0.0
        %v4032 = vand.u32 %v3977, 2147483648
        %v4033 = vsel %vm4031, %v4032, %v4030
        %v4034 = vrsqrt.pop %v3978
        %v4035 = vmul.f32 %v3978, %v4034
        %vm4036 = vcmp.eq.f32.partialorder %v3978, inf
        %v4037 = vsel %vm4036, %v3978, %v4035
        %vm4038 = vcmp.eq.f32.partialorder %v3978, 0.0
        %v4039 = vand.u32 %v3978, 2147483648
        %v4040 = vsel %vm4038, %v4039, %v4037
        %v4041 = vrsqrt.pop %v3979
        %v4042 = vmul.f32 %v3979, %v4041
        %vm4043 = vcmp.eq.f32.partialorder %v3979, inf
        %v4044 = vsel %vm4043, %v3979, %v4042
        %vm4045 = vcmp.eq.f32.partialorder %v3979, 0.0
        %v4046 = vand.u32 %v3979, 2147483648
        %v4047 = vsel %vm4045, %v4046, %v4044
        %v4048 = vrsqrt.pop %v3980
        %v4049 = vmul.f32 %v3980, %v4048
        %vm4050 = vcmp.eq.f32.partialorder %v3980, inf
        %v4051 = vsel %vm4050, %v3980, %v4049
        %vm4052 = vcmp.eq.f32.partialorder %v3980, 0.0
        %v4053 = vand.u32 %v3980, 2147483648
        %v4054 = vsel %vm4052, %v4053, %v4051
        %v4055 = vrsqrt.pop %v3981
        %v4056 = vmul.f32 %v3981, %v4055
        %vm4057 = vcmp.eq.f32.partialorder %v3981, inf
        %v4058 = vsel %vm4057, %v3981, %v4056
        %vm4059 = vcmp.eq.f32.partialorder %v3981, 0.0
        %v4060 = vand.u32 %v3981, 2147483648
        %v4061 = vsel %vm4059, %v4060, %v4058
        %v4062 = vrsqrt.pop %v3982
        %v4063 = vmul.f32 %v3982, %v4062
        %vm4064 = vcmp.eq.f32.partialorder %v3982, inf
        %v4065 = vsel %vm4064, %v3982, %v4063
        %vm4066 = vcmp.eq.f32.partialorder %v3982, 0.0
        %v4067 = vand.u32 %v3982, 2147483648
        %v4068 = vsel %vm4066, %v4067, %v4065
        %v4069 = vrsqrt.pop %v3983
        %v4070 = vmul.f32 %v3983, %v4069
        %vm4071 = vcmp.eq.f32.partialorder %v3983, inf
        %v4072 = vsel %vm4071, %v3983, %v4070
        %vm4073 = vcmp.eq.f32.partialorder %v3983, 0.0
        %v4074 = vand.u32 %v3983, 2147483648
        %v4075 = vsel %vm4073, %v4074, %v4072
        %v4076 = vrsqrt.pop %v3984
        %v4077 = vmul.f32 %v3984, %v4076
        %vm4078 = vcmp.eq.f32.partialorder %v3984, inf
        %v4079 = vsel %vm4078, %v3984, %v4077
        %vm4080 = vcmp.eq.f32.partialorder %v3984, 0.0
        %v4081 = vand.u32 %v3984, 2147483648
        %v4082 = vsel %vm4080, %v4081, %v4079
        %v4083 = vrsqrt.pop %v3985
        %v4084 = vmul.f32 %v3985, %v4083
        %vm4085 = vcmp.eq.f32.partialorder %v3985, inf
        %v4086 = vsel %vm4085, %v3985, %v4084
        %vm4087 = vcmp.eq.f32.partialorder %v3985, 0.0
        %v4088 = vand.u32 %v3985, 2147483648
        %v4089 = vsel %vm4087, %v4088, %v4086
        %v4090 = vrsqrt.pop %v3986
        %v4091 = vmul.f32 %v3986, %v4090
        %vm4092 = vcmp.eq.f32.partialorder %v3986, inf
        %v4093 = vsel %vm4092, %v3986, %v4091
        %vm4094 = vcmp.eq.f32.partialorder %v3986, 0.0
        %v4095 = vand.u32 %v3986, 2147483648
        %v4096 = vsel %vm4094, %v4095, %v4093
        %v4097 = vrsqrt.pop %v3987
        %v4098 = vmul.f32 %v3987, %v4097
        %vm4099 = vcmp.eq.f32.partialorder %v3987, inf
        %v4100 = vsel %vm4099, %v3987, %v4098
        %vm4101 = vcmp.eq.f32.partialorder %v3987, 0.0
        %v4102 = vand.u32 %v3987, 2147483648
        %v4103 = vsel %vm4101, %v4102, %v4100
        %v4104 = vrsqrt.pop %v3988
        %v4105 = vmul.f32 %v3988, %v4104
        %vm4106 = vcmp.eq.f32.partialorder %v3988, inf
        %v4107 = vsel %vm4106, %v3988, %v4105
        %vm4108 = vcmp.eq.f32.partialorder %v3988, 0.0
        %v4109 = vand.u32 %v3988, 2147483648
        %v4110 = vsel %vm4108, %v4109, %v4107
        %v4111 = vrsqrt.pop %v3989
        %v4112 = vmul.f32 %v3989, %v4111
        %vm4113 = vcmp.eq.f32.partialorder %v3989, inf
        %v4114 = vsel %vm4113, %v3989, %v4112
        %vm4115 = vcmp.eq.f32.partialorder %v3989, 0.0
        %v4116 = vand.u32 %v3989, 2147483648
        %v4117 = vsel %vm4115, %v4116, %v4114
        %v4118 = vrsqrt.pop %v3990
        %v4119 = vmul.f32 %v3990, %v4118
        %vm4120 = vcmp.eq.f32.partialorder %v3990, inf
        %v4121 = vsel %vm4120, %v3990, %v4119
        %vm4122 = vcmp.eq.f32.partialorder %v3990, 0.0
        %v4123 = vand.u32 %v3990, 2147483648
        %v4124 = vsel %vm4122, %v4123, %v4121
        %v4125 = vrsqrt.pop %v3991
        %v4126 = vmul.f32 %v3991, %v4125
        %vm4127 = vcmp.eq.f32.partialorder %v3991, inf
        %v4128 = vsel %vm4127, %v3991, %v4126
        %vm4129 = vcmp.eq.f32.partialorder %v3991, 0.0
        %v4130 = vand.u32 %v3991, 2147483648
        %v4131 = vsel %vm4129, %v4130, %v4128
        %v4132 = vrsqrt.pop %v3992
        %v4133 = vmul.f32 %v3992, %v4132
        %vm4134 = vcmp.eq.f32.partialorder %v3992, inf
        %v4135 = vsel %vm4134, %v3992, %v4133
        %vm4136 = vcmp.eq.f32.partialorder %v3992, 0.0
        %v4137 = vand.u32 %v3992, 2147483648
        %v4138 = vsel %vm4136, %v4137, %v4135
        %v4139 = vrsqrt.pop %v3993
        %v4140 = vmul.f32 %v3993, %v4139
        %vm4141 = vcmp.eq.f32.partialorder %v3993, inf
        %v4142 = vsel %vm4141, %v3993, %v4140
        %vm4143 = vcmp.eq.f32.partialorder %v3993, 0.0
        %v4144 = vand.u32 %v3993, 2147483648
        %v4145 = vsel %vm4143, %v4144, %v4142
        %v4146 = vrsqrt.pop %v3994
        %v4147 = vmul.f32 %v3994, %v4146
        %vm4148 = vcmp.eq.f32.partialorder %v3994, inf
        %v4149 = vsel %vm4148, %v3994, %v4147
        %vm4150 = vcmp.eq.f32.partialorder %v3994, 0.0
        %v4151 = vand.u32 %v3994, 2147483648
        %v4152 = vsel %vm4150, %v4151, %v4149
        %v4153 = vrsqrt.pop %v3995
        %v4154 = vmul.f32 %v3995, %v4153
        %vm4155 = vcmp.eq.f32.partialorder %v3995, inf
        %v4156 = vsel %vm4155, %v3995, %v4154
        %vm4157 = vcmp.eq.f32.partialorder %v3995, 0.0
        %v4158 = vand.u32 %v3995, 2147483648
        %v4159 = vsel %vm4157, %v4158, %v4156
        %v4160 = vrsqrt.pop %v3996
        %v4161 = vmul.f32 %v3996, %v4160
        %vm4162 = vcmp.eq.f32.partialorder %v3996, inf
        %v4163 = vsel %vm4162, %v3996, %v4161
        %vm4164 = vcmp.eq.f32.partialorder %v3996, 0.0
        %v4165 = vand.u32 %v3996, 2147483648
        %v4166 = vsel %vm4164, %v4165, %v4163
        %v4167 = vrsqrt.pop %v3997
        %v4168 = vmul.f32 %v3997, %v4167
        %vm4169 = vcmp.eq.f32.partialorder %v3997, inf
        %v4170 = vsel %vm4169, %v3997, %v4168
        %vm4171 = vcmp.eq.f32.partialorder %v3997, 0.0
        %v4172 = vand.u32 %v3997, 2147483648
        %v4173 = vsel %vm4171, %v4172, %v4170
        %v4174 = vrsqrt.pop %v3998
        %v4175 = vmul.f32 %v3998, %v4174
        %vm4176 = vcmp.eq.f32.partialorder %v3998, inf
        %v4177 = vsel %vm4176, %v3998, %v4175
        %vm4178 = vcmp.eq.f32.partialorder %v3998, 0.0
        %v4179 = vand.u32 %v3998, 2147483648
        %v4180 = vsel %vm4178, %v4179, %v4177
        %v4181 = vrsqrt.pop %v3999
        %v4182 = vmul.f32 %v3999, %v4181
        %vm4183 = vcmp.eq.f32.partialorder %v3999, inf
        %v4184 = vsel %vm4183, %v3999, %v4182
        %vm4185 = vcmp.eq.f32.partialorder %v3999, 0.0
        %v4186 = vand.u32 %v3999, 2147483648
        %v4187 = vsel %vm4185, %v4186, %v4184
        %v4188 = vrsqrt.pop %v4000
        %v4189 = vmul.f32 %v4000, %v4188
        %vm4190 = vcmp.eq.f32.partialorder %v4000, inf
        %v4191 = vsel %vm4190, %v4000, %v4189
        %vm4192 = vcmp.eq.f32.partialorder %v4000, 0.0
        %v4193 = vand.u32 %v4000, 2147483648
        %v4194 = vsel %vm4192, %v4193, %v4191
        %v4195 = vrsqrt.pop %v4001
        %v4196 = vmul.f32 %v4001, %v4195
        %vm4197 = vcmp.eq.f32.partialorder %v4001, inf
        %v4198 = vsel %vm4197, %v4001, %v4196
        %vm4199 = vcmp.eq.f32.partialorder %v4001, 0.0
        %v4200 = vand.u32 %v4001, 2147483648
        %v4201 = vsel %vm4199, %v4200, %v4198
        %v4202 = vrsqrt.pop %v4002
        %v4203 = vmul.f32 %v4002, %v4202
        %vm4204 = vcmp.eq.f32.partialorder %v4002, inf
        %v4205 = vsel %vm4204, %v4002, %v4203
        %vm4206 = vcmp.eq.f32.partialorder %v4002, 0.0
        %v4207 = vand.u32 %v4002, 2147483648
        %v4208 = vsel %vm4206, %v4207, %v4205
        %v4209 = vrsqrt.pop %v4003
        %v4210 = vmul.f32 %v4003, %v4209
        %vm4211 = vcmp.eq.f32.partialorder %v4003, inf
        %v4212 = vsel %vm4211, %v4003, %v4210
        %vm4213 = vcmp.eq.f32.partialorder %v4003, 0.0
        %v4214 = vand.u32 %v4003, 2147483648
        %v4215 = vsel %vm4213, %v4214, %v4212
        %v4216 = vrsqrt.pop %v4004
        %v4217 = vmul.f32 %v4004, %v4216
        %vm4218 = vcmp.eq.f32.partialorder %v4004, inf
        %v4219 = vsel %vm4218, %v4004, %v4217
        %vm4220 = vcmp.eq.f32.partialorder %v4004, 0.0
        %v4221 = vand.u32 %v4004, 2147483648
        %v4222 = vsel %vm4220, %v4221, %v4219
        %v4223 = vrsqrt.pop %v4005
        %v4224 = vmul.f32 %v4005, %v4223
        %vm4225 = vcmp.eq.f32.partialorder %v4005, inf
        %v4226 = vsel %vm4225, %v4005, %v4224
        %vm4227 = vcmp.eq.f32.partialorder %v4005, 0.0
        %v4228 = vand.u32 %v4005, 2147483648
        %v4229 = vsel %vm4227, %v4228, %v4226
        %v4230 = vadd.f32 %v3910, %v4012
        %v4231 = vadd.f32 %v3911, %v4019
        %v4232 = vadd.f32 %v3912, %v4026
        %v4233 = vadd.f32 %v3913, %v4033
        %v4234 = vadd.f32 %v3914, %v4040
        %v4235 = vadd.f32 %v3915, %v4047
        %v4236 = vadd.f32 %v3916, %v4054
        %v4237 = vadd.f32 %v3917, %v4061
        %v4238 = vadd.f32 %v3918, %v4068
        %v4239 = vadd.f32 %v3919, %v4075
        %v4240 = vadd.f32 %v3920, %v4082
        %v4241 = vadd.f32 %v3921, %v4089
        %v4242 = vadd.f32 %v3922, %v4096
        %v4243 = vadd.f32 %v3923, %v4103
        %v4244 = vadd.f32 %v3924, %v4110
        %v4245 = vadd.f32 %v3925, %v4117
        %v4246 = vadd.f32 %v3926, %v4124
        %v4247 = vadd.f32 %v3927, %v4131
        %v4248 = vadd.f32 %v3928, %v4138
        %v4249 = vadd.f32 %v3929, %v4145
        %v4250 = vadd.f32 %v3930, %v4152
        %v4251 = vadd.f32 %v3931, %v4159
        %v4252 = vadd.f32 %v3932, %v4166
        %v4253 = vadd.f32 %v3933, %v4173
        %v4254 = vadd.f32 %v3934, %v4180
        %v4255 = vadd.f32 %v3935, %v4187
        %v4256 = vadd.f32 %v3936, %v4194
        %v4257 = vadd.f32 %v3937, %v4201
        %v4258 = vadd.f32 %v3938, %v4208
        %v4259 = vadd.f32 %v3939, %v4215
        %v4260 = vadd.f32 %v3940, %v4222
        %v4261 = vadd.f32 %v3941, %v4229
        %v4262 = vlog2.pop %v4230
        %v4263 = vmul.f32 %v4262, 0.6931472
        %v4264 = vlog2.pop %v4231
        %v4265 = vmul.f32 %v4264, 0.6931472
        %v4266 = vlog2.pop %v4232
        %v4267 = vmul.f32 %v4266, 0.6931472
        %v4268 = vlog2.pop %v4233
        %v4269 = vmul.f32 %v4268, 0.6931472
        %v4270 = vlog2.pop %v4234
        %v4271 = vmul.f32 %v4270, 0.6931472
        %v4272 = vlog2.pop %v4235
        %v4273 = vmul.f32 %v4272, 0.6931472
        %v4274 = vlog2.pop %v4236
        %v4275 = vmul.f32 %v4274, 0.6931472
        %v4276 = vlog2.pop %v4237
        %v4277 = vmul.f32 %v4276, 0.6931472
        %v4278 = vlog2.pop %v4238
        %v4279 = vmul.f32 %v4278, 0.6931472
        %v4280 = vlog2.pop %v4239
        %v4281 = vmul.f32 %v4280, 0.6931472
        %v4282 = vlog2.pop %v4240
        %v4283 = vmul.f32 %v4282, 0.6931472
        %v4284 = vlog2.pop %v4241
        %v4285 = vmul.f32 %v4284, 0.6931472
        %v4286 = vlog2.pop %v4242
        %v4287 = vmul.f32 %v4286, 0.6931472
        %v4288 = vlog2.pop %v4243
        %v4289 = vmul.f32 %v4288, 0.6931472
        %v4290 = vlog2.pop %v4244
        %v4291 = vmul.f32 %v4290, 0.6931472
        %v4292 = vlog2.pop %v4245
        %v4293 = vmul.f32 %v4292, 0.6931472
        %v4294 = vlog2.pop %v4246
        %v4295 = vmul.f32 %v4294, 0.6931472
        %v4296 = vlog2.pop %v4247
        %v4297 = vmul.f32 %v4296, 0.6931472
        %v4298 = vlog2.pop %v4248
        %v4299 = vmul.f32 %v4298, 0.6931472
        %v4300 = vlog2.pop %v4249
        %v4301 = vmul.f32 %v4300, 0.6931472
        %v4302 = vlog2.pop %v4250
        %v4303 = vmul.f32 %v4302, 0.6931472
        %v4304 = vlog2.pop %v4251
        %v4305 = vmul.f32 %v4304, 0.6931472
        %v4306 = vlog2.pop %v4252
        %v4307 = vmul.f32 %v4306, 0.6931472
        %v4308 = vlog2.pop %v4253
        %v4309 = vmul.f32 %v4308, 0.6931472
        %v4310 = vlog2.pop %v4254
        %v4311 = vmul.f32 %v4310, 0.6931472
        %v4312 = vlog2.pop %v4255
        %v4313 = vmul.f32 %v4312, 0.6931472
        %v4314 = vlog2.pop %v4256
        %v4315 = vmul.f32 %v4314, 0.6931472
        %v4316 = vlog2.pop %v4257
        %v4317 = vmul.f32 %v4316, 0.6931472
        %v4318 = vlog2.pop %v4258
        %v4319 = vmul.f32 %v4318, 0.6931472
        %v4320 = vlog2.pop %v4259
        %v4321 = vmul.f32 %v4320, 0.6931472
        %v4322 = vlog2.pop %v4260
        %v4323 = vmul.f32 %v4322, 0.6931472
        %v4324 = vlog2.pop %v4261
        %v4325 = vmul.f32 %v4324, 0.6931472
        %v4326 = vmul.f32 %v3878, %v3878
        %v4327 = vmul.f32 %v3879, %v3879
        %v4328 = vmul.f32 %v3880, %v3880
        %v4329 = vmul.f32 %v3881, %v3881
        %v4330 = vmul.f32 %v3882, %v3882
        %v4331 = vmul.f32 %v3883, %v3883
        %v4332 = vmul.f32 %v3884, %v3884
        %v4333 = vmul.f32 %v3885, %v3885
        %v4334 = vmul.f32 %v3886, %v3886
        %v4335 = vmul.f32 %v3887, %v3887
        %v4336 = vmul.f32 %v3888, %v3888
        %v4337 = vmul.f32 %v3889, %v3889
        %v4338 = vmul.f32 %v3890, %v3890
        %v4339 = vmul.f32 %v3891, %v3891
        %v4340 = vmul.f32 %v3892, %v3892
        %v4341 = vmul.f32 %v3893, %v3893
        %v4342 = vmul.f32 %v3894, %v3894
        %v4343 = vmul.f32 %v3895, %v3895
        %v4344 = vmul.f32 %v3896, %v3896
        %v4345 = vmul.f32 %v3897, %v3897
        %v4346 = vmul.f32 %v3898, %v3898
        %v4347 = vmul.f32 %v3899, %v3899
        %v4348 = vmul.f32 %v3900, %v3900
        %v4349 = vmul.f32 %v3901, %v3901
        %v4350 = vmul.f32 %v3902, %v3902
        %v4351 = vmul.f32 %v3903, %v3903
        %v4352 = vmul.f32 %v3904, %v3904
        %v4353 = vmul.f32 %v3905, %v3905
        %v4354 = vmul.f32 %v3906, %v3906
        %v4355 = vmul.f32 %v3907, %v3907
        %v4356 = vmul.f32 %v3908, %v3908
        %v4357 = vmul.f32 %v3909, %v3909
        %v4358 = vsub.f32 %v4326, 1.0
        %v4359 = vsub.f32 %v4327, 1.0
        %v4360 = vsub.f32 %v4328, 1.0
        %v4361 = vsub.f32 %v4329, 1.0
        %v4362 = vsub.f32 %v4330, 1.0
        %v4363 = vsub.f32 %v4331, 1.0
        %v4364 = vsub.f32 %v4332, 1.0
        %v4365 = vsub.f32 %v4333, 1.0
        %v4366 = vsub.f32 %v4334, 1.0
        %v4367 = vsub.f32 %v4335, 1.0
        %v4368 = vsub.f32 %v4336, 1.0
        %v4369 = vsub.f32 %v4337, 1.0
        %v4370 = vsub.f32 %v4338, 1.0
        %v4371 = vsub.f32 %v4339, 1.0
        %v4372 = vsub.f32 %v4340, 1.0
        %v4373 = vsub.f32 %v4341, 1.0
        %v4374 = vsub.f32 %v4342, 1.0
        %v4375 = vsub.f32 %v4343, 1.0
        %v4376 = vsub.f32 %v4344, 1.0
        %v4377 = vsub.f32 %v4345, 1.0
        %v4378 = vsub.f32 %v4346, 1.0
        %v4379 = vsub.f32 %v4347, 1.0
        %v4380 = vsub.f32 %v4348, 1.0
        %v4381 = vsub.f32 %v4349, 1.0
        %v4382 = vsub.f32 %v4350, 1.0
        %v4383 = vsub.f32 %v4351, 1.0
        %v4384 = vsub.f32 %v4352, 1.0
        %v4385 = vsub.f32 %v4353, 1.0
        %v4386 = vsub.f32 %v4354, 1.0
        %v4387 = vsub.f32 %v4355, 1.0
        %v4388 = vsub.f32 %v4356, 1.0
        %v4389 = vsub.f32 %v4357, 1.0
        %v4390 = vmax.f32 %v4358, 1e-08
        %v4391 = vmax.f32 %v4359, 1e-08
        %v4392 = vmax.f32 %v4360, 1e-08
        %v4393 = vmax.f32 %v4361, 1e-08
        %v4394 = vmax.f32 %v4362, 1e-08
        %v4395 = vmax.f32 %v4363, 1e-08
        %v4396 = vmax.f32 %v4364, 1e-08
        %v4397 = vmax.f32 %v4365, 1e-08
        %v4398 = vmax.f32 %v4366, 1e-08
        %v4399 = vmax.f32 %v4367, 1e-08
        %v4400 = vmax.f32 %v4368, 1e-08
        %v4401 = vmax.f32 %v4369, 1e-08
        %v4402 = vmax.f32 %v4370, 1e-08
        %v4403 = vmax.f32 %v4371, 1e-08
        %v4404 = vmax.f32 %v4372, 1e-08
        %v4405 = vmax.f32 %v4373, 1e-08
        %v4406 = vmax.f32 %v4374, 1e-08
        %v4407 = vmax.f32 %v4375, 1e-08
        %v4408 = vmax.f32 %v4376, 1e-08
        %v4409 = vmax.f32 %v4377, 1e-08
        %v4410 = vmax.f32 %v4378, 1e-08
        %v4411 = vmax.f32 %v4379, 1e-08
        %v4412 = vmax.f32 %v4380, 1e-08
        %v4413 = vmax.f32 %v4381, 1e-08
        %v4414 = vmax.f32 %v4382, 1e-08
        %v4415 = vmax.f32 %v4383, 1e-08
        %v4416 = vmax.f32 %v4384, 1e-08
        %v4417 = vmax.f32 %v4385, 1e-08
        %v4418 = vmax.f32 %v4386, 1e-08
        %v4419 = vmax.f32 %v4387, 1e-08
        %v4420 = vmax.f32 %v4388, 1e-08
        %v4421 = vmax.f32 %v4389, 1e-08
        %v4422 = vrsqrt.pop %v4390
        %v4423 = vrsqrt.pop %v4391
        %v4424 = vrsqrt.pop %v4392
        %v4425 = vrsqrt.pop %v4393
        %v4426 = vrsqrt.pop %v4394
        %v4427 = vrsqrt.pop %v4395
        %v4428 = vrsqrt.pop %v4396
        %v4429 = vrsqrt.pop %v4397
        %v4430 = vrsqrt.pop %v4398
        %v4431 = vrsqrt.pop %v4399
        %v4432 = vrsqrt.pop %v4400
        %v4433 = vrsqrt.pop %v4401
        %v4434 = vrsqrt.pop %v4402
        %v4435 = vrsqrt.pop %v4403
        %v4436 = vrsqrt.pop %v4404
        %v4437 = vrsqrt.pop %v4405
        %v4438 = vrsqrt.pop %v4406
        %v4439 = vrsqrt.pop %v4407
        %v4440 = vrsqrt.pop %v4408
        %v4441 = vrsqrt.pop %v4409
        %v4442 = vrsqrt.pop %v4410
        %v4443 = vrsqrt.pop %v4411
        %v4444 = vrsqrt.pop %v4412
        %v4445 = vrsqrt.pop %v4413
        %v4446 = vrsqrt.pop %v4414
        %v4447 = vrsqrt.pop %v4415
        %v4448 = vrsqrt.pop %v4416
        %v4449 = vrsqrt.pop %v4417
        %v4450 = vrsqrt.pop %v4418
        %v4451 = vrsqrt.pop %v4419
        %v4452 = vrsqrt.pop %v4420
        %v4453 = vrsqrt.pop %v4421
        %v4454 = vmul.f32 %v4263, %v4422
        %v4455 = vmul.f32 %v4265, %v4423
        %v4456 = vmul.f32 %v4267, %v4424
        %v4457 = vmul.f32 %v4269, %v4425
        %v4458 = vmul.f32 %v4271, %v4426
        %v4459 = vmul.f32 %v4273, %v4427
        %v4460 = vmul.f32 %v4275, %v4428
        %v4461 = vmul.f32 %v4277, %v4429
        %v4462 = vmul.f32 %v4279, %v4430
        %v4463 = vmul.f32 %v4281, %v4431
        %v4464 = vmul.f32 %v4283, %v4432
        %v4465 = vmul.f32 %v4285, %v4433
        %v4466 = vmul.f32 %v4287, %v4434
        %v4467 = vmul.f32 %v4289, %v4435
        %v4468 = vmul.f32 %v4291, %v4436
        %v4469 = vmul.f32 %v4293, %v4437
        %v4470 = vmul.f32 %v4295, %v4438
        %v4471 = vmul.f32 %v4297, %v4439
        %v4472 = vmul.f32 %v4299, %v4440
        %v4473 = vmul.f32 %v4301, %v4441
        %v4474 = vmul.f32 %v4303, %v4442
        %v4475 = vmul.f32 %v4305, %v4443
        %v4476 = vmul.f32 %v4307, %v4444
        %v4477 = vmul.f32 %v4309, %v4445
        %v4478 = vmul.f32 %v4311, %v4446
        %v4479 = vmul.f32 %v4313, %v4447
        %v4480 = vmul.f32 %v4315, %v4448
        %v4481 = vmul.f32 %v4317, %v4449
        %v4482 = vmul.f32 %v4319, %v4450
        %v4483 = vmul.f32 %v4321, %v4451
        %v4484 = vmul.f32 %v4323, %v4452
        %v4485 = vmul.f32 %v4325, %v4453
        %v4486 = vmul.f32 %v4454, %v3846
        %v4487 = vmul.f32 %v4455, %v3847
        %v4488 = vmul.f32 %v4456, %v3848
        %v4489 = vmul.f32 %v4457, %v3849
        %v4490 = vmul.f32 %v4458, %v3850
        %v4491 = vmul.f32 %v4459, %v3851
        %v4492 = vmul.f32 %v4460, %v3852
        %v4493 = vmul.f32 %v4461, %v3853
        %v4494 = vmul.f32 %v4462, %v3854
        %v4495 = vmul.f32 %v4463, %v3855
        %v4496 = vmul.f32 %v4464, %v3856
        %v4497 = vmul.f32 %v4465, %v3857
        %v4498 = vmul.f32 %v4466, %v3858
        %v4499 = vmul.f32 %v4467, %v3859
        %v4500 = vmul.f32 %v4468, %v3860
        %v4501 = vmul.f32 %v4469, %v3861
        %v4502 = vmul.f32 %v4470, %v3862
        %v4503 = vmul.f32 %v4471, %v3863
        %v4504 = vmul.f32 %v4472, %v3864
        %v4505 = vmul.f32 %v4473, %v3865
        %v4506 = vmul.f32 %v4474, %v3866
        %v4507 = vmul.f32 %v4475, %v3867
        %v4508 = vmul.f32 %v4476, %v3868
        %v4509 = vmul.f32 %v4477, %v3869
        %v4510 = vmul.f32 %v4478, %v3870
        %v4511 = vmul.f32 %v4479, %v3871
        %v4512 = vmul.f32 %v4480, %v3872
        %v4513 = vmul.f32 %v4481, %v3873
        %v4514 = vmul.f32 %v4482, %v3874
        %v4515 = vmul.f32 %v4483, %v3875
        %v4516 = vmul.f32 %v4484, %v3876
        %v4517 = vmul.f32 %v4485, %v3877
        %4519 = vset.pattern.permute.xlu0 0
        %4520 = vperm.xlu0 %4519, %v4486
        %v4521 = vpop.permute.xlu0 %4520
        %4524 = vset.pattern.permute.xlu0 0
        %4525 = vperm.xlu0 %4524, %v4487
        %v4526 = vpop.permute.xlu0 %4525
        %4529 = vset.pattern.permute.xlu0 0
        %4530 = vperm.xlu0 %4529, %v4488
        %v4531 = vpop.permute.xlu0 %4530
        %4534 = vset.pattern.permute.xlu0 0
        %4535 = vperm.xlu0 %4534, %v4489
        %v4536 = vpop.permute.xlu0 %4535
        %4539 = vset.pattern.permute.xlu0 0
        %4540 = vperm.xlu0 %4539, %v4490
        %v4541 = vpop.permute.xlu0 %4540
        %4544 = vset.pattern.permute.xlu0 0
        %4545 = vperm.xlu0 %4544, %v4491
        %v4546 = vpop.permute.xlu0 %4545
        %4549 = vset.pattern.permute.xlu0 0
        %4550 = vperm.xlu0 %4549, %v4492
        %v4551 = vpop.permute.xlu0 %4550
        %4554 = vset.pattern.permute.xlu0 0
        %4555 = vperm.xlu0 %4554, %v4493
        %v4556 = vpop.permute.xlu0 %4555
        %4559 = vset.pattern.permute.xlu0 0
        %4560 = vperm.xlu0 %4559, %v4494
        %v4561 = vpop.permute.xlu0 %4560
        %4564 = vset.pattern.permute.xlu0 0
        %4565 = vperm.xlu0 %4564, %v4495
        %v4566 = vpop.permute.xlu0 %4565
        %4569 = vset.pattern.permute.xlu0 0
        %4570 = vperm.xlu0 %4569, %v4496
        %v4571 = vpop.permute.xlu0 %4570
        %4574 = vset.pattern.permute.xlu0 0
        %4575 = vperm.xlu0 %4574, %v4497
        %v4576 = vpop.permute.xlu0 %4575
        %4579 = vset.pattern.permute.xlu0 0
        %4580 = vperm.xlu0 %4579, %v4498
        %v4581 = vpop.permute.xlu0 %4580
        %4584 = vset.pattern.permute.xlu0 0
        %4585 = vperm.xlu0 %4584, %v4499
        %v4586 = vpop.permute.xlu0 %4585
        %4589 = vset.pattern.permute.xlu0 0
        %4590 = vperm.xlu0 %4589, %v4500
        %v4591 = vpop.permute.xlu0 %4590
        %4594 = vset.pattern.permute.xlu0 0
        %4595 = vperm.xlu0 %4594, %v4501
        %v4596 = vpop.permute.xlu0 %4595
        %4599 = vset.pattern.permute.xlu0 0
        %4600 = vperm.xlu0 %4599, %v4502
        %v4601 = vpop.permute.xlu0 %4600
        %4604 = vset.pattern.permute.xlu0 0
        %4605 = vperm.xlu0 %4604, %v4503
        %v4606 = vpop.permute.xlu0 %4605
        %4609 = vset.pattern.permute.xlu0 0
        %4610 = vperm.xlu0 %4609, %v4504
        %v4611 = vpop.permute.xlu0 %4610
        %4614 = vset.pattern.permute.xlu0 0
        %4615 = vperm.xlu0 %4614, %v4505
        %v4616 = vpop.permute.xlu0 %4615
        %4619 = vset.pattern.permute.xlu0 0
        %4620 = vperm.xlu0 %4619, %v4506
        %v4621 = vpop.permute.xlu0 %4620
        %4624 = vset.pattern.permute.xlu0 0
        %4625 = vperm.xlu0 %4624, %v4507
        %v4626 = vpop.permute.xlu0 %4625
        %4629 = vset.pattern.permute.xlu0 0
        %4630 = vperm.xlu0 %4629, %v4508
        %v4631 = vpop.permute.xlu0 %4630
        %4634 = vset.pattern.permute.xlu0 0
        %4635 = vperm.xlu0 %4634, %v4509
        %v4636 = vpop.permute.xlu0 %4635
        %4639 = vset.pattern.permute.xlu0 0
        %4640 = vperm.xlu0 %4639, %v4510
        %v4641 = vpop.permute.xlu0 %4640
        %4644 = vset.pattern.permute.xlu0 0
        %4645 = vperm.xlu0 %4644, %v4511
        %v4646 = vpop.permute.xlu0 %4645
        %4649 = vset.pattern.permute.xlu0 0
        %4650 = vperm.xlu0 %4649, %v4512
        %v4651 = vpop.permute.xlu0 %4650
        %4654 = vset.pattern.permute.xlu0 0
        %4655 = vperm.xlu0 %4654, %v4513
        %v4656 = vpop.permute.xlu0 %4655
        %4659 = vset.pattern.permute.xlu0 0
        %4660 = vperm.xlu0 %4659, %v4514
        %v4661 = vpop.permute.xlu0 %4660
        %4664 = vset.pattern.permute.xlu0 0
        %4665 = vperm.xlu0 %4664, %v4515
        %v4666 = vpop.permute.xlu0 %4665
        %4669 = vset.pattern.permute.xlu0 0
        %4670 = vperm.xlu0 %4669, %v4516
        %v4671 = vpop.permute.xlu0 %4670
        %4674 = vset.pattern.permute.xlu0 0
        %4675 = vperm.xlu0 %4674, %v4517
        %v4676 = vpop.permute.xlu0 %4675
        %v4678 = vmul.f32 %v4521, %v3494
        %v4679 = vmul.f32 %v4526, %v3495
        %v4680 = vmul.f32 %v4531, %v3496
        %v4681 = vmul.f32 %v4536, %v3497
        %v4682 = vmul.f32 %v4541, %v3498
        %v4683 = vmul.f32 %v4546, %v3499
        %v4684 = vmul.f32 %v4551, %v3500
        %v4685 = vmul.f32 %v4556, %v3501
        %v4686 = vmul.f32 %v4561, %v3502
        %v4687 = vmul.f32 %v4566, %v3503
        %v4688 = vmul.f32 %v4571, %v3504
        %v4689 = vmul.f32 %v4576, %v3505
        %v4690 = vmul.f32 %v4581, %v3506
        %v4691 = vmul.f32 %v4586, %v3507
        %v4692 = vmul.f32 %v4591, %v3508
        %v4693 = vmul.f32 %v4596, %v3509
        %v4694 = vmul.f32 %v4601, %v3510
        %v4695 = vmul.f32 %v4606, %v3511
        %v4696 = vmul.f32 %v4611, %v3512
        %v4697 = vmul.f32 %v4616, %v3513
        %v4698 = vmul.f32 %v4621, %v3514
        %v4699 = vmul.f32 %v4626, %v3515
        %v4700 = vmul.f32 %v4631, %v3516
        %v4701 = vmul.f32 %v4636, %v3517
        %v4702 = vmul.f32 %v4641, %v3518
        %v4703 = vmul.f32 %v4646, %v3519
        %v4704 = vmul.f32 %v4651, %v3520
        %v4705 = vmul.f32 %v4656, %v3521
        %v4706 = vmul.f32 %v4661, %v3522
        %v4707 = vmul.f32 %v4666, %v3523
        %v4708 = vmul.f32 %v4671, %v3524
        %v4709 = vmul.f32 %v4676, %v3525
        %v4710 = vsel %vm324, 0.0, %v4678
        %v4711 = vsel %vm324, 0.0, %v4679
        %v4712 = vsel %vm324, 0.0, %v4680
        %v4713 = vsel %vm324, 0.0, %v4681
        %v4714 = vsel %vm324, 0.0, %v4682
        %v4715 = vsel %vm324, 0.0, %v4683
        %v4716 = vsel %vm324, 0.0, %v4684
        %v4717 = vsel %vm324, 0.0, %v4685
        %v4718 = vsel %vm324, 0.0, %v4686
        %v4719 = vsel %vm324, 0.0, %v4687
        %v4720 = vsel %vm324, 0.0, %v4688
        %v4721 = vsel %vm324, 0.0, %v4689
        %v4722 = vsel %vm324, 0.0, %v4690
        %v4723 = vsel %vm324, 0.0, %v4691
        %v4724 = vsel %vm324, 0.0, %v4692
        %v4725 = vsel %vm324, 0.0, %v4693
        %v4726 = vsel %vm324, 0.0, %v4694
        %v4727 = vsel %vm324, 0.0, %v4695
        %v4728 = vsel %vm324, 0.0, %v4696
        %v4729 = vsel %vm324, 0.0, %v4697
        %v4730 = vsel %vm324, 0.0, %v4698
        %v4731 = vsel %vm324, 0.0, %v4699
        %v4732 = vsel %vm324, 0.0, %v4700
        %v4733 = vsel %vm324, 0.0, %v4701
        %v4734 = vsel %vm324, 0.0, %v4702
        %v4735 = vsel %vm324, 0.0, %v4703
        %v4736 = vsel %vm324, 0.0, %v4704
        %v4737 = vsel %vm324, 0.0, %v4705
        %v4738 = vsel %vm324, 0.0, %v4706
        %v4739 = vsel %vm324, 0.0, %v4707
        %v4740 = vsel %vm324, 0.0, %v4708
        %v4741 = vsel %vm324, 0.0, %v4709
        %4742 = vst [vmem:[%s241] sm:$0xff] %v4710
        %4743 = vst [vmem:[%s241 + $0x8] sm:$0xff] %v4711
        %4744 = vst [vmem:[%s241 + $0x10] sm:$0xff] %v4712
        %4745 = vst [vmem:[%s241 + $0x18] sm:$0xff] %v4713
        %4746 = vst [vmem:[%s241 + $0x20] sm:$0xff] %v4714
        %4747 = vst [vmem:[%s241 + $0x28] sm:$0xff] %v4715
        %4748 = vst [vmem:[%s241 + $0x30] sm:$0xff] %v4716
        %4749 = vst [vmem:[%s241 + $0x38] sm:$0xff] %v4717
        %4750 = vst [vmem:[%s241 + $0x40] sm:$0xff] %v4718
        %4751 = vst [vmem:[%s241 + $0x48] sm:$0xff] %v4719
        %4752 = vst [vmem:[%s241 + $0x50] sm:$0xff] %v4720
        %4753 = vst [vmem:[%s241 + $0x58] sm:$0xff] %v4721
        %4754 = vst [vmem:[%s241 + $0x60] sm:$0xff] %v4722
        %4755 = vst [vmem:[%s241 + $0x68] sm:$0xff] %v4723
        %4756 = vst [vmem:[%s241 + $0x70] sm:$0xff] %v4724
        %4757 = vst [vmem:[%s241 + $0x78] sm:$0xff] %v4725
        %4758 = vst [vmem:[%s241 + $0x80] sm:$0xff] %v4726
        %4759 = vst [vmem:[%s241 + $0x88] sm:$0xff] %v4727
        %4760 = vst [vmem:[%s241 + $0x90] sm:$0xff] %v4728
        %4761 = vst [vmem:[%s241 + $0x98] sm:$0xff] %v4729
        %4762 = vst [vmem:[%s241 + $0xa0] sm:$0xff] %v4730
        %4763 = vst [vmem:[%s241 + $0xa8] sm:$0xff] %v4731
        %4764 = vst [vmem:[%s241 + $0xb0] sm:$0xff] %v4732
        %4765 = vst [vmem:[%s241 + $0xb8] sm:$0xff] %v4733
        %4766 = vst [vmem:[%s241 + $0xc0] sm:$0xff] %v4734
        %4767 = vst [vmem:[%s241 + $0xc8] sm:$0xff] %v4735
        %4768 = vst [vmem:[%s241 + $0xd0] sm:$0xff] %v4736
        %4769 = vst [vmem:[%s241 + $0xd8] sm:$0xff] %v4737
        %4770 = vst [vmem:[%s241 + $0xe0] sm:$0xff] %v4738
        %4771 = vst [vmem:[%s241 + $0xe8] sm:$0xff] %v4739
        %4772 = vst [vmem:[%s241 + $0xf0] sm:$0xff] %v4740
        %4773 = vst [vmem:[%s241 + $0xf8] sm:$0xff] %v4741
        %s4774 = sand.u32 %s105, 1
        %s4775 = scalar_lea.sflag [#allocation5], %s4774
        %s4776 = sand.u32 %s105, 1
        %s4777 = smul.addr %s4776, 256
        %s4778 = scalar_lea.vmem [#allocation8], %s4777
        // Predicated region
        $region41: #{hfusion_forward.1} parent=31 // pred_check
          %p4779 = pneg %p115
        $region42: #{hfusion_forward.1} parent=31 // pred_check_branch
          %4781 = sbr.rel (%p4779) target = $region44
        $region43: #{hfusion_forward.1} parent=31 // pred_region
          %s4782 = smul.u32 32, %s24
          %s4783 = ssub.s32 38, %s4782
          %p4784 = scmp.lt.s32.totalorder %s4783, 32
          %s4785 = scalar_select %p4784, %s4783, 32
          %s4786 = smul.u32 128, %s4785
          %s4788 = ssub.s32 4096, %s4786
          %4789 = vsyncadd %s4775, %s4788
          %p4790 = scmp.ne.s32.totalorder 0, %s4786
          %s4791 = smul.addr %s4782, 128
          %s4792 = scalar_lea.hbm %s3, %s4791
          %s4793 = smul.u32 8, %s4785
          %s4794 = sshll.u32 %s4778, 4
          %s4795 = int_to_ptr.vmem [resolvable:$true] %s4794
          %s4796 = sshll.u32 %s4793, 4
          %4800 = dma.vmem_to_hbm [thread:$0]  (%p4790), %s4795, %s4796, %s4792, %s4775, 128, 128, 8
        $region44: #{hfusion_forward.1} parent=31 // pred_fallthru
          _
      $region32: #{hfusion_forward.1} parent=5 // pred_fallthru
        _
      %p4801 = scmp.le.s32.totalorder 2, %s19
      // Predicated region
      $region45: #{hfusion_forward.1} parent=5 // pred_check
        %p4802 = pneg %p4801
      $region46: #{hfusion_forward.1} parent=5 // pred_check_branch
        %4804 = sbr.rel (%p4802) target = $region48
      $region47: #{hfusion_forward.1} parent=5 // pred_region
        %s4805 = ssub.s32 %s19, 2
        // Predicated region
        $region49: #{hfusion_forward.1} parent=47 // pred_check
          %p4806 = pneg %p121
        $region50: #{hfusion_forward.1} parent=47 // pred_check_branch
          %4808 = sbr.rel (%p4806) target = $region52
        $region51: #{hfusion_forward.1} parent=47 // pred_region
          %s4809 = sand.u32 %s106, 1
          %s4810 = scalar_lea.sflag [#allocation5], %s4809
          %s4811 = sand.u32 %s106, 1
          %s4812 = smul.addr %s4811, 256
          %s4813 = scalar_lea.vmem [#allocation8], %s4812
          %4814 = dma.done %s4810, 4096
        $region52: #{hfusion_forward.1} parent=47 // pred_fallthru
          _
      $region48: #{hfusion_forward.1} parent=5 // pred_fallthru
        _
    $region6: #{hfusion_forward.1} parent=1 // loop_footer
      %s23 = sadd.s32 1, %s19
    $region7: #{hfusion_forward.1} parent=1 // loop_footer_branch
      %18 = sbr.rel target = $region3
    $region8: #{hfusion_forward.1} parent=1 // loop_exit
      _
    %4815 = vsyncpa [#allocation4], 1
    %s4816 = scalar_lea.sflag [#allocation4], 1
    %4817 = vsyncpa %s4816, 1
    %4818 = vsyncpa [#allocation7], 1
    %s4819 = scalar_lea.sflag [#allocation7], 1
    %4820 = vsyncpa %s4819, 1
    %4821 = vsyncpa [#allocation5], 1
    %s4822 = scalar_lea.sflag [#allocation5], 1
    %4823 = vsyncpa %s4822, 1

</llo_original>
